<compile_context>
chip_gen: v7x
topology: tpu7x:2x2x1
jax: 0.10.0
libtpu: 0.0.40
codegen_flags: <defaults>
</compile_context>

<pallas_src>
import numpy as np
import jax
import jax.numpy as jnp
from jax.experimental import pallas as pl
from jax.experimental.pallas import tpu as pltpu

INC = 3               # input channels
BSC = 16              # base channel count
GC = BSC // 8         # 2  (InceptionDWConv2d branch width == int(16*0.125))
ID_CH = BSC - 3 * GC  # 10

# (dy, dx) shift offsets needed by: 3x3 convs (9), sobel (subset), and the
# (1,7)/(7,1) depthwise band convolutions.
SHIFT_PAIRS = []
for _dy in (-1, 0, 1):
    for _dx in (-1, 0, 1):
        SHIFT_PAIRS.append((_dy, _dx))
for _dx in (-3, -2, 2, 3):
    SHIFT_PAIRS.append((0, _dx))
for _dy in (-3, -2, 2, 3):
    SHIFT_PAIRS.append((_dy, 0))
SHIFT_IDX = {p: i for i, p in enumerate(SHIFT_PAIRS)}


def build_shift_masks(H, W):
    """mask[k, n] = 1 iff pixel n shifted by (dy,dx)_k stays in bounds (zero pad)."""
    N = H * W
    m = np.zeros((len(SHIFT_PAIRS), N), dtype=np.float32)
    n = np.arange(N)
    y, x = n // W, n % W
    for i, (dy, dx) in enumerate(SHIFT_PAIRS):
        valid = (y + dy >= 0) & (y + dy < H) & (x + dx >= 0) & (x + dx < W)
        m[i, valid] = 1.0
    return m


def build_image_masks(bt, N):
    """img_masks[b, l] = 1 iff lane l of the fused slab belongs to image b."""
    m = np.zeros((bt, bt * N), dtype=np.float32)
    for b in range(bt):
        m[b, b * N:(b + 1) * N] = 1.0
    return m


def w3x3_to_flat(w):
    """(Cout, Cin, 3, 3) -> (Cout, 9*Cin); column = (ky*3+kx)*Cin + cin,
    matching the order in which the kernel stacks the 9 shifted copies."""
    cout, cin = w.shape[0], w.shape[1]
    return jnp.transpose(w, (0, 2, 3, 1)).reshape(cout, 9 * cin)


def make_kernel(H, W, bt):
    N = H * W
    L = bt * N
    inv_n = 1.0 / float(N)
    eps = 1e-5

    def kernel(x_ref, masks_ref, img_ref,
               wa_ref, wb_ref, wid_ref, gamma_ref, beta_ref, wblk_ref, wout_ref,
               whw_w_ref, whw_b_ref, ww_w_ref, ww_b_ref, wh_w_ref, wh_b_ref,
               out_ref):
        masks = masks_ref[...]                           # (17, L) f32 boundary masks
        img = img_ref[...] if bt > 1 else None           # (bt, L) per-image lane masks
        x = x_ref[...]                                   # (3, L) f32 raw pixels

        def shift_f32(a, dy, dx):
            # zero-padded spatial shift: out[:, l] = a[:, l + dy*W + dx] (in bounds)
            if dy == 0 and dx == 0:
                return a
            off = dy * W + dx
            rolled = pltpu.roll(a, shift=(-off) % L, axis=1)   # lane rotation (XLU)
            k = SHIFT_IDX[(dy, dx)]
            return rolled * masks[k:k + 1, :]

        def to_bf16(a):
            return a.astype(jnp.bfloat16)

        def instance_norm(v, gamma, beta):
            # per-(image, channel) InstanceNorm over the fused lane axis.
            if bt == 1:
                mu = jnp.mean(v, axis=-1, keepdims=True)
                xc = v - mu
                var = jnp.mean(xc * xc, axis=-1, keepdims=True)
                return xc * jax.lax.rsqrt(var + eps) * gamma + beta
            mu_full = jnp.zeros_like(v)
            for bi in range(bt):
                m = img[bi:bi + 1, :]
                mu_i = jnp.sum(v * m, axis=-1, keepdims=True) * inv_n
                mu_full = mu_full + mu_i * m
            xc = v - mu_full
            inv_full = jnp.zeros_like(v)
            for bi in range(bt):
                m = img[bi:bi + 1, :]
                var_i = jnp.sum(xc * xc * m, axis=-1, keepdims=True) * inv_n
                inv_full = inv_full + jax.lax.rsqrt(var_i + eps) * m
            return xc * inv_full * gamma + beta

        def argmin_channel_masks(mag_rgb):
            # per-image argmin over mean edge energy of the 3 colour channels
            # (first-min tie-break, matching torch.argmin); returns per-lane
            # one-hot selectors (m0, m1, m2).
            def one_hot(t):
                is0 = jnp.logical_and(t[0:1] <= t[1:2], t[0:1] <= t[2:3])
                is1 = jnp.logical_and(jnp.logical_not(is0), t[1:2] <= t[2:3])
                return is0.astype(jnp.float32), is1.astype(jnp.float32)
            if bt == 1:
                t = jnp.mean(mag_rgb, axis=-1, keepdims=True)      # (3, 1)
                m0, m1 = one_hot(t)
            else:
                m0 = jnp.zeros((1, L), jnp.float32)
                m1 = jnp.zeros((1, L), jnp.float32)
                for bi in range(bt):
                    m = img[bi:bi + 1, :]
                    t = jnp.sum(mag_rgb * m, axis=-1, keepdims=True) * inv_n
                    o0, o1 = one_hot(t)
                    m0 = m0 + o0 * m
                    m1 = m1 + o1 * m
            return m0, m1, 1.0 - m0 - m1

        # --- GradLayer (Sobel) on [r, g, b, gray]; gray last so the x-part of
        #     each shifted copy is a cheap prefix slice reused by conv_id. ---
        gray = ((65.738 / 256.0) * x[0:1, :] + (129.057 / 256.0) * x[1:2, :]
                + (25.064 / 256.0) * x[2:3, :])
        s4 = jnp.concatenate([x, gray], axis=0)           # (4, L)
        s4_up = shift_f32(s4, -1, 0)
        s4_dn = shift_f32(s4, 1, 0)
        s4_lf = shift_f32(s4, 0, -1)
        s4_rt = shift_f32(s4, 0, 1)
        gv = s4_dn - s4_up                                # conv with kernel_v
        gh = s4_rt - s4_lf                                # conv with kernel_h
        mag = jnp.sqrt(gv * gv + gh * gh + 1e-6)          # (4, L)
        edg = mag[3:4, :]                                 # gray edge map

        # --- per-image channel split driven by argmin of mean edge energy ---
        m0, m1, m2 = argmin_channel_masks(mag[0:3, :])
        x_min = m0 * x[0:1, :] + m1 * x[1:2, :] + m2 * x[2:3, :]
        rem0 = m0 * x[1:2, :] + (1.0 - m0) * x[0:1, :]    # first remaining channel
        rem1 = m2 * x[1:2, :] + (1.0 - m2) * x[2:3, :]    # second remaining channel

        # --- conv_first_a / conv_first_b (1x1, VPU) + conv_id (3x3, MXU) ---
        wa = wa_ref[...]
        wb = wb_ref[...]
        first_a = wa[:, 0:1] * edg + wa[:, 1:2] * x_min   # (16, L)
        first_b = wb[:, 0:1] * rem0 + wb[:, 1:2] * rem1   # (16, L)

        x_stack = []                                      # 9 shifted copies of x, bf16
        for dy in (-1, 0, 1):
            for dx in (-1, 0, 1):
                if (dy, dx) == (-1, 0):
                    s = s4_up[0:3, :]
                elif (dy, dx) == (1, 0):
                    s = s4_dn[0:3, :]
                elif (dy, dx) == (0, -1):
                    s = s4_lf[0:3, :]
                elif (dy, dx) == (0, 1):
                    s = s4_rt[0:3, :]
                else:
                    s = shift_f32(x, dy, dx)
                x_stack.append(to_bf16(s))
        id_raw = jnp.dot(wid_ref[...], jnp.concatenate(x_stack, axis=0),
                         preferred_element_type=jnp.float32)          # (16, L)

        # --- fused instance norm over [first_a ; first_b ; id] (48 rows) ---
        stk = jnp.concatenate([first_a, first_b, id_raw], axis=0)     # (48, L)
        stk_n = instance_norm(stk, gamma_ref[...], beta_ref[...])
        first_a_n = stk_n[0:BSC, :]
        first_b_n = stk_n[BSC:2 * BSC, :]
        id_n = stk_n[2 * BSC:3 * BSC, :]

        # --- block-diagonal fusion of conv_out_a / conv_out_b / conv_out_id ---
        parts = [to_bf16(first_a_n), to_bf16(first_b_n)]
        for dy in (-1, 0, 1):
            for dx in (-1, 0, 1):
                parts.append(to_bf16(shift_f32(id_n, dy, dx)))
        act176 = jnp.concatenate(parts, axis=0)                       # (176, L) bf16
        out_stack = jnp.dot(wblk_ref[...], act176,
                            preferred_element_type=jnp.float32)       # (12, L) f32
        mix = out_stack[0:4, :] + out_stack[4:8, :] + out_stack[8:12, :]
        cat = jnp.concatenate([out_stack, jnp.tanh(mix)], axis=0)     # (16, L)

        # --- conv_out: 3x3 on the 16-channel cat ---
        cat_stack = []
        for dy in (-1, 0, 1):
            for dx in (-1, 0, 1):
                cat_stack.append(to_bf16(shift_f32(cat, dy, dx)))
        y = jnp.dot(wout_ref[...], jnp.concatenate(cat_stack, axis=0),
                    preferred_element_type=jnp.float32)               # (16, L)

        # --- InceptionDWConv2d: identity / dw 1x1 / dw (1,7) / dw (7,1) ---
        y_hw = y[ID_CH:ID_CH + GC, :]
        y_w = y[ID_CH + GC:ID_CH + 2 * GC, :]
        y_h = y[ID_CH + 2 * GC:ID_CH + 3 * GC, :]

        # direct row-slice stores (lane-full, sublane-partial) — no final concat
        out_ref[0:ID_CH, :] = y[0:ID_CH, :]
        out_ref[ID_CH:ID_CH + GC, :] = whw_w_ref[...] * y_hw + whw_b_ref[...]

        ww_w = ww_w_ref[...]
        wh_w = wh_w_ref[...]
        acc_w = jnp.zeros_like(y_w)
        acc_h = jnp.zeros_like(y_h)
        for k in range(7):
            acc_w = acc_w + ww_w[:, k:k + 1] * shift_f32(y_w, 0, k - 3)
            acc_h = acc_h + wh_w[:, k:k + 1] * shift_f32(y_h, k - 3, 0)
        out_ref[ID_CH + GC:ID_CH + 2 * GC, :] = acc_w + ww_b_ref[...]
        out_ref[ID_CH + 2 * GC:BSC, :] = acc_h + wh_b_ref[...]

    return kernel


def init_params(key, inc=INC, bsc=BSC):
    gc = bsc // 8
    ks = jax.random.split(key, 19)

    def nrm(k, shape, scale=0.1):
        return (scale * jax.random.normal(k, shape)).astype(jnp.float32)

    p = {}
    p["wa"] = nrm(ks[0], (bsc, gc))               # conv_first_a (1x1, no bias)
    p["wb"] = nrm(ks[1], (bsc, gc))               # conv_first_b
    p["wid"] = nrm(ks[2], (bsc, inc, 3, 3))       # conv_id (3x3, no bias)
    p["ga"] = 1.0 + nrm(ks[3], (bsc, 1))          # instance_a affine
    p["ba"] = nrm(ks[4], (bsc, 1))
    p["gb"] = 1.0 + nrm(ks[5], (bsc, 1))          # instance_b affine
    p["bb"] = nrm(ks[6], (bsc, 1))
    p["gid"] = 1.0 + nrm(ks[7], (bsc, 1))         # instance_id affine
    p["bid"] = nrm(ks[8], (bsc, 1))
    p["woa"] = nrm(ks[9], (bsc // 4, bsc))        # conv_out_a (1x1)
    p["wob"] = nrm(ks[10], (bsc // 4, bsc))       # conv_out_b (1x1)
    p["woid"] = nrm(ks[11], (bsc // 4, bsc, 3, 3))  # conv_out_id (3x3)
    p["wout"] = nrm(ks[12], (bsc, bsc, 3, 3))     # conv_out (3x3)
    p["whw_w"] = nrm(ks[13], (gc, 1))             # lk.dwconv_hw (gc,1,1,1) + bias
    p["whw_b"] = nrm(ks[14], (gc, 1))
    p["ww_w"] = nrm(ks[15], (gc, 7))              # lk.dwconv_w (gc,1,1,7) + bias
    p["ww_b"] = nrm(ks[16], (gc, 1))
    p["wh_w"] = nrm(ks[17], (gc, 7))              # lk.dwconv_h (gc,1,7,1) + bias
    p["wh_b"] = nrm(ks[18], (gc, 1))
    return p
    # NOTE: PALayer (self.pa) and lk.instance are defined in __init__ but unused
    # in forward(), so their parameters are not materialized.


def _pick_batch_tile(B, N):
    """Pick images-per-grid-step. Prefer: grid >= 2 (pipelining) and grid even
    (v7x dual-TC sharding), subject to the partial-batch lane block being a
    multiple of 128 (full-batch blocks are exempt)."""
    cands = [d for d in range(B, 0, -1)
             if B % d == 0 and (d == B or (d * N) % 128 == 0)]
    for d in cands:
        g = B // d
        if g >= 2 and g % 2 == 0:
            return d
    for d in cands:
        if B // d >= 2:
            return d
    return B


def _build_block_diag_weight(params):
    """(12, 176) block-diagonal weight fusing conv_out_a / conv_out_b / conv_out_id."""
    woa = params["woa"]                      # (4, 16)
    wob = params["wob"]                      # (4, 16)
    woid_flat = w3x3_to_flat(params["woid"])  # (4, 144)
    z16 = jnp.zeros((4, 16), jnp.float32)
    z144 = jnp.zeros((4, 144), jnp.float32)
    row_a = jnp.concatenate([woa, z16, z144], axis=1)
    row_b = jnp.concatenate([z16, wob, z144], axis=1)
    row_id = jnp.concatenate([z16, z16, woid_flat], axis=1)
    return jnp.concatenate([row_a, row_b, row_id], axis=0).astype(jnp.bfloat16)


def split_aug_forward(x, params):
    B, C, H, W = x.shape
    assert C == INC
    N = H * W
    bt = _pick_batch_tile(B, N)
    L = bt * N

    # batch-fused lane layout: (C, B*N), lane index = b*N + n
    x_slab = jnp.transpose(x.reshape(B, C, N).astype(jnp.float32),
                           (1, 0, 2)).reshape(C, B * N)
    masks = jnp.asarray(np.tile(build_shift_masks(H, W), (1, bt)))   # (17, L)
    img_masks = jnp.asarray(build_image_masks(bt, N))                # (bt, L)

    bf16 = jnp.bfloat16
    g_all = jnp.concatenate([params["ga"], params["gb"], params["gid"]], axis=0)
    b_all = jnp.concatenate([params["ba"], params["bb"], params["bid"]], axis=0)

    inputs = [
        x_slab, masks, img_masks,
        params["wa"], params["wb"],
        w3x3_to_flat(params["wid"]).astype(bf16),     # (16, 27)
        g_all, b_all,                                 # (48, 1) each
        _build_block_diag_weight(params),             # (12, 176) bf16
        w3x3_to_flat(params["wout"]).astype(bf16),    # (16, 144)
        params["whw_w"], params["whw_b"],
        params["ww_w"], params["ww_b"],
        params["wh_w"], params["wh_b"],
    ]

    def const_spec(a):
        nd = a.ndim
        return pl.BlockSpec(a.shape, lambda i, _nd=nd: (0,) * _nd)

    in_specs = [pl.BlockSpec((C, L), lambda i: (0, i))]
    in_specs += [const_spec(a) for a in inputs[1:]]

    out_flat = pl.pallas_call(
        make_kernel(H, W, bt),
        out_shape=jax.ShapeDtypeStruct((BSC, B * N), jnp.float32),
        grid=(B // bt,),
        in_specs=in_specs,
        out_specs=pl.BlockSpec((BSC, L), lambda i: (0, i)),
        compiler_params=pltpu.CompilerParams(
            dimension_semantics=("parallel",),
            vmem_limit_bytes=32 * 1024 * 1024),
    )(*inputs)

    out = jnp.transpose(out_flat.reshape(BSC, B, N), (1, 0, 2))
    return out.reshape(B, BSC, H, W)


if __name__ == "__main__":
    key = jax.random.PRNGKey(0)
    kx, kp = jax.random.split(key)
    B, H, W = 4, 16, 16            # bt=2, grid=(2,): exercises pipelining,
    x = jax.random.uniform(kx, (B, INC, H, W), dtype=jnp.float32)
    params = init_params(kp)       # dual-TC sharding and the fused-lane path

    out = jax.block_until_ready(split_aug_forward(x, params))
    assert out.shape == (B, BSC, H, W), out.shape
    assert bool(jnp.all(jnp.isfinite(out)))
    print("KERNEL_OK")
</pallas_src>

<mosaic_0001>
module attributes {stable_mosaic.version = 11 : i64} {
  func.func @kernel(%arg0: i32, %arg1: memref<3x512xf32, #tpu.memory_space<vmem>>, %arg2: memref<17x512xf32, #tpu.memory_space<vmem>>, %arg3: memref<2x512xf32, #tpu.memory_space<vmem>>, %arg4: memref<16x2xf32, #tpu.memory_space<vmem>>, %arg5: memref<16x2xf32, #tpu.memory_space<vmem>>, %arg6: memref<16x27xbf16, #tpu.memory_space<vmem>>, %arg7: memref<48x1xf32, #tpu.memory_space<vmem>>, %arg8: memref<48x1xf32, #tpu.memory_space<vmem>>, %arg9: memref<12x176xbf16, #tpu.memory_space<vmem>>, %arg10: memref<16x144xbf16, #tpu.memory_space<vmem>>, %arg11: memref<2x1xf32, #tpu.memory_space<vmem>>, %arg12: memref<2x1xf32, #tpu.memory_space<vmem>>, %arg13: memref<2x7xf32, #tpu.memory_space<vmem>>, %arg14: memref<2x1xf32, #tpu.memory_space<vmem>>, %arg15: memref<2x7xf32, #tpu.memory_space<vmem>>, %arg16: memref<2x1xf32, #tpu.memory_space<vmem>>, %arg17: memref<16x512xf32, #tpu.memory_space<vmem>>) attributes {dimension_semantics = [#tpu.dimension_semantics<parallel>], iteration_bounds = array<i64: 2>, scalar_prefetch = 0 : i64, scratch_operands = 0 : i64, tpu.core_type = #tpu.core_type<tc>, window_params = [{transform_indices = @transform_0, window_bounds = array<i64: 3, 512>}, {pipeline_mode = #tpu.pipeline_mode<synchronous>, transform_indices = @transform_1, window_bounds = array<i64: 17, 512>}, {pipeline_mode = #tpu.pipeline_mode<synchronous>, transform_indices = @transform_2, window_bounds = array<i64: 2, 512>}, {pipeline_mode = #tpu.pipeline_mode<synchronous>, transform_indices = @transform_3, window_bounds = array<i64: 16, 2>}, {pipeline_mode = #tpu.pipeline_mode<synchronous>, transform_indices = @transform_4, window_bounds = array<i64: 16, 2>}, {pipeline_mode = #tpu.pipeline_mode<synchronous>, transform_indices = @transform_5, window_bounds = array<i64: 16, 27>}, {pipeline_mode = #tpu.pipeline_mode<synchronous>, transform_indices = @transform_6, window_bounds = array<i64: 48, 1>}, {pipeline_mode = #tpu.pipeline_mode<synchronous>, transform_indices = @transform_7, window_bounds = array<i64: 48, 1>}, {pipeline_mode = #tpu.pipeline_mode<synchronous>, transform_indices = @transform_8, window_bounds = array<i64: 12, 176>}, {pipeline_mode = #tpu.pipeline_mode<synchronous>, transform_indices = @transform_9, window_bounds = array<i64: 16, 144>}, {pipeline_mode = #tpu.pipeline_mode<synchronous>, transform_indices = @transform_10, window_bounds = array<i64: 2, 1>}, {pipeline_mode = #tpu.pipeline_mode<synchronous>, transform_indices = @transform_11, window_bounds = array<i64: 2, 1>}, {pipeline_mode = #tpu.pipeline_mode<synchronous>, transform_indices = @transform_12, window_bounds = array<i64: 2, 7>}, {pipeline_mode = #tpu.pipeline_mode<synchronous>, transform_indices = @transform_13, window_bounds = array<i64: 2, 1>}, {pipeline_mode = #tpu.pipeline_mode<synchronous>, transform_indices = @transform_14, window_bounds = array<i64: 2, 7>}, {pipeline_mode = #tpu.pipeline_mode<synchronous>, transform_indices = @transform_15, window_bounds = array<i64: 2, 1>}, {transform_indices = @transform_16, window_bounds = array<i64: 16, 512>}]} {
    %c0 = arith.constant 0 : index
    %c0_0 = arith.constant 0 : index
    %0 = vector.load %arg2[%c0, %c0_0] : memref<17x512xf32, #tpu.memory_space<vmem>>, vector<17x512xf32>
    %c0_1 = arith.constant 0 : index
    %c0_2 = arith.constant 0 : index
    %1 = vector.load %arg3[%c0_1, %c0_2] : memref<2x512xf32, #tpu.memory_space<vmem>>, vector<2x512xf32>
    %c0_3 = arith.constant 0 : index
    %c0_4 = arith.constant 0 : index
    %2 = vector.load %arg1[%c0_3, %c0_4] : memref<3x512xf32, #tpu.memory_space<vmem>>, vector<3x512xf32>
    %3 = vector.extract_strided_slice %2 {offsets = [0, 0], sizes = [1, 512], strides = [1, 1]} : vector<3x512xf32> to vector<1x512xf32>
    %cst = arith.constant 0.256789058 : f32
    %4 = vector.broadcast %cst : f32 to vector<1x512xf32>
    %5 = arith.mulf %4, %3 : vector<1x512xf32>
    %6 = vector.extract_strided_slice %2 {offsets = [1, 0], sizes = [1, 512], strides = [1, 1]} : vector<3x512xf32> to vector<1x512xf32>
    %cst_5 = arith.constant 0.504128933 : f32
    %7 = vector.broadcast %cst_5 : f32 to vector<1x512xf32>
    %8 = arith.mulf %7, %6 : vector<1x512xf32>
    %9 = arith.addf %5, %8 : vector<1x512xf32>
    %10 = vector.extract_strided_slice %2 {offsets = [2, 0], sizes = [1, 512], strides = [1, 1]} : vector<3x512xf32> to vector<1x512xf32>
    %cst_6 = arith.constant 0.0979062467 : f32
    %11 = vector.broadcast %cst_6 : f32 to vector<1x512xf32>
    %12 = arith.mulf %11, %10 : vector<1x512xf32>
    %13 = arith.addf %9, %12 : vector<1x512xf32>
    %14 = tpu.concatenate %2, %13 in 0 : vector<3x512xf32>, vector<1x512xf32> -> vector<4x512xf32>
    %c16_i32 = arith.constant 16 : i32
    %15 = tpu.dynamic_rotate %14 by %c16_i32 dim 1 : vector<4x512xf32>, i32 -> vector<4x512xf32>
    %16 = vector.extract_strided_slice %0 {offsets = [1, 0], sizes = [1, 512], strides = [1, 1]} : vector<17x512xf32> to vector<1x512xf32>
    %17 = vector.broadcast %16 : vector<1x512xf32> to vector<4x512xf32>
    %18 = arith.mulf %15, %17 : vector<4x512xf32>
    %c496_i32 = arith.constant 496 : i32
    %19 = tpu.dynamic_rotate %14 by %c496_i32 dim 1 : vector<4x512xf32>, i32 -> vector<4x512xf32>
    %20 = vector.extract_strided_slice %0 {offsets = [7, 0], sizes = [1, 512], strides = [1, 1]} : vector<17x512xf32> to vector<1x512xf32>
    %21 = vector.broadcast %20 : vector<1x512xf32> to vector<4x512xf32>
    %22 = arith.mulf %19, %21 : vector<4x512xf32>
    %c1_i32 = arith.constant 1 : i32
    %23 = tpu.dynamic_rotate %14 by %c1_i32 dim 1 : vector<4x512xf32>, i32 -> vector<4x512xf32>
    %24 = vector.extract_strided_slice %0 {offsets = [3, 0], sizes = [1, 512], strides = [1, 1]} : vector<17x512xf32> to vector<1x512xf32>
    %25 = vector.broadcast %24 : vector<1x512xf32> to vector<4x512xf32>
    %26 = arith.mulf %23, %25 : vector<4x512xf32>
    %c511_i32 = arith.constant 511 : i32
    %27 = tpu.dynamic_rotate %14 by %c511_i32 dim 1 : vector<4x512xf32>, i32 -> vector<4x512xf32>
    %28 = vector.extract_strided_slice %0 {offsets = [5, 0], sizes = [1, 512], strides = [1, 1]} : vector<17x512xf32> to vector<1x512xf32>
    %29 = vector.broadcast %28 : vector<1x512xf32> to vector<4x512xf32>
    %30 = arith.mulf %27, %29 : vector<4x512xf32>
    %31 = arith.subf %22, %18 : vector<4x512xf32>
    %32 = arith.subf %30, %26 : vector<4x512xf32>
    %33 = arith.mulf %31, %31 : vector<4x512xf32>
    %34 = arith.mulf %32, %32 : vector<4x512xf32>
    %35 = arith.addf %33, %34 : vector<4x512xf32>
    %cst_7 = arith.constant 9.99999997E-7 : f32
    %36 = vector.broadcast %cst_7 : f32 to vector<4x512xf32>
    %37 = arith.addf %35, %36 : vector<4x512xf32>
    %38 = math.sqrt %37 : vector<4x512xf32>
    %39 = vector.extract_strided_slice %38 {offsets = [3, 0], sizes = [1, 512], strides = [1, 1]} : vector<4x512xf32> to vector<1x512xf32>
    %40 = vector.extract_strided_slice %38 {offsets = [0, 0], sizes = [3, 512], strides = [1, 1]} : vector<4x512xf32> to vector<3x512xf32>
    %cst_8 = arith.constant 0.000000e+00 : f32
    %41 = vector.broadcast %cst_8 : f32 to vector<1x512xf32>
    %cst_9 = arith.constant 0.000000e+00 : f32
    %42 = vector.broadcast %cst_9 : f32 to vector<1x512xf32>
    %43 = vector.extract_strided_slice %1 {offsets = [0, 0], sizes = [1, 512], strides = [1, 1]} : vector<2x512xf32> to vector<1x512xf32>
    %44 = vector.broadcast %43 : vector<1x512xf32> to vector<3x512xf32>
    %45 = arith.mulf %40, %44 : vector<3x512xf32>
    %cst_10 = arith.constant dense<0.000000e+00> : vector<3xf32>
    %46 = vector.multi_reduction <add>, %45, %cst_10 [1] : vector<3x512xf32> to vector<3xf32>
    %47 = vector.shape_cast %46 : vector<3xf32> to vector<3x1xf32>
    %cst_11 = arith.constant 3.906250e-03 : f32
    %48 = vector.broadcast %cst_11 : f32 to vector<3x1xf32>
    %49 = arith.mulf %47, %48 : vector<3x1xf32>
    %50 = vector.extract_strided_slice %49 {offsets = [0, 0], sizes = [1, 1], strides = [1, 1]} : vector<3x1xf32> to vector<1x1xf32>
    %51 = vector.extract_strided_slice %49 {offsets = [1, 0], sizes = [1, 1], strides = [1, 1]} : vector<3x1xf32> to vector<1x1xf32>
    %52 = arith.cmpf ole, %50, %51 : vector<1x1xf32>
    %53 = vector.extract_strided_slice %49 {offsets = [0, 0], sizes = [1, 1], strides = [1, 1]} : vector<3x1xf32> to vector<1x1xf32>
    %54 = vector.extract_strided_slice %49 {offsets = [2, 0], sizes = [1, 1], strides = [1, 1]} : vector<3x1xf32> to vector<1x1xf32>
    %55 = arith.cmpf ole, %53, %54 : vector<1x1xf32>
    %56 = arith.andi %52, %55 : vector<1x1xi1>
    %cst_12 = arith.constant dense<true> : vector<1x1xi1>
    %57 = arith.xori %56, %cst_12 : vector<1x1xi1>
    %58 = vector.extract_strided_slice %49 {offsets = [1, 0], sizes = [1, 1], strides = [1, 1]} : vector<3x1xf32> to vector<1x1xf32>
    %59 = vector.extract_strided_slice %49 {offsets = [2, 0], sizes = [1, 1], strides = [1, 1]} : vector<3x1xf32> to vector<1x1xf32>
    %60 = arith.cmpf ole, %58, %59 : vector<1x1xf32>
    %61 = arith.andi %57, %60 : vector<1x1xi1>
    %62 = arith.extui %56 : vector<1x1xi1> to vector<1x1xi32>
    %63 = arith.sitofp %62 : vector<1x1xi32> to vector<1x1xf32>
    %64 = arith.extui %61 : vector<1x1xi1> to vector<1x1xi32>
    %65 = arith.sitofp %64 : vector<1x1xi32> to vector<1x1xf32>
    %66 = vector.broadcast %63 : vector<1x1xf32> to vector<1x512xf32>
    %67 = arith.mulf %66, %43 : vector<1x512xf32>
    %68 = arith.addf %41, %67 : vector<1x512xf32>
    %69 = vector.broadcast %65 : vector<1x1xf32> to vector<1x512xf32>
    %70 = arith.mulf %69, %43 : vector<1x512xf32>
    %71 = arith.addf %42, %70 : vector<1x512xf32>
    %72 = vector.extract_strided_slice %1 {offsets = [1, 0], sizes = [1, 512], strides = [1, 1]} : vector<2x512xf32> to vector<1x512xf32>
    %73 = vector.broadcast %72 : vector<1x512xf32> to vector<3x512xf32>
    %74 = arith.mulf %40, %73 : vector<3x512xf32>
    %cst_13 = arith.constant dense<0.000000e+00> : vector<3xf32>
    %75 = vector.multi_reduction <add>, %74, %cst_13 [1] : vector<3x512xf32> to vector<3xf32>
    %76 = vector.shape_cast %75 : vector<3xf32> to vector<3x1xf32>
    %cst_14 = arith.constant 3.906250e-03 : f32
    %77 = vector.broadcast %cst_14 : f32 to vector<3x1xf32>
    %78 = arith.mulf %76, %77 : vector<3x1xf32>
    %79 = vector.extract_strided_slice %78 {offsets = [0, 0], sizes = [1, 1], strides = [1, 1]} : vector<3x1xf32> to vector<1x1xf32>
    %80 = vector.extract_strided_slice %78 {offsets = [1, 0], sizes = [1, 1], strides = [1, 1]} : vector<3x1xf32> to vector<1x1xf32>
    %81 = arith.cmpf ole, %79, %80 : vector<1x1xf32>
    %82 = vector.extract_strided_slice %78 {offsets = [0, 0], sizes = [1, 1], strides = [1, 1]} : vector<3x1xf32> to vector<1x1xf32>
    %83 = vector.extract_strided_slice %78 {offsets = [2, 0], sizes = [1, 1], strides = [1, 1]} : vector<3x1xf32> to vector<1x1xf32>
    %84 = arith.cmpf ole, %82, %83 : vector<1x1xf32>
    %85 = arith.andi %81, %84 : vector<1x1xi1>
    %cst_15 = arith.constant dense<true> : vector<1x1xi1>
    %86 = arith.xori %85, %cst_15 : vector<1x1xi1>
    %87 = vector.extract_strided_slice %78 {offsets = [1, 0], sizes = [1, 1], strides = [1, 1]} : vector<3x1xf32> to vector<1x1xf32>
    %88 = vector.extract_strided_slice %78 {offsets = [2, 0], sizes = [1, 1], strides = [1, 1]} : vector<3x1xf32> to vector<1x1xf32>
    %89 = arith.cmpf ole, %87, %88 : vector<1x1xf32>
    %90 = arith.andi %86, %89 : vector<1x1xi1>
    %91 = arith.extui %85 : vector<1x1xi1> to vector<1x1xi32>
    %92 = arith.sitofp %91 : vector<1x1xi32> to vector<1x1xf32>
    %93 = arith.extui %90 : vector<1x1xi1> to vector<1x1xi32>
    %94 = arith.sitofp %93 : vector<1x1xi32> to vector<1x1xf32>
    %95 = vector.broadcast %92 : vector<1x1xf32> to vector<1x512xf32>
    %96 = arith.mulf %95, %72 : vector<1x512xf32>
    %97 = arith.addf %68, %96 : vector<1x512xf32>
    %98 = vector.broadcast %94 : vector<1x1xf32> to vector<1x512xf32>
    %99 = arith.mulf %98, %72 : vector<1x512xf32>
    %100 = arith.addf %71, %99 : vector<1x512xf32>
    %cst_16 = arith.constant 1.000000e+00 : f32
    %101 = vector.broadcast %cst_16 : f32 to vector<1x512xf32>
    %102 = arith.subf %101, %97 : vector<1x512xf32>
    %103 = arith.subf %102, %100 : vector<1x512xf32>
    %104 = vector.extract_strided_slice %2 {offsets = [0, 0], sizes = [1, 512], strides = [1, 1]} : vector<3x512xf32> to vector<1x512xf32>
    %105 = arith.mulf %97, %104 : vector<1x512xf32>
    %106 = vector.extract_strided_slice %2 {offsets = [1, 0], sizes = [1, 512], strides = [1, 1]} : vector<3x512xf32> to vector<1x512xf32>
    %107 = arith.mulf %100, %106 : vector<1x512xf32>
    %108 = arith.addf %105, %107 : vector<1x512xf32>
    %109 = vector.extract_strided_slice %2 {offsets = [2, 0], sizes = [1, 512], strides = [1, 1]} : vector<3x512xf32> to vector<1x512xf32>
    %110 = arith.mulf %103, %109 : vector<1x512xf32>
    %111 = arith.addf %108, %110 : vector<1x512xf32>
    %112 = vector.extract_strided_slice %2 {offsets = [1, 0], sizes = [1, 512], strides = [1, 1]} : vector<3x512xf32> to vector<1x512xf32>
    %113 = arith.mulf %97, %112 : vector<1x512xf32>
    %cst_17 = arith.constant 1.000000e+00 : f32
    %114 = vector.broadcast %cst_17 : f32 to vector<1x512xf32>
    %115 = arith.subf %114, %97 : vector<1x512xf32>
    %116 = vector.extract_strided_slice %2 {offsets = [0, 0], sizes = [1, 512], strides = [1, 1]} : vector<3x512xf32> to vector<1x512xf32>
    %117 = arith.mulf %115, %116 : vector<1x512xf32>
    %118 = arith.addf %113, %117 : vector<1x512xf32>
    %119 = vector.extract_strided_slice %2 {offsets = [1, 0], sizes = [1, 512], strides = [1, 1]} : vector<3x512xf32> to vector<1x512xf32>
    %120 = arith.mulf %103, %119 : vector<1x512xf32>
    %cst_18 = arith.constant 1.000000e+00 : f32
    %121 = vector.broadcast %cst_18 : f32 to vector<1x512xf32>
    %122 = arith.subf %121, %103 : vector<1x512xf32>
    %123 = vector.extract_strided_slice %2 {offsets = [2, 0], sizes = [1, 512], strides = [1, 1]} : vector<3x512xf32> to vector<1x512xf32>
    %124 = arith.mulf %122, %123 : vector<1x512xf32>
    %125 = arith.addf %120, %124 : vector<1x512xf32>
    %c0_19 = arith.constant 0 : index
    %c0_20 = arith.constant 0 : index
    %126 = vector.load %arg4[%c0_19, %c0_20] : memref<16x2xf32, #tpu.memory_space<vmem>>, vector<16x2xf32>
    %c0_21 = arith.constant 0 : index
    %c0_22 = arith.constant 0 : index
    %127 = vector.load %arg5[%c0_21, %c0_22] : memref<16x2xf32, #tpu.memory_space<vmem>>, vector<16x2xf32>
    %128 = vector.extract_strided_slice %126 {offsets = [0, 0], sizes = [16, 1], strides = [1, 1]} : vector<16x2xf32> to vector<16x1xf32>
    %129 = vector.broadcast %128 : vector<16x1xf32> to vector<16x512xf32>
    %130 = vector.broadcast %39 : vector<1x512xf32> to vector<16x512xf32>
    %131 = arith.mulf %129, %130 : vector<16x512xf32>
    %132 = vector.extract_strided_slice %126 {offsets = [0, 1], sizes = [16, 1], strides = [1, 1]} : vector<16x2xf32> to vector<16x1xf32>
    %133 = vector.broadcast %132 : vector<16x1xf32> to vector<16x512xf32>
    %134 = vector.broadcast %111 : vector<1x512xf32> to vector<16x512xf32>
    %135 = arith.mulf %133, %134 : vector<16x512xf32>
    %136 = arith.addf %131, %135 : vector<16x512xf32>
    %137 = vector.extract_strided_slice %127 {offsets = [0, 0], sizes = [16, 1], strides = [1, 1]} : vector<16x2xf32> to vector<16x1xf32>
    %138 = vector.broadcast %137 : vector<16x1xf32> to vector<16x512xf32>
    %139 = vector.broadcast %118 : vector<1x512xf32> to vector<16x512xf32>
    %140 = arith.mulf %138, %139 : vector<16x512xf32>
    %141 = vector.extract_strided_slice %127 {offsets = [0, 1], sizes = [16, 1], strides = [1, 1]} : vector<16x2xf32> to vector<16x1xf32>
    %142 = vector.broadcast %141 : vector<16x1xf32> to vector<16x512xf32>
    %143 = vector.broadcast %125 : vector<1x512xf32> to vector<16x512xf32>
    %144 = arith.mulf %142, %143 : vector<16x512xf32>
    %145 = arith.addf %140, %144 : vector<16x512xf32>
    %c17_i32 = arith.constant 17 : i32
    %146 = tpu.dynamic_rotate %2 by %c17_i32 dim 1 : vector<3x512xf32>, i32 -> vector<3x512xf32>
    %147 = vector.extract_strided_slice %0 {offsets = [0, 0], sizes = [1, 512], strides = [1, 1]} : vector<17x512xf32> to vector<1x512xf32>
    %148 = vector.broadcast %147 : vector<1x512xf32> to vector<3x512xf32>
    %149 = arith.mulf %146, %148 : vector<3x512xf32>
    %150 = arith.truncf %149 : vector<3x512xf32> to vector<3x512xbf16>
    %151 = vector.extract_strided_slice %18 {offsets = [0, 0], sizes = [3, 512], strides = [1, 1]} : vector<4x512xf32> to vector<3x512xf32>
    %152 = arith.truncf %151 : vector<3x512xf32> to vector<3x512xbf16>
    %c15_i32 = arith.constant 15 : i32
    %153 = tpu.dynamic_rotate %2 by %c15_i32 dim 1 : vector<3x512xf32>, i32 -> vector<3x512xf32>
    %154 = vector.extract_strided_slice %0 {offsets = [2, 0], sizes = [1, 512], strides = [1, 1]} : vector<17x512xf32> to vector<1x512xf32>
    %155 = vector.broadcast %154 : vector<1x512xf32> to vector<3x512xf32>
    %156 = arith.mulf %153, %155 : vector<3x512xf32>
    %157 = arith.truncf %156 : vector<3x512xf32> to vector<3x512xbf16>
    %158 = vector.extract_strided_slice %26 {offsets = [0, 0], sizes = [3, 512], strides = [1, 1]} : vector<4x512xf32> to vector<3x512xf32>
    %159 = arith.truncf %158 : vector<3x512xf32> to vector<3x512xbf16>
    %160 = arith.truncf %2 : vector<3x512xf32> to vector<3x512xbf16>
    %161 = vector.extract_strided_slice %30 {offsets = [0, 0], sizes = [3, 512], strides = [1, 1]} : vector<4x512xf32> to vector<3x512xf32>
    %162 = arith.truncf %161 : vector<3x512xf32> to vector<3x512xbf16>
    %c497_i32 = arith.constant 497 : i32
    %163 = tpu.dynamic_rotate %2 by %c497_i32 dim 1 : vector<3x512xf32>, i32 -> vector<3x512xf32>
    %164 = vector.extract_strided_slice %0 {offsets = [6, 0], sizes = [1, 512], strides = [1, 1]} : vector<17x512xf32> to vector<1x512xf32>
    %165 = vector.broadcast %164 : vector<1x512xf32> to vector<3x512xf32>
    %166 = arith.mulf %163, %165 : vector<3x512xf32>
    %167 = arith.truncf %166 : vector<3x512xf32> to vector<3x512xbf16>
    %168 = vector.extract_strided_slice %22 {offsets = [0, 0], sizes = [3, 512], strides = [1, 1]} : vector<4x512xf32> to vector<3x512xf32>
    %169 = arith.truncf %168 : vector<3x512xf32> to vector<3x512xbf16>
    %c495_i32 = arith.constant 495 : i32
    %170 = tpu.dynamic_rotate %2 by %c495_i32 dim 1 : vector<3x512xf32>, i32 -> vector<3x512xf32>
    %171 = vector.extract_strided_slice %0 {offsets = [8, 0], sizes = [1, 512], strides = [1, 1]} : vector<17x512xf32> to vector<1x512xf32>
    %172 = vector.broadcast %171 : vector<1x512xf32> to vector<3x512xf32>
    %173 = arith.mulf %170, %172 : vector<3x512xf32>
    %174 = arith.truncf %173 : vector<3x512xf32> to vector<3x512xbf16>
    %c0_23 = arith.constant 0 : index
    %c0_24 = arith.constant 0 : index
    %175 = vector.load %arg6[%c0_23, %c0_24] : memref<16x27xbf16, #tpu.memory_space<vmem>>, vector<16x27xbf16>
    %176 = tpu.concatenate %150, %152, %157, %159, %160, %162, %167, %169, %174 in 0 : vector<3x512xbf16>, vector<3x512xbf16>, vector<3x512xbf16>, vector<3x512xbf16>, vector<3x512xbf16>, vector<3x512xbf16>, vector<3x512xbf16>, vector<3x512xbf16>, vector<3x512xbf16> -> vector<27x512xbf16>
    %cst_25 = arith.constant dense<0.000000e+00> : vector<16x512xf32>
    %177 = tpu.matmul %175, %176, %cst_25 {dimension_numbers = #tpu.dot_dimension_numbers<[1], [0], [0], [1], [0, 0, 1, 1], [], []>} : vector<16x27xbf16>, vector<27x512xbf16>, vector<16x512xf32> -> vector<16x512xf32>
    %178 = tpu.concatenate %136, %145, %177 in 0 : vector<16x512xf32>, vector<16x512xf32>, vector<16x512xf32> -> vector<48x512xf32>
    %c0_26 = arith.constant 0 : index
    %c0_27 = arith.constant 0 : index
    %179 = vector.load %arg7[%c0_26, %c0_27] : memref<48x1xf32, #tpu.memory_space<vmem>>, vector<48x1xf32>
    %c0_28 = arith.constant 0 : index
    %c0_29 = arith.constant 0 : index
    %180 = vector.load %arg8[%c0_28, %c0_29] : memref<48x1xf32, #tpu.memory_space<vmem>>, vector<48x1xf32>
    %cst_30 = arith.constant 0.000000e+00 : f32
    %181 = vector.broadcast %cst_30 : f32 to vector<48x512xf32>
    %182 = vector.extract_strided_slice %1 {offsets = [0, 0], sizes = [1, 512], strides = [1, 1]} : vector<2x512xf32> to vector<1x512xf32>
    %183 = vector.broadcast %182 : vector<1x512xf32> to vector<48x512xf32>
    %184 = arith.mulf %178, %183 : vector<48x512xf32>
    %cst_31 = arith.constant dense<0.000000e+00> : vector<48xf32>
    %185 = vector.multi_reduction <add>, %184, %cst_31 [1] : vector<48x512xf32> to vector<48xf32>
    %186 = vector.shape_cast %185 : vector<48xf32> to vector<48x1xf32>
    %cst_32 = arith.constant 3.906250e-03 : f32
    %187 = vector.broadcast %cst_32 : f32 to vector<48x1xf32>
    %188 = arith.mulf %186, %187 : vector<48x1xf32>
    %189 = vector.broadcast %188 : vector<48x1xf32> to vector<48x512xf32>
    %190 = vector.broadcast %182 : vector<1x512xf32> to vector<48x512xf32>
    %191 = arith.mulf %189, %190 : vector<48x512xf32>
    %192 = arith.addf %181, %191 : vector<48x512xf32>
    %193 = vector.extract_strided_slice %1 {offsets = [1, 0], sizes = [1, 512], strides = [1, 1]} : vector<2x512xf32> to vector<1x512xf32>
    %194 = vector.broadcast %193 : vector<1x512xf32> to vector<48x512xf32>
    %195 = arith.mulf %178, %194 : vector<48x512xf32>
    %cst_33 = arith.constant dense<0.000000e+00> : vector<48xf32>
    %196 = vector.multi_reduction <add>, %195, %cst_33 [1] : vector<48x512xf32> to vector<48xf32>
    %197 = vector.shape_cast %196 : vector<48xf32> to vector<48x1xf32>
    %cst_34 = arith.constant 3.906250e-03 : f32
    %198 = vector.broadcast %cst_34 : f32 to vector<48x1xf32>
    %199 = arith.mulf %197, %198 : vector<48x1xf32>
    %200 = vector.broadcast %199 : vector<48x1xf32> to vector<48x512xf32>
    %201 = vector.broadcast %193 : vector<1x512xf32> to vector<48x512xf32>
    %202 = arith.mulf %200, %201 : vector<48x512xf32>
    %203 = arith.addf %192, %202 : vector<48x512xf32>
    %204 = arith.subf %178, %203 : vector<48x512xf32>
    %cst_35 = arith.constant 0.000000e+00 : f32
    %205 = vector.broadcast %cst_35 : f32 to vector<48x512xf32>
    %206 = vector.extract_strided_slice %1 {offsets = [0, 0], sizes = [1, 512], strides = [1, 1]} : vector<2x512xf32> to vector<1x512xf32>
    %207 = arith.mulf %204, %204 : vector<48x512xf32>
    %208 = vector.broadcast %206 : vector<1x512xf32> to vector<48x512xf32>
    %209 = arith.mulf %207, %208 : vector<48x512xf32>
    %cst_36 = arith.constant dense<0.000000e+00> : vector<48xf32>
    %210 = vector.multi_reduction <add>, %209, %cst_36 [1] : vector<48x512xf32> to vector<48xf32>
    %211 = vector.shape_cast %210 : vector<48xf32> to vector<48x1xf32>
    %cst_37 = arith.constant 3.906250e-03 : f32
    %212 = vector.broadcast %cst_37 : f32 to vector<48x1xf32>
    %213 = arith.mulf %211, %212 : vector<48x1xf32>
    %cst_38 = arith.constant 9.99999974E-6 : f32
    %214 = vector.broadcast %cst_38 : f32 to vector<48x1xf32>
    %215 = arith.addf %213, %214 : vector<48x1xf32>
    %216 = math.rsqrt %215 : vector<48x1xf32>
    %217 = vector.broadcast %216 : vector<48x1xf32> to vector<48x512xf32>
    %218 = vector.broadcast %206 : vector<1x512xf32> to vector<48x512xf32>
    %219 = arith.mulf %217, %218 : vector<48x512xf32>
    %220 = arith.addf %205, %219 : vector<48x512xf32>
    %221 = vector.extract_strided_slice %1 {offsets = [1, 0], sizes = [1, 512], strides = [1, 1]} : vector<2x512xf32> to vector<1x512xf32>
    %222 = arith.mulf %204, %204 : vector<48x512xf32>
    %223 = vector.broadcast %221 : vector<1x512xf32> to vector<48x512xf32>
    %224 = arith.mulf %222, %223 : vector<48x512xf32>
    %cst_39 = arith.constant dense<0.000000e+00> : vector<48xf32>
    %225 = vector.multi_reduction <add>, %224, %cst_39 [1] : vector<48x512xf32> to vector<48xf32>
    %226 = vector.shape_cast %225 : vector<48xf32> to vector<48x1xf32>
    %cst_40 = arith.constant 3.906250e-03 : f32
    %227 = vector.broadcast %cst_40 : f32 to vector<48x1xf32>
    %228 = arith.mulf %226, %227 : vector<48x1xf32>
    %cst_41 = arith.constant 9.99999974E-6 : f32
    %229 = vector.broadcast %cst_41 : f32 to vector<48x1xf32>
    %230 = arith.addf %228, %229 : vector<48x1xf32>
    %231 = math.rsqrt %230 : vector<48x1xf32>
    %232 = vector.broadcast %231 : vector<48x1xf32> to vector<48x512xf32>
    %233 = vector.broadcast %221 : vector<1x512xf32> to vector<48x512xf32>
    %234 = arith.mulf %232, %233 : vector<48x512xf32>
    %235 = arith.addf %220, %234 : vector<48x512xf32>
    %236 = arith.mulf %204, %235 : vector<48x512xf32>
    %237 = vector.broadcast %179 : vector<48x1xf32> to vector<48x512xf32>
    %238 = arith.mulf %236, %237 : vector<48x512xf32>
    %239 = vector.broadcast %180 : vector<48x1xf32> to vector<48x512xf32>
    %240 = arith.addf %238, %239 : vector<48x512xf32>
    %241 = vector.extract_strided_slice %240 {offsets = [0, 0], sizes = [16, 512], strides = [1, 1]} : vector<48x512xf32> to vector<16x512xf32>
    %242 = vector.extract_strided_slice %240 {offsets = [16, 0], sizes = [16, 512], strides = [1, 1]} : vector<48x512xf32> to vector<16x512xf32>
    %243 = vector.extract_strided_slice %240 {offsets = [32, 0], sizes = [16, 512], strides = [1, 1]} : vector<48x512xf32> to vector<16x512xf32>
    %244 = arith.truncf %241 : vector<16x512xf32> to vector<16x512xbf16>
    %245 = arith.truncf %242 : vector<16x512xf32> to vector<16x512xbf16>
    %c17_i32_42 = arith.constant 17 : i32
    %246 = tpu.dynamic_rotate %243 by %c17_i32_42 dim 1 : vector<16x512xf32>, i32 -> vector<16x512xf32>
    %247 = vector.extract_strided_slice %0 {offsets = [0, 0], sizes = [1, 512], strides = [1, 1]} : vector<17x512xf32> to vector<1x512xf32>
    %248 = vector.broadcast %247 : vector<1x512xf32> to vector<16x512xf32>
    %249 = arith.mulf %246, %248 : vector<16x512xf32>
    %250 = arith.truncf %249 : vector<16x512xf32> to vector<16x512xbf16>
    %c16_i32_43 = arith.constant 16 : i32
    %251 = tpu.dynamic_rotate %243 by %c16_i32_43 dim 1 : vector<16x512xf32>, i32 -> vector<16x512xf32>
    %252 = vector.extract_strided_slice %0 {offsets = [1, 0], sizes = [1, 512], strides = [1, 1]} : vector<17x512xf32> to vector<1x512xf32>
    %253 = vector.broadcast %252 : vector<1x512xf32> to vector<16x512xf32>
    %254 = arith.mulf %251, %253 : vector<16x512xf32>
    %255 = arith.truncf %254 : vector<16x512xf32> to vector<16x512xbf16>
    %c15_i32_44 = arith.constant 15 : i32
    %256 = tpu.dynamic_rotate %243 by %c15_i32_44 dim 1 : vector<16x512xf32>, i32 -> vector<16x512xf32>
    %257 = vector.extract_strided_slice %0 {offsets = [2, 0], sizes = [1, 512], strides = [1, 1]} : vector<17x512xf32> to vector<1x512xf32>
    %258 = vector.broadcast %257 : vector<1x512xf32> to vector<16x512xf32>
    %259 = arith.mulf %256, %258 : vector<16x512xf32>
    %260 = arith.truncf %259 : vector<16x512xf32> to vector<16x512xbf16>
    %c1_i32_45 = arith.constant 1 : i32
    %261 = tpu.dynamic_rotate %243 by %c1_i32_45 dim 1 : vector<16x512xf32>, i32 -> vector<16x512xf32>
    %262 = vector.extract_strided_slice %0 {offsets = [3, 0], sizes = [1, 512], strides = [1, 1]} : vector<17x512xf32> to vector<1x512xf32>
    %263 = vector.broadcast %262 : vector<1x512xf32> to vector<16x512xf32>
    %264 = arith.mulf %261, %263 : vector<16x512xf32>
    %265 = arith.truncf %264 : vector<16x512xf32> to vector<16x512xbf16>
    %266 = arith.truncf %243 : vector<16x512xf32> to vector<16x512xbf16>
    %c511_i32_46 = arith.constant 511 : i32
    %267 = tpu.dynamic_rotate %243 by %c511_i32_46 dim 1 : vector<16x512xf32>, i32 -> vector<16x512xf32>
    %268 = vector.extract_strided_slice %0 {offsets = [5, 0], sizes = [1, 512], strides = [1, 1]} : vector<17x512xf32> to vector<1x512xf32>
    %269 = vector.broadcast %268 : vector<1x512xf32> to vector<16x512xf32>
    %270 = arith.mulf %267, %269 : vector<16x512xf32>
    %271 = arith.truncf %270 : vector<16x512xf32> to vector<16x512xbf16>
    %c497_i32_47 = arith.constant 497 : i32
    %272 = tpu.dynamic_rotate %243 by %c497_i32_47 dim 1 : vector<16x512xf32>, i32 -> vector<16x512xf32>
    %273 = vector.extract_strided_slice %0 {offsets = [6, 0], sizes = [1, 512], strides = [1, 1]} : vector<17x512xf32> to vector<1x512xf32>
    %274 = vector.broadcast %273 : vector<1x512xf32> to vector<16x512xf32>
    %275 = arith.mulf %272, %274 : vector<16x512xf32>
    %276 = arith.truncf %275 : vector<16x512xf32> to vector<16x512xbf16>
    %c496_i32_48 = arith.constant 496 : i32
    %277 = tpu.dynamic_rotate %243 by %c496_i32_48 dim 1 : vector<16x512xf32>, i32 -> vector<16x512xf32>
    %278 = vector.extract_strided_slice %0 {offsets = [7, 0], sizes = [1, 512], strides = [1, 1]} : vector<17x512xf32> to vector<1x512xf32>
    %279 = vector.broadcast %278 : vector<1x512xf32> to vector<16x512xf32>
    %280 = arith.mulf %277, %279 : vector<16x512xf32>
    %281 = arith.truncf %280 : vector<16x512xf32> to vector<16x512xbf16>
    %c495_i32_49 = arith.constant 495 : i32
    %282 = tpu.dynamic_rotate %243 by %c495_i32_49 dim 1 : vector<16x512xf32>, i32 -> vector<16x512xf32>
    %283 = vector.extract_strided_slice %0 {offsets = [8, 0], sizes = [1, 512], strides = [1, 1]} : vector<17x512xf32> to vector<1x512xf32>
    %284 = vector.broadcast %283 : vector<1x512xf32> to vector<16x512xf32>
    %285 = arith.mulf %282, %284 : vector<16x512xf32>
    %286 = arith.truncf %285 : vector<16x512xf32> to vector<16x512xbf16>
    %287 = tpu.concatenate %244, %245, %250, %255, %260, %265, %266, %271, %276, %281, %286 in 0 : vector<16x512xbf16>, vector<16x512xbf16>, vector<16x512xbf16>, vector<16x512xbf16>, vector<16x512xbf16>, vector<16x512xbf16>, vector<16x512xbf16>, vector<16x512xbf16>, vector<16x512xbf16>, vector<16x512xbf16>, vector<16x512xbf16> -> vector<176x512xbf16>
    %c0_50 = arith.constant 0 : index
    %c0_51 = arith.constant 0 : index
    %288 = vector.load %arg9[%c0_50, %c0_51] : memref<12x176xbf16, #tpu.memory_space<vmem>>, vector<12x176xbf16>
    %cst_52 = arith.constant dense<0.000000e+00> : vector<12x512xf32>
    %289 = tpu.matmul %288, %287, %cst_52 {dimension_numbers = #tpu.dot_dimension_numbers<[1], [0], [0], [1], [0, 0, 1, 1], [], []>} : vector<12x176xbf16>, vector<176x512xbf16>, vector<12x512xf32> -> vector<12x512xf32>
    %290 = vector.extract_strided_slice %289 {offsets = [0, 0], sizes = [4, 512], strides = [1, 1]} : vector<12x512xf32> to vector<4x512xf32>
    %291 = vector.extract_strided_slice %289 {offsets = [4, 0], sizes = [4, 512], strides = [1, 1]} : vector<12x512xf32> to vector<4x512xf32>
    %292 = arith.addf %290, %291 : vector<4x512xf32>
    %293 = vector.extract_strided_slice %289 {offsets = [8, 0], sizes = [4, 512], strides = [1, 1]} : vector<12x512xf32> to vector<4x512xf32>
    %294 = arith.addf %292, %293 : vector<4x512xf32>
    %295 = math.tanh %294 : vector<4x512xf32>
    %296 = tpu.concatenate %289, %295 in 0 : vector<12x512xf32>, vector<4x512xf32> -> vector<16x512xf32>
    %c17_i32_53 = arith.constant 17 : i32
    %297 = tpu.dynamic_rotate %296 by %c17_i32_53 dim 1 : vector<16x512xf32>, i32 -> vector<16x512xf32>
    %298 = vector.extract_strided_slice %0 {offsets = [0, 0], sizes = [1, 512], strides = [1, 1]} : vector<17x512xf32> to vector<1x512xf32>
    %299 = vector.broadcast %298 : vector<1x512xf32> to vector<16x512xf32>
    %300 = arith.mulf %297, %299 : vector<16x512xf32>
    %301 = arith.truncf %300 : vector<16x512xf32> to vector<16x512xbf16>
    %c16_i32_54 = arith.constant 16 : i32
    %302 = tpu.dynamic_rotate %296 by %c16_i32_54 dim 1 : vector<16x512xf32>, i32 -> vector<16x512xf32>
    %303 = vector.extract_strided_slice %0 {offsets = [1, 0], sizes = [1, 512], strides = [1, 1]} : vector<17x512xf32> to vector<1x512xf32>
    %304 = vector.broadcast %303 : vector<1x512xf32> to vector<16x512xf32>
    %305 = arith.mulf %302, %304 : vector<16x512xf32>
    %306 = arith.truncf %305 : vector<16x512xf32> to vector<16x512xbf16>
    %c15_i32_55 = arith.constant 15 : i32
    %307 = tpu.dynamic_rotate %296 by %c15_i32_55 dim 1 : vector<16x512xf32>, i32 -> vector<16x512xf32>
    %308 = vector.extract_strided_slice %0 {offsets = [2, 0], sizes = [1, 512], strides = [1, 1]} : vector<17x512xf32> to vector<1x512xf32>
    %309 = vector.broadcast %308 : vector<1x512xf32> to vector<16x512xf32>
    %310 = arith.mulf %307, %309 : vector<16x512xf32>
    %311 = arith.truncf %310 : vector<16x512xf32> to vector<16x512xbf16>
    %c1_i32_56 = arith.constant 1 : i32
    %312 = tpu.dynamic_rotate %296 by %c1_i32_56 dim 1 : vector<16x512xf32>, i32 -> vector<16x512xf32>
    %313 = vector.extract_strided_slice %0 {offsets = [3, 0], sizes = [1, 512], strides = [1, 1]} : vector<17x512xf32> to vector<1x512xf32>
    %314 = vector.broadcast %313 : vector<1x512xf32> to vector<16x512xf32>
    %315 = arith.mulf %312, %314 : vector<16x512xf32>
    %316 = arith.truncf %315 : vector<16x512xf32> to vector<16x512xbf16>
    %317 = arith.truncf %296 : vector<16x512xf32> to vector<16x512xbf16>
    %c511_i32_57 = arith.constant 511 : i32
    %318 = tpu.dynamic_rotate %296 by %c511_i32_57 dim 1 : vector<16x512xf32>, i32 -> vector<16x512xf32>
    %319 = vector.extract_strided_slice %0 {offsets = [5, 0], sizes = [1, 512], strides = [1, 1]} : vector<17x512xf32> to vector<1x512xf32>
    %320 = vector.broadcast %319 : vector<1x512xf32> to vector<16x512xf32>
    %321 = arith.mulf %318, %320 : vector<16x512xf32>
    %322 = arith.truncf %321 : vector<16x512xf32> to vector<16x512xbf16>
    %c497_i32_58 = arith.constant 497 : i32
    %323 = tpu.dynamic_rotate %296 by %c497_i32_58 dim 1 : vector<16x512xf32>, i32 -> vector<16x512xf32>
    %324 = vector.extract_strided_slice %0 {offsets = [6, 0], sizes = [1, 512], strides = [1, 1]} : vector<17x512xf32> to vector<1x512xf32>
    %325 = vector.broadcast %324 : vector<1x512xf32> to vector<16x512xf32>
    %326 = arith.mulf %323, %325 : vector<16x512xf32>
    %327 = arith.truncf %326 : vector<16x512xf32> to vector<16x512xbf16>
    %c496_i32_59 = arith.constant 496 : i32
    %328 = tpu.dynamic_rotate %296 by %c496_i32_59 dim 1 : vector<16x512xf32>, i32 -> vector<16x512xf32>
    %329 = vector.extract_strided_slice %0 {offsets = [7, 0], sizes = [1, 512], strides = [1, 1]} : vector<17x512xf32> to vector<1x512xf32>
    %330 = vector.broadcast %329 : vector<1x512xf32> to vector<16x512xf32>
    %331 = arith.mulf %328, %330 : vector<16x512xf32>
    %332 = arith.truncf %331 : vector<16x512xf32> to vector<16x512xbf16>
    %c495_i32_60 = arith.constant 495 : i32
    %333 = tpu.dynamic_rotate %296 by %c495_i32_60 dim 1 : vector<16x512xf32>, i32 -> vector<16x512xf32>
    %334 = vector.extract_strided_slice %0 {offsets = [8, 0], sizes = [1, 512], strides = [1, 1]} : vector<17x512xf32> to vector<1x512xf32>
    %335 = vector.broadcast %334 : vector<1x512xf32> to vector<16x512xf32>
    %336 = arith.mulf %333, %335 : vector<16x512xf32>
    %337 = arith.truncf %336 : vector<16x512xf32> to vector<16x512xbf16>
    %c0_61 = arith.constant 0 : index
    %c0_62 = arith.constant 0 : index
    %338 = vector.load %arg10[%c0_61, %c0_62] : memref<16x144xbf16, #tpu.memory_space<vmem>>, vector<16x144xbf16>
    %339 = tpu.concatenate %301, %306, %311, %316, %317, %322, %327, %332, %337 in 0 : vector<16x512xbf16>, vector<16x512xbf16>, vector<16x512xbf16>, vector<16x512xbf16>, vector<16x512xbf16>, vector<16x512xbf16>, vector<16x512xbf16>, vector<16x512xbf16>, vector<16x512xbf16> -> vector<144x512xbf16>
    %cst_63 = arith.constant dense<0.000000e+00> : vector<16x512xf32>
    %340 = tpu.matmul %338, %339, %cst_63 {dimension_numbers = #tpu.dot_dimension_numbers<[1], [0], [0], [1], [0, 0, 1, 1], [], []>} : vector<16x144xbf16>, vector<144x512xbf16>, vector<16x512xf32> -> vector<16x512xf32>
    %341 = vector.extract_strided_slice %340 {offsets = [10, 0], sizes = [2, 512], strides = [1, 1]} : vector<16x512xf32> to vector<2x512xf32>
    %342 = vector.extract_strided_slice %340 {offsets = [12, 0], sizes = [2, 512], strides = [1, 1]} : vector<16x512xf32> to vector<2x512xf32>
    %343 = vector.extract_strided_slice %340 {offsets = [14, 0], sizes = [2, 512], strides = [1, 1]} : vector<16x512xf32> to vector<2x512xf32>
    %344 = vector.extract_strided_slice %340 {offsets = [0, 0], sizes = [10, 512], strides = [1, 1]} : vector<16x512xf32> to vector<10x512xf32>
    %c0_64 = arith.constant 0 : index
    %c0_65 = arith.constant 0 : index
    %345 = vector.load %arg17[%c0_64, %c0_65] : memref<16x512xf32, #tpu.memory_space<vmem>>, vector<10x512xf32>
    tpu.vector_store %arg17[%c0_64, %c0_65], %344 {strides = array<i32>} : memref<16x512xf32, #tpu.memory_space<vmem>>, vector<10x512xf32>,
    %c0_66 = arith.constant 0 : index
    %c0_67 = arith.constant 0 : index
    %346 = vector.load %arg11[%c0_66, %c0_67] : memref<2x1xf32, #tpu.memory_space<vmem>>, vector<2x1xf32>
    %347 = vector.broadcast %346 : vector<2x1xf32> to vector<2x512xf32>
    %348 = arith.mulf %347, %341 : vector<2x512xf32>
    %c0_68 = arith.constant 0 : index
    %c0_69 = arith.constant 0 : index
    %349 = vector.load %arg12[%c0_68, %c0_69] : memref<2x1xf32, #tpu.memory_space<vmem>>, vector<2x1xf32>
    %350 = vector.broadcast %349 : vector<2x1xf32> to vector<2x512xf32>
    %351 = arith.addf %348, %350 : vector<2x512xf32>
    %c10 = arith.constant 10 : index
    %c0_70 = arith.constant 0 : index
    %352 = vector.load %arg17[%c10, %c0_70] : memref<16x512xf32, #tpu.memory_space<vmem>>, vector<2x512xf32>
    tpu.vector_store %arg17[%c10, %c0_70], %351 {strides = array<i32>} : memref<16x512xf32, #tpu.memory_space<vmem>>, vector<2x512xf32>,
    %c0_71 = arith.constant 0 : index
    %c0_72 = arith.constant 0 : index
    %353 = vector.load %arg13[%c0_71, %c0_72] : memref<2x7xf32, #tpu.memory_space<vmem>>, vector<2x7xf32>
    %c0_73 = arith.constant 0 : index
    %c0_74 = arith.constant 0 : index
    %354 = vector.load %arg15[%c0_73, %c0_74] : memref<2x7xf32, #tpu.memory_space<vmem>>, vector<2x7xf32>
    %cst_75 = arith.constant 0.000000e+00 : f32
    %355 = vector.broadcast %cst_75 : f32 to vector<2x512xf32>
    %cst_76 = arith.constant 0.000000e+00 : f32
    %356 = vector.broadcast %cst_76 : f32 to vector<2x512xf32>
    %357 = vector.extract_strided_slice %353 {offsets = [0, 0], sizes = [2, 1], strides = [1, 1]} : vector<2x7xf32> to vector<2x1xf32>
    %c3_i32 = arith.constant 3 : i32
    %358 = tpu.dynamic_rotate %342 by %c3_i32 dim 1 : vector<2x512xf32>, i32 -> vector<2x512xf32>
    %359 = vector.extract_strided_slice %0 {offsets = [9, 0], sizes = [1, 512], strides = [1, 1]} : vector<17x512xf32> to vector<1x512xf32>
    %360 = vector.broadcast %359 : vector<1x512xf32> to vector<2x512xf32>
    %361 = arith.mulf %358, %360 : vector<2x512xf32>
    %362 = vector.broadcast %357 : vector<2x1xf32> to vector<2x512xf32>
    %363 = arith.mulf %362, %361 : vector<2x512xf32>
    %364 = arith.addf %355, %363 : vector<2x512xf32>
    %365 = vector.extract_strided_slice %354 {offsets = [0, 0], sizes = [2, 1], strides = [1, 1]} : vector<2x7xf32> to vector<2x1xf32>
    %c48_i32 = arith.constant 48 : i32
    %366 = tpu.dynamic_rotate %343 by %c48_i32 dim 1 : vector<2x512xf32>, i32 -> vector<2x512xf32>
    %367 = vector.extract_strided_slice %0 {offsets = [13, 0], sizes = [1, 512], strides = [1, 1]} : vector<17x512xf32> to vector<1x512xf32>
    %368 = vector.broadcast %367 : vector<1x512xf32> to vector<2x512xf32>
    %369 = arith.mulf %366, %368 : vector<2x512xf32>
    %370 = vector.broadcast %365 : vector<2x1xf32> to vector<2x512xf32>
    %371 = arith.mulf %370, %369 : vector<2x512xf32>
    %372 = arith.addf %356, %371 : vector<2x512xf32>
    %373 = vector.extract_strided_slice %353 {offsets = [0, 1], sizes = [2, 1], strides = [1, 1]} : vector<2x7xf32> to vector<2x1xf32>
    %c2_i32 = arith.constant 2 : i32
    %374 = tpu.dynamic_rotate %342 by %c2_i32 dim 1 : vector<2x512xf32>, i32 -> vector<2x512xf32>
    %375 = vector.extract_strided_slice %0 {offsets = [10, 0], sizes = [1, 512], strides = [1, 1]} : vector<17x512xf32> to vector<1x512xf32>
    %376 = vector.broadcast %375 : vector<1x512xf32> to vector<2x512xf32>
    %377 = arith.mulf %374, %376 : vector<2x512xf32>
    %378 = vector.broadcast %373 : vector<2x1xf32> to vector<2x512xf32>
    %379 = arith.mulf %378, %377 : vector<2x512xf32>
    %380 = arith.addf %364, %379 : vector<2x512xf32>
    %381 = vector.extract_strided_slice %354 {offsets = [0, 1], sizes = [2, 1], strides = [1, 1]} : vector<2x7xf32> to vector<2x1xf32>
    %c32_i32 = arith.constant 32 : i32
    %382 = tpu.dynamic_rotate %343 by %c32_i32 dim 1 : vector<2x512xf32>, i32 -> vector<2x512xf32>
    %383 = vector.extract_strided_slice %0 {offsets = [14, 0], sizes = [1, 512], strides = [1, 1]} : vector<17x512xf32> to vector<1x512xf32>
    %384 = vector.broadcast %383 : vector<1x512xf32> to vector<2x512xf32>
    %385 = arith.mulf %382, %384 : vector<2x512xf32>
    %386 = vector.broadcast %381 : vector<2x1xf32> to vector<2x512xf32>
    %387 = arith.mulf %386, %385 : vector<2x512xf32>
    %388 = arith.addf %372, %387 : vector<2x512xf32>
    %389 = vector.extract_strided_slice %353 {offsets = [0, 2], sizes = [2, 1], strides = [1, 1]} : vector<2x7xf32> to vector<2x1xf32>
    %c1_i32_77 = arith.constant 1 : i32
    %390 = tpu.dynamic_rotate %342 by %c1_i32_77 dim 1 : vector<2x512xf32>, i32 -> vector<2x512xf32>
    %391 = vector.extract_strided_slice %0 {offsets = [3, 0], sizes = [1, 512], strides = [1, 1]} : vector<17x512xf32> to vector<1x512xf32>
    %392 = vector.broadcast %391 : vector<1x512xf32> to vector<2x512xf32>
    %393 = arith.mulf %390, %392 : vector<2x512xf32>
    %394 = vector.broadcast %389 : vector<2x1xf32> to vector<2x512xf32>
    %395 = arith.mulf %394, %393 : vector<2x512xf32>
    %396 = arith.addf %380, %395 : vector<2x512xf32>
    %397 = vector.extract_strided_slice %354 {offsets = [0, 2], sizes = [2, 1], strides = [1, 1]} : vector<2x7xf32> to vector<2x1xf32>
    %c16_i32_78 = arith.constant 16 : i32
    %398 = tpu.dynamic_rotate %343 by %c16_i32_78 dim 1 : vector<2x512xf32>, i32 -> vector<2x512xf32>
    %399 = vector.extract_strided_slice %0 {offsets = [1, 0], sizes = [1, 512], strides = [1, 1]} : vector<17x512xf32> to vector<1x512xf32>
    %400 = vector.broadcast %399 : vector<1x512xf32> to vector<2x512xf32>
    %401 = arith.mulf %398, %400 : vector<2x512xf32>
    %402 = vector.broadcast %397 : vector<2x1xf32> to vector<2x512xf32>
    %403 = arith.mulf %402, %401 : vector<2x512xf32>
    %404 = arith.addf %388, %403 : vector<2x512xf32>
    %405 = vector.extract_strided_slice %353 {offsets = [0, 3], sizes = [2, 1], strides = [1, 1]} : vector<2x7xf32> to vector<2x1xf32>
    %406 = vector.broadcast %405 : vector<2x1xf32> to vector<2x512xf32>
    %407 = arith.mulf %406, %342 : vector<2x512xf32>
    %408 = arith.addf %396, %407 : vector<2x512xf32>
    %409 = vector.extract_strided_slice %354 {offsets = [0, 3], sizes = [2, 1], strides = [1, 1]} : vector<2x7xf32> to vector<2x1xf32>
    %410 = vector.broadcast %409 : vector<2x1xf32> to vector<2x512xf32>
    %411 = arith.mulf %410, %343 : vector<2x512xf32>
    %412 = arith.addf %404, %411 : vector<2x512xf32>
    %413 = vector.extract_strided_slice %353 {offsets = [0, 4], sizes = [2, 1], strides = [1, 1]} : vector<2x7xf32> to vector<2x1xf32>
    %c511_i32_79 = arith.constant 511 : i32
    %414 = tpu.dynamic_rotate %342 by %c511_i32_79 dim 1 : vector<2x512xf32>, i32 -> vector<2x512xf32>
    %415 = vector.extract_strided_slice %0 {offsets = [5, 0], sizes = [1, 512], strides = [1, 1]} : vector<17x512xf32> to vector<1x512xf32>
    %416 = vector.broadcast %415 : vector<1x512xf32> to vector<2x512xf32>
    %417 = arith.mulf %414, %416 : vector<2x512xf32>
    %418 = vector.broadcast %413 : vector<2x1xf32> to vector<2x512xf32>
    %419 = arith.mulf %418, %417 : vector<2x512xf32>
    %420 = arith.addf %408, %419 : vector<2x512xf32>
    %421 = vector.extract_strided_slice %354 {offsets = [0, 4], sizes = [2, 1], strides = [1, 1]} : vector<2x7xf32> to vector<2x1xf32>
    %c496_i32_80 = arith.constant 496 : i32
    %422 = tpu.dynamic_rotate %343 by %c496_i32_80 dim 1 : vector<2x512xf32>, i32 -> vector<2x512xf32>
    %423 = vector.extract_strided_slice %0 {offsets = [7, 0], sizes = [1, 512], strides = [1, 1]} : vector<17x512xf32> to vector<1x512xf32>
    %424 = vector.broadcast %423 : vector<1x512xf32> to vector<2x512xf32>
    %425 = arith.mulf %422, %424 : vector<2x512xf32>
    %426 = vector.broadcast %421 : vector<2x1xf32> to vector<2x512xf32>
    %427 = arith.mulf %426, %425 : vector<2x512xf32>
    %428 = arith.addf %412, %427 : vector<2x512xf32>
    %429 = vector.extract_strided_slice %353 {offsets = [0, 5], sizes = [2, 1], strides = [1, 1]} : vector<2x7xf32> to vector<2x1xf32>
    %c510_i32 = arith.constant 510 : i32
    %430 = tpu.dynamic_rotate %342 by %c510_i32 dim 1 : vector<2x512xf32>, i32 -> vector<2x512xf32>
    %431 = vector.extract_strided_slice %0 {offsets = [11, 0], sizes = [1, 512], strides = [1, 1]} : vector<17x512xf32> to vector<1x512xf32>
    %432 = vector.broadcast %431 : vector<1x512xf32> to vector<2x512xf32>
    %433 = arith.mulf %430, %432 : vector<2x512xf32>
    %434 = vector.broadcast %429 : vector<2x1xf32> to vector<2x512xf32>
    %435 = arith.mulf %434, %433 : vector<2x512xf32>
    %436 = arith.addf %420, %435 : vector<2x512xf32>
    %437 = vector.extract_strided_slice %354 {offsets = [0, 5], sizes = [2, 1], strides = [1, 1]} : vector<2x7xf32> to vector<2x1xf32>
    %c480_i32 = arith.constant 480 : i32
    %438 = tpu.dynamic_rotate %343 by %c480_i32 dim 1 : vector<2x512xf32>, i32 -> vector<2x512xf32>
    %439 = vector.extract_strided_slice %0 {offsets = [15, 0], sizes = [1, 512], strides = [1, 1]} : vector<17x512xf32> to vector<1x512xf32>
    %440 = vector.broadcast %439 : vector<1x512xf32> to vector<2x512xf32>
    %441 = arith.mulf %438, %440 : vector<2x512xf32>
    %442 = vector.broadcast %437 : vector<2x1xf32> to vector<2x512xf32>
    %443 = arith.mulf %442, %441 : vector<2x512xf32>
    %444 = arith.addf %428, %443 : vector<2x512xf32>
    %445 = vector.extract_strided_slice %353 {offsets = [0, 6], sizes = [2, 1], strides = [1, 1]} : vector<2x7xf32> to vector<2x1xf32>
    %c509_i32 = arith.constant 509 : i32
    %446 = tpu.dynamic_rotate %342 by %c509_i32 dim 1 : vector<2x512xf32>, i32 -> vector<2x512xf32>
    %447 = vector.extract_strided_slice %0 {offsets = [12, 0], sizes = [1, 512], strides = [1, 1]} : vector<17x512xf32> to vector<1x512xf32>
    %448 = vector.broadcast %447 : vector<1x512xf32> to vector<2x512xf32>
    %449 = arith.mulf %446, %448 : vector<2x512xf32>
    %450 = vector.broadcast %445 : vector<2x1xf32> to vector<2x512xf32>
    %451 = arith.mulf %450, %449 : vector<2x512xf32>
    %452 = arith.addf %436, %451 : vector<2x512xf32>
    %453 = vector.extract_strided_slice %354 {offsets = [0, 6], sizes = [2, 1], strides = [1, 1]} : vector<2x7xf32> to vector<2x1xf32>
    %c464_i32 = arith.constant 464 : i32
    %454 = tpu.dynamic_rotate %343 by %c464_i32 dim 1 : vector<2x512xf32>, i32 -> vector<2x512xf32>
    %455 = vector.extract_strided_slice %0 {offsets = [16, 0], sizes = [1, 512], strides = [1, 1]} : vector<17x512xf32> to vector<1x512xf32>
    %456 = vector.broadcast %455 : vector<1x512xf32> to vector<2x512xf32>
    %457 = arith.mulf %454, %456 : vector<2x512xf32>
    %458 = vector.broadcast %453 : vector<2x1xf32> to vector<2x512xf32>
    %459 = arith.mulf %458, %457 : vector<2x512xf32>
    %460 = arith.addf %444, %459 : vector<2x512xf32>
    %c0_81 = arith.constant 0 : index
    %c0_82 = arith.constant 0 : index
    %461 = vector.load %arg14[%c0_81, %c0_82] : memref<2x1xf32, #tpu.memory_space<vmem>>, vector<2x1xf32>
    %462 = vector.broadcast %461 : vector<2x1xf32> to vector<2x512xf32>
    %463 = arith.addf %452, %462 : vector<2x512xf32>
    %c12 = arith.constant 12 : index
    %c0_83 = arith.constant 0 : index
    %464 = vector.load %arg17[%c12, %c0_83] : memref<16x512xf32, #tpu.memory_space<vmem>>, vector<2x512xf32>
    tpu.vector_store %arg17[%c12, %c0_83], %463 {strides = array<i32>} : memref<16x512xf32, #tpu.memory_space<vmem>>, vector<2x512xf32>,
    %c0_84 = arith.constant 0 : index
    %c0_85 = arith.constant 0 : index
    %465 = vector.load %arg16[%c0_84, %c0_85] : memref<2x1xf32, #tpu.memory_space<vmem>>, vector<2x1xf32>
    %466 = vector.broadcast %465 : vector<2x1xf32> to vector<2x512xf32>
    %467 = arith.addf %460, %466 : vector<2x512xf32>
    %c14 = arith.constant 14 : index
    %c0_86 = arith.constant 0 : index
    %468 = vector.load %arg17[%c14, %c0_86] : memref<16x512xf32, #tpu.memory_space<vmem>>, vector<2x512xf32>
    tpu.vector_store %arg17[%c14, %c0_86], %467 {strides = array<i32>} : memref<16x512xf32, #tpu.memory_space<vmem>>, vector<2x512xf32>,
    return
  }
  func.func @transform_0(%arg0: i32) -> (i32, i32) {
    %c0_i32 = arith.constant 0 : i32
    %c0_i32_0 = arith.constant 0 : i32
    return %c0_i32, %arg0 : i32, i32
  }
  func.func @transform_1(%arg0: i32) -> (i32, i32) {
    %c0_i32 = arith.constant 0 : i32
    %c0_i32_0 = arith.constant 0 : i32
    %c0_i32_1 = arith.constant 0 : i32
    return %c0_i32, %c0_i32_0 : i32, i32
  }
  func.func @transform_2(%arg0: i32) -> (i32, i32) {
    %c0_i32 = arith.constant 0 : i32
    %c0_i32_0 = arith.constant 0 : i32
    %c0_i32_1 = arith.constant 0 : i32
    return %c0_i32, %c0_i32_0 : i32, i32
  }
  func.func @transform_3(%arg0: i32) -> (i32, i32) {
    %c0_i32 = arith.constant 0 : i32
    %c0_i32_0 = arith.constant 0 : i32
    %c0_i32_1 = arith.constant 0 : i32
    return %c0_i32, %c0_i32_0 : i32, i32
  }
  func.func @transform_4(%arg0: i32) -> (i32, i32) {
    %c0_i32 = arith.constant 0 : i32
    %c0_i32_0 = arith.constant 0 : i32
    %c0_i32_1 = arith.constant 0 : i32
    return %c0_i32, %c0_i32_0 : i32, i32
  }
  func.func @transform_5(%arg0: i32) -> (i32, i32) {
    %c0_i32 = arith.constant 0 : i32
    %c0_i32_0 = arith.constant 0 : i32
    %c0_i32_1 = arith.constant 0 : i32
    return %c0_i32, %c0_i32_0 : i32, i32
  }
  func.func @transform_6(%arg0: i32) -> (i32, i32) {
    %c0_i32 = arith.constant 0 : i32
    %c0_i32_0 = arith.constant 0 : i32
    %c0_i32_1 = arith.constant 0 : i32
    return %c0_i32, %c0_i32_0 : i32, i32
  }
  func.func @transform_7(%arg0: i32) -> (i32, i32) {
    %c0_i32 = arith.constant 0 : i32
    %c0_i32_0 = arith.constant 0 : i32
    %c0_i32_1 = arith.constant 0 : i32
    return %c0_i32, %c0_i32_0 : i32, i32
  }
  func.func @transform_8(%arg0: i32) -> (i32, i32) {
    %c0_i32 = arith.constant 0 : i32
    %c0_i32_0 = arith.constant 0 : i32
    %c0_i32_1 = arith.constant 0 : i32
    return %c0_i32, %c0_i32_0 : i32, i32
  }
  func.func @transform_9(%arg0: i32) -> (i32, i32) {
    %c0_i32 = arith.constant 0 : i32
    %c0_i32_0 = arith.constant 0 : i32
    %c0_i32_1 = arith.constant 0 : i32
    return %c0_i32, %c0_i32_0 : i32, i32
  }
  func.func @transform_10(%arg0: i32) -> (i32, i32) {
    %c0_i32 = arith.constant 0 : i32
    %c0_i32_0 = arith.constant 0 : i32
    %c0_i32_1 = arith.constant 0 : i32
    return %c0_i32, %c0_i32_0 : i32, i32
  }
  func.func @transform_11(%arg0: i32) -> (i32, i32) {
    %c0_i32 = arith.constant 0 : i32
    %c0_i32_0 = arith.constant 0 : i32
    %c0_i32_1 = arith.constant 0 : i32
    return %c0_i32, %c0_i32_0 : i32, i32
  }
  func.func @transform_12(%arg0: i32) -> (i32, i32) {
    %c0_i32 = arith.constant 0 : i32
    %c0_i32_0 = arith.constant 0 : i32
    %c0_i32_1 = arith.constant 0 : i32
    return %c0_i32, %c0_i32_0 : i32, i32
  }
  func.func @transform_13(%arg0: i32) -> (i32, i32) {
    %c0_i32 = arith.constant 0 : i32
    %c0_i32_0 = arith.constant 0 : i32
    %c0_i32_1 = arith.constant 0 : i32
    return %c0_i32, %c0_i32_0 : i32, i32
  }
  func.func @transform_14(%arg0: i32) -> (i32, i32) {
    %c0_i32 = arith.constant 0 : i32
    %c0_i32_0 = arith.constant 0 : i32
    %c0_i32_1 = arith.constant 0 : i32
    return %c0_i32, %c0_i32_0 : i32, i32
  }
  func.func @transform_15(%arg0: i32) -> (i32, i32) {
    %c0_i32 = arith.constant 0 : i32
    %c0_i32_0 = arith.constant 0 : i32
    %c0_i32_1 = arith.constant 0 : i32
    return %c0_i32, %c0_i32_0 : i32, i32
  }
  func.func @transform_16(%arg0: i32) -> (i32, i32) {
    %c0_i32 = arith.constant 0 : i32
    %c0_i32_0 = arith.constant 0 : i32
    return %c0_i32, %arg0 : i32, i32
  }
}

</mosaic_0001>

<llo_original>
// kernel: tpu_custom_call.1
$region0: #{tpu_custom_call.1}
  #allocation0 [shape = 'u32[]', space=smem, size = 0x4, offset = 0x4, fixed_abs, tag = 'smem constant byte address 0x4 - core index']
  #allocation1 [shape = 'u32[144,128]{1,0:T(1,128)}', space=vmem, size = 0x12000, scoped, tag = 'internal scratch']
  %s0 = inlined_call_operand.vmem [shape: f32[3,1024], index: 0, kind: input, shape index: {}]
  %s1 = inlined_call_operand.vmem [shape: f32[17,512], index: 1, kind: input, shape index: {}]
  %s2 = inlined_call_operand.hbm [shape: f32[2,512], index: 2, kind: input, shape index: {}]
  %s3 = inlined_call_operand.vmem [shape: f32[16,2], index: 3, kind: input, shape index: {}]
  %s4 = inlined_call_operand.vmem [shape: f32[16,2], index: 4, kind: input, shape index: {}]
  %s5 = inlined_call_operand.vmem [shape: bf16[16,27], index: 5, kind: input, shape index: {}]
  %s6 = inlined_call_operand.vmem [shape: f32[48,1], index: 6, kind: input, shape index: {}]
  %s7 = inlined_call_operand.vmem [shape: f32[48,1], index: 7, kind: input, shape index: {}]
  %s8 = inlined_call_operand.vmem [shape: bf16[12,176], index: 8, kind: input, shape index: {}]
  %s9 = inlined_call_operand.vmem [shape: bf16[16,144], index: 9, kind: input, shape index: {}]
  %s10 = inlined_call_operand.vmem [shape: f32[2,1], index: 10, kind: input, shape index: {}]
  %s11 = inlined_call_operand.vmem [shape: f32[2,1], index: 11, kind: input, shape index: {}]
  %s12 = inlined_call_operand.vmem [shape: f32[2,7], index: 12, kind: input, shape index: {}]
  %s13 = inlined_call_operand.vmem [shape: f32[2,1], index: 13, kind: input, shape index: {}]
  %s14 = inlined_call_operand.vmem [shape: f32[2,7], index: 14, kind: input, shape index: {}]
  %s15 = inlined_call_operand.vmem [shape: f32[2,1], index: 15, kind: input, shape index: {}]
  %s16 = inlined_call_operand.hbm [shape: f32[16,1024], index: 16, kind: output, shape index: {}]
  %s17 = sld [smem:[#allocation0]]
  $region101: #{tpu_custom_call.1} parent=0
    _
  %s19 = ssub.s32 1, %s17
  %s20 = scalar_select 0, %s19, %s17
  $region1: #{tpu_custom_call.1} parent=0
    #allocation2 [shape = 'u8[4096]{0}', space=vmem, size = 0x1000, scoped, tag = 'input window, operand 2, single buffered']
    #allocation3 [shape = 's32[2]{0}', space=sflag, size = 0x8, scoped, tag = 'scoped memory for tpu_custom_call.1']
    #allocation4 [shape = 's32[2]{0}', space=sflag, size = 0x8, scoped, tag = 'scoped memory for tpu_custom_call.1']
    #allocation5 [shape = 'u8[65536]{0}', space=vmem, size = 0x10000, scoped, tag = 'output window, operand 0']
    %21 = vsyncpa [#allocation3], 0
    %22 = vsyncpa [#allocation4], 0
    %s23 = scalar_lea.sflag [#allocation4], 1
    %24 = vsyncpa %s23, 0
    loop: start=0, step=1, limit=4
    $region2: #{tpu_custom_call.1} parent=1 // loop_pre_header
      _
    $region3: #{tpu_custom_call.1} parent=1 // loop_header
      %s26 = sphi 0, %s30
      %p27 = scmp.ge.s32.totalorder %s26, 4
      %s36 = sphi 0, %s38
      %s39 = sphi 0, %s36
      %s40 = sphi 0, %s39
      %s56 = sphi 0, %s40
      %s60 = sphi 0, %s60
      %s62 = sphi 0, %s60
      %s63 = sphi 0, %s62
      %s77 = sphi 0, %s63
      %s81 = sphi 0, %s81
      %s83 = sphi 0, %s81
      %s84 = sphi 0, %s83
      %s98 = sphi 0, %s84
      %s102 = sphi 0, %s102
      %s104 = sphi 0, %s102
      %s105 = sphi 0, %s104
      %s119 = sphi 0, %s105
      %s123 = sphi 0, %s123
      %s125 = sphi 0, %s123
      %s126 = sphi 0, %s125
      %s140 = sphi 0, %s126
      %s144 = sphi 0, %s144
      %s146 = sphi 0, %s144
      %s147 = sphi 0, %s146
      %s161 = sphi 0, %s147
      %s165 = sphi 0, %s165
      %s167 = sphi 0, %s165
      %s168 = sphi 0, %s167
      %s182 = sphi 0, %s168
      %s186 = sphi 0, %s186
      %s188 = sphi 0, %s186
      %s189 = sphi 0, %s188
      %s203 = sphi 0, %s189
      %s207 = sphi 0, %s207
      %s209 = sphi 0, %s207
      %s210 = sphi 0, %s209
      %s224 = sphi 0, %s210
      %s228 = sphi 0, %s228
      %s230 = sphi 0, %s228
      %s231 = sphi 0, %s230
      %s245 = sphi 0, %s231
      %s249 = sphi 0, %s249
      %s251 = sphi 0, %s249
      %s252 = sphi 0, %s251
      %s266 = sphi 0, %s252
      %s270 = sphi 0, %s270
      %s272 = sphi 0, %s270
      %s273 = sphi 0, %s272
      %s287 = sphi 0, %s273
      %s291 = sphi 0, %s291
      %s293 = sphi 0, %s291
      %s294 = sphi 0, %s293
      %s308 = sphi 0, %s294
      %s312 = sphi 0, %s312
      %s314 = sphi 0, %s312
      %s315 = sphi 0, %s314
      %s329 = sphi 0, %s315
      %s333 = sphi 0, %s333
      %s335 = sphi 0, %s333
      %s336 = sphi 0, %s335
      %s350 = sphi 0, %s336
      %s354 = sphi 0, %s354
      %s356 = sphi 0, %s354
      %s357 = sphi 0, %s356
      %s371 = sphi 0, %s357
      %s377 = sphi 0, %s379
      %s380 = sphi 0, %s377
      %s381 = sphi 0, %s380
      %s397 = sphi 0, %s381
    $region4: #{tpu_custom_call.1} parent=1 // loop_header_branch
      %29 = sbr.rel (%p27) target = $region8
    $region5: #{tpu_custom_call.1} parent=1 // loop_body
      %s31 = ssub.s32 %s26, 1
      %s32 = ssub.s32 %s26, 2
      %s33 = sadd.s32 %s26, 1
      %s34 = ssub.s32 %s26, %s33
      %p35 = scmp.eq.s32.totalorder %s34, 0
      %s37 = sadd.s32 %s36, 1
      %s38 = scalar_select %p35, %s36, %s37
      %p41 = pneg %p35
      %p42 = scmp.eq.s32.totalorder %s26, 1
      %p43 = por %p41, %p42
      %p44 = scmp.ne.s32.totalorder %s36, %s39
      %p45 = scmp.eq.s32.totalorder %s26, 0
      %p46 = por %p44, %p45
      %p47 = scmp.ne.s32.totalorder %s36, %s39
      %p48 = scmp.eq.s32.totalorder %s31, 1
      %p49 = por %p47, %p48
      %p50 = scmp.ne.s32.totalorder %s39, %s40
      %p51 = scmp.eq.s32.totalorder %s31, 0
      %p52 = por %p50, %p51
      %p53 = scmp.ne.s32.totalorder %s39, %s40
      %p54 = scmp.eq.s32.totalorder %s32, 1
      %p55 = por %p53, %p54
      %p57 = scmp.ne.s32.totalorder %s40, %s56
      %p58 = scmp.eq.s32.totalorder %s32, 0
      %p59 = por %p57, %p58
      %s61 = sadd.s32 %s60, 1
      %p64 = scmp.eq.s32.totalorder %s26, 1
      %p65 = scmp.ne.s32.totalorder %s60, %s62
      %p66 = scmp.eq.s32.totalorder %s26, 0
      %p67 = por %p65, %p66
      %p68 = scmp.ne.s32.totalorder %s60, %s62
      %p69 = scmp.eq.s32.totalorder %s31, 1
      %p70 = por %p68, %p69
      %p71 = scmp.ne.s32.totalorder %s62, %s63
      %p72 = scmp.eq.s32.totalorder %s31, 0
      %p73 = por %p71, %p72
      %p74 = scmp.ne.s32.totalorder %s62, %s63
      %p75 = scmp.eq.s32.totalorder %s32, 1
      %p76 = por %p74, %p75
      %p78 = scmp.ne.s32.totalorder %s63, %s77
      %p79 = scmp.eq.s32.totalorder %s32, 0
      %p80 = por %p78, %p79
      %s82 = sadd.s32 %s81, 1
      %p85 = scmp.eq.s32.totalorder %s26, 1
      %p86 = scmp.ne.s32.totalorder %s81, %s83
      %p87 = scmp.eq.s32.totalorder %s26, 0
      %p88 = por %p86, %p87
      %p89 = scmp.ne.s32.totalorder %s81, %s83
      %p90 = scmp.eq.s32.totalorder %s31, 1
      %p91 = por %p89, %p90
      %p92 = scmp.ne.s32.totalorder %s83, %s84
      %p93 = scmp.eq.s32.totalorder %s31, 0
      %p94 = por %p92, %p93
      %p95 = scmp.ne.s32.totalorder %s83, %s84
      %p96 = scmp.eq.s32.totalorder %s32, 1
      %p97 = por %p95, %p96
      %p99 = scmp.ne.s32.totalorder %s84, %s98
      %p100 = scmp.eq.s32.totalorder %s32, 0
      %p101 = por %p99, %p100
      %s103 = sadd.s32 %s102, 1
      %p106 = scmp.eq.s32.totalorder %s26, 1
      %p107 = scmp.ne.s32.totalorder %s102, %s104
      %p108 = scmp.eq.s32.totalorder %s26, 0
      %p109 = por %p107, %p108
      %p110 = scmp.ne.s32.totalorder %s102, %s104
      %p111 = scmp.eq.s32.totalorder %s31, 1
      %p112 = por %p110, %p111
      %p113 = scmp.ne.s32.totalorder %s104, %s105
      %p114 = scmp.eq.s32.totalorder %s31, 0
      %p115 = por %p113, %p114
      %p116 = scmp.ne.s32.totalorder %s104, %s105
      %p117 = scmp.eq.s32.totalorder %s32, 1
      %p118 = por %p116, %p117
      %p120 = scmp.ne.s32.totalorder %s105, %s119
      %p121 = scmp.eq.s32.totalorder %s32, 0
      %p122 = por %p120, %p121
      %s124 = sadd.s32 %s123, 1
      %p127 = scmp.eq.s32.totalorder %s26, 1
      %p128 = scmp.ne.s32.totalorder %s123, %s125
      %p129 = scmp.eq.s32.totalorder %s26, 0
      %p130 = por %p128, %p129
      %p131 = scmp.ne.s32.totalorder %s123, %s125
      %p132 = scmp.eq.s32.totalorder %s31, 1
      %p133 = por %p131, %p132
      %p134 = scmp.ne.s32.totalorder %s125, %s126
      %p135 = scmp.eq.s32.totalorder %s31, 0
      %p136 = por %p134, %p135
      %p137 = scmp.ne.s32.totalorder %s125, %s126
      %p138 = scmp.eq.s32.totalorder %s32, 1
      %p139 = por %p137, %p138
      %p141 = scmp.ne.s32.totalorder %s126, %s140
      %p142 = scmp.eq.s32.totalorder %s32, 0
      %p143 = por %p141, %p142
      %s145 = sadd.s32 %s144, 1
      %p148 = scmp.eq.s32.totalorder %s26, 1
      %p149 = scmp.ne.s32.totalorder %s144, %s146
      %p150 = scmp.eq.s32.totalorder %s26, 0
      %p151 = por %p149, %p150
      %p152 = scmp.ne.s32.totalorder %s144, %s146
      %p153 = scmp.eq.s32.totalorder %s31, 1
      %p154 = por %p152, %p153
      %p155 = scmp.ne.s32.totalorder %s146, %s147
      %p156 = scmp.eq.s32.totalorder %s31, 0
      %p157 = por %p155, %p156
      %p158 = scmp.ne.s32.totalorder %s146, %s147
      %p159 = scmp.eq.s32.totalorder %s32, 1
      %p160 = por %p158, %p159
      %p162 = scmp.ne.s32.totalorder %s147, %s161
      %p163 = scmp.eq.s32.totalorder %s32, 0
      %p164 = por %p162, %p163
      %s166 = sadd.s32 %s165, 1
      %p169 = scmp.eq.s32.totalorder %s26, 1
      %p170 = scmp.ne.s32.totalorder %s165, %s167
      %p171 = scmp.eq.s32.totalorder %s26, 0
      %p172 = por %p170, %p171
      %p173 = scmp.ne.s32.totalorder %s165, %s167
      %p174 = scmp.eq.s32.totalorder %s31, 1
      %p175 = por %p173, %p174
      %p176 = scmp.ne.s32.totalorder %s167, %s168
      %p177 = scmp.eq.s32.totalorder %s31, 0
      %p178 = por %p176, %p177
      %p179 = scmp.ne.s32.totalorder %s167, %s168
      %p180 = scmp.eq.s32.totalorder %s32, 1
      %p181 = por %p179, %p180
      %p183 = scmp.ne.s32.totalorder %s168, %s182
      %p184 = scmp.eq.s32.totalorder %s32, 0
      %p185 = por %p183, %p184
      %s187 = sadd.s32 %s186, 1
      %p190 = scmp.eq.s32.totalorder %s26, 1
      %p191 = scmp.ne.s32.totalorder %s186, %s188
      %p192 = scmp.eq.s32.totalorder %s26, 0
      %p193 = por %p191, %p192
      %p194 = scmp.ne.s32.totalorder %s186, %s188
      %p195 = scmp.eq.s32.totalorder %s31, 1
      %p196 = por %p194, %p195
      %p197 = scmp.ne.s32.totalorder %s188, %s189
      %p198 = scmp.eq.s32.totalorder %s31, 0
      %p199 = por %p197, %p198
      %p200 = scmp.ne.s32.totalorder %s188, %s189
      %p201 = scmp.eq.s32.totalorder %s32, 1
      %p202 = por %p200, %p201
      %p204 = scmp.ne.s32.totalorder %s189, %s203
      %p205 = scmp.eq.s32.totalorder %s32, 0
      %p206 = por %p204, %p205
      %s208 = sadd.s32 %s207, 1
      %p211 = scmp.eq.s32.totalorder %s26, 1
      %p212 = scmp.ne.s32.totalorder %s207, %s209
      %p213 = scmp.eq.s32.totalorder %s26, 0
      %p214 = por %p212, %p213
      %p215 = scmp.ne.s32.totalorder %s207, %s209
      %p216 = scmp.eq.s32.totalorder %s31, 1
      %p217 = por %p215, %p216
      %p218 = scmp.ne.s32.totalorder %s209, %s210
      %p219 = scmp.eq.s32.totalorder %s31, 0
      %p220 = por %p218, %p219
      %p221 = scmp.ne.s32.totalorder %s209, %s210
      %p222 = scmp.eq.s32.totalorder %s32, 1
      %p223 = por %p221, %p222
      %p225 = scmp.ne.s32.totalorder %s210, %s224
      %p226 = scmp.eq.s32.totalorder %s32, 0
      %p227 = por %p225, %p226
      %s229 = sadd.s32 %s228, 1
      %p232 = scmp.eq.s32.totalorder %s26, 1
      %p233 = scmp.ne.s32.totalorder %s228, %s230
      %p234 = scmp.eq.s32.totalorder %s26, 0
      %p235 = por %p233, %p234
      %p236 = scmp.ne.s32.totalorder %s228, %s230
      %p237 = scmp.eq.s32.totalorder %s31, 1
      %p238 = por %p236, %p237
      %p239 = scmp.ne.s32.totalorder %s230, %s231
      %p240 = scmp.eq.s32.totalorder %s31, 0
      %p241 = por %p239, %p240
      %p242 = scmp.ne.s32.totalorder %s230, %s231
      %p243 = scmp.eq.s32.totalorder %s32, 1
      %p244 = por %p242, %p243
      %p246 = scmp.ne.s32.totalorder %s231, %s245
      %p247 = scmp.eq.s32.totalorder %s32, 0
      %p248 = por %p246, %p247
      %s250 = sadd.s32 %s249, 1
      %p253 = scmp.eq.s32.totalorder %s26, 1
      %p254 = scmp.ne.s32.totalorder %s249, %s251
      %p255 = scmp.eq.s32.totalorder %s26, 0
      %p256 = por %p254, %p255
      %p257 = scmp.ne.s32.totalorder %s249, %s251
      %p258 = scmp.eq.s32.totalorder %s31, 1
      %p259 = por %p257, %p258
      %p260 = scmp.ne.s32.totalorder %s251, %s252
      %p261 = scmp.eq.s32.totalorder %s31, 0
      %p262 = por %p260, %p261
      %p263 = scmp.ne.s32.totalorder %s251, %s252
      %p264 = scmp.eq.s32.totalorder %s32, 1
      %p265 = por %p263, %p264
      %p267 = scmp.ne.s32.totalorder %s252, %s266
      %p268 = scmp.eq.s32.totalorder %s32, 0
      %p269 = por %p267, %p268
      %s271 = sadd.s32 %s270, 1
      %p274 = scmp.eq.s32.totalorder %s26, 1
      %p275 = scmp.ne.s32.totalorder %s270, %s272
      %p276 = scmp.eq.s32.totalorder %s26, 0
      %p277 = por %p275, %p276
      %p278 = scmp.ne.s32.totalorder %s270, %s272
      %p279 = scmp.eq.s32.totalorder %s31, 1
      %p280 = por %p278, %p279
      %p281 = scmp.ne.s32.totalorder %s272, %s273
      %p282 = scmp.eq.s32.totalorder %s31, 0
      %p283 = por %p281, %p282
      %p284 = scmp.ne.s32.totalorder %s272, %s273
      %p285 = scmp.eq.s32.totalorder %s32, 1
      %p286 = por %p284, %p285
      %p288 = scmp.ne.s32.totalorder %s273, %s287
      %p289 = scmp.eq.s32.totalorder %s32, 0
      %p290 = por %p288, %p289
      %s292 = sadd.s32 %s291, 1
      %p295 = scmp.eq.s32.totalorder %s26, 1
      %p296 = scmp.ne.s32.totalorder %s291, %s293
      %p297 = scmp.eq.s32.totalorder %s26, 0
      %p298 = por %p296, %p297
      %p299 = scmp.ne.s32.totalorder %s291, %s293
      %p300 = scmp.eq.s32.totalorder %s31, 1
      %p301 = por %p299, %p300
      %p302 = scmp.ne.s32.totalorder %s293, %s294
      %p303 = scmp.eq.s32.totalorder %s31, 0
      %p304 = por %p302, %p303
      %p305 = scmp.ne.s32.totalorder %s293, %s294
      %p306 = scmp.eq.s32.totalorder %s32, 1
      %p307 = por %p305, %p306
      %p309 = scmp.ne.s32.totalorder %s294, %s308
      %p310 = scmp.eq.s32.totalorder %s32, 0
      %p311 = por %p309, %p310
      %s313 = sadd.s32 %s312, 1
      %p316 = scmp.eq.s32.totalorder %s26, 1
      %p317 = scmp.ne.s32.totalorder %s312, %s314
      %p318 = scmp.eq.s32.totalorder %s26, 0
      %p319 = por %p317, %p318
      %p320 = scmp.ne.s32.totalorder %s312, %s314
      %p321 = scmp.eq.s32.totalorder %s31, 1
      %p322 = por %p320, %p321
      %p323 = scmp.ne.s32.totalorder %s314, %s315
      %p324 = scmp.eq.s32.totalorder %s31, 0
      %p325 = por %p323, %p324
      %p326 = scmp.ne.s32.totalorder %s314, %s315
      %p327 = scmp.eq.s32.totalorder %s32, 1
      %p328 = por %p326, %p327
      %p330 = scmp.ne.s32.totalorder %s315, %s329
      %p331 = scmp.eq.s32.totalorder %s32, 0
      %p332 = por %p330, %p331
      %s334 = sadd.s32 %s333, 1
      %p337 = scmp.eq.s32.totalorder %s26, 1
      %p338 = scmp.ne.s32.totalorder %s333, %s335
      %p339 = scmp.eq.s32.totalorder %s26, 0
      %p340 = por %p338, %p339
      %p341 = scmp.ne.s32.totalorder %s333, %s335
      %p342 = scmp.eq.s32.totalorder %s31, 1
      %p343 = por %p341, %p342
      %p344 = scmp.ne.s32.totalorder %s335, %s336
      %p345 = scmp.eq.s32.totalorder %s31, 0
      %p346 = por %p344, %p345
      %p347 = scmp.ne.s32.totalorder %s335, %s336
      %p348 = scmp.eq.s32.totalorder %s32, 1
      %p349 = por %p347, %p348
      %p351 = scmp.ne.s32.totalorder %s336, %s350
      %p352 = scmp.eq.s32.totalorder %s32, 0
      %p353 = por %p351, %p352
      %s355 = sadd.s32 %s354, 1
      %p358 = scmp.eq.s32.totalorder %s26, 1
      %p359 = scmp.ne.s32.totalorder %s354, %s356
      %p360 = scmp.eq.s32.totalorder %s26, 0
      %p361 = por %p359, %p360
      %p362 = scmp.ne.s32.totalorder %s354, %s356
      %p363 = scmp.eq.s32.totalorder %s31, 1
      %p364 = por %p362, %p363
      %p365 = scmp.ne.s32.totalorder %s356, %s357
      %p366 = scmp.eq.s32.totalorder %s31, 0
      %p367 = por %p365, %p366
      %p368 = scmp.ne.s32.totalorder %s356, %s357
      %p369 = scmp.eq.s32.totalorder %s32, 1
      %p370 = por %p368, %p369
      %p372 = scmp.ne.s32.totalorder %s357, %s371
      %p373 = scmp.eq.s32.totalorder %s32, 0
      %p374 = por %p372, %p373
      %s375 = ssub.s32 %s26, %s33
      %p376 = scmp.eq.s32.totalorder %s375, 0
      %s378 = sadd.s32 %s377, 1
      %s379 = scalar_select %p376, %s377, %s378
      %p382 = pneg %p376
      %p383 = scmp.eq.s32.totalorder %s26, 1
      %p384 = por %p382, %p383
      %p385 = scmp.ne.s32.totalorder %s377, %s380
      %p386 = scmp.eq.s32.totalorder %s26, 0
      %p387 = por %p385, %p386
      %p388 = scmp.ne.s32.totalorder %s377, %s380
      %p389 = scmp.eq.s32.totalorder %s31, 1
      %p390 = por %p388, %p389
      %p391 = scmp.ne.s32.totalorder %s380, %s381
      %p392 = scmp.eq.s32.totalorder %s31, 0
      %p393 = por %p391, %p392
      %p394 = scmp.ne.s32.totalorder %s380, %s381
      %p395 = scmp.eq.s32.totalorder %s32, 1
      %p396 = por %p394, %p395
      %p398 = scmp.ne.s32.totalorder %s381, %s397
      %p399 = scmp.eq.s32.totalorder %s32, 0
      %p400 = por %p398, %p399
      %p401 = scmp.le.s32.totalorder 1, %s26
      %p402 = scmp.lt.s32.totalorder %s26, 3
      %p403 = pnand %p401, %p402
      %p404 = pneg %p403
      // Predicated region
      $region9: #{tpu_custom_call.1} parent=5 // pred_check
        _
      $region10: #{tpu_custom_call.1} parent=5 // pred_check_branch
        %406 = sbr.rel (%p403) target = $region12
      $region11: #{tpu_custom_call.1} parent=5 // pred_region
        %s407 = ssub.s32 %s26, 1
        // Predicated region
        $region13: #{tpu_custom_call.1} parent=11 // pred_check
          %p408 = pneg %p73
        $region14: #{tpu_custom_call.1} parent=11 // pred_check_branch
          %410 = sbr.rel (%p408) target = $region16
        $region15: #{tpu_custom_call.1} parent=11 // pred_region
          _
        $region16: #{tpu_custom_call.1} parent=11 // pred_fallthru
          _
        // Predicated region
        $region17: #{tpu_custom_call.1} parent=11 // pred_check
          %p411 = pneg %p94
        $region18: #{tpu_custom_call.1} parent=11 // pred_check_branch
          %413 = sbr.rel (%p411) target = $region20
        $region19: #{tpu_custom_call.1} parent=11 // pred_region
          %s415 = ssub.s32 128, 128
          %416 = vsyncadd [#allocation3], %s415
          %s418 = sshll.u32 [#allocation2], 4
          %s419 = int_to_ptr.vmem [resolvable:$true] %s418
          %421 = dma.hbm_to_vmem [thread:$0]  %s2, 128, %s419, [#allocation3]
        $region20: #{tpu_custom_call.1} parent=11 // pred_fallthru
          _
        // Predicated region
        $region21: #{tpu_custom_call.1} parent=11 // pred_check
          %p422 = pneg %p115
        $region22: #{tpu_custom_call.1} parent=11 // pred_check_branch
          %424 = sbr.rel (%p422) target = $region24
        $region23: #{tpu_custom_call.1} parent=11 // pred_region
          _
        $region24: #{tpu_custom_call.1} parent=11 // pred_fallthru
          _
        // Predicated region
        $region25: #{tpu_custom_call.1} parent=11 // pred_check
          %p425 = pneg %p136
        $region26: #{tpu_custom_call.1} parent=11 // pred_check_branch
          %427 = sbr.rel (%p425) target = $region28
        $region27: #{tpu_custom_call.1} parent=11 // pred_region
          _
        $region28: #{tpu_custom_call.1} parent=11 // pred_fallthru
          _
        // Predicated region
        $region29: #{tpu_custom_call.1} parent=11 // pred_check
          %p428 = pneg %p157
        $region30: #{tpu_custom_call.1} parent=11 // pred_check_branch
          %430 = sbr.rel (%p428) target = $region32
        $region31: #{tpu_custom_call.1} parent=11 // pred_region
          _
        $region32: #{tpu_custom_call.1} parent=11 // pred_fallthru
          _
        // Predicated region
        $region33: #{tpu_custom_call.1} parent=11 // pred_check
          %p431 = pneg %p178
        $region34: #{tpu_custom_call.1} parent=11 // pred_check_branch
          %433 = sbr.rel (%p431) target = $region36
        $region35: #{tpu_custom_call.1} parent=11 // pred_region
          _
        $region36: #{tpu_custom_call.1} parent=11 // pred_fallthru
          _
        // Predicated region
        $region37: #{tpu_custom_call.1} parent=11 // pred_check
          %p434 = pneg %p199
        $region38: #{tpu_custom_call.1} parent=11 // pred_check_branch
          %436 = sbr.rel (%p434) target = $region40
        $region39: #{tpu_custom_call.1} parent=11 // pred_region
          _
        $region40: #{tpu_custom_call.1} parent=11 // pred_fallthru
          _
        // Predicated region
        $region41: #{tpu_custom_call.1} parent=11 // pred_check
          %p437 = pneg %p220
        $region42: #{tpu_custom_call.1} parent=11 // pred_check_branch
          %439 = sbr.rel (%p437) target = $region44
        $region43: #{tpu_custom_call.1} parent=11 // pred_region
          _
        $region44: #{tpu_custom_call.1} parent=11 // pred_fallthru
          _
        // Predicated region
        $region45: #{tpu_custom_call.1} parent=11 // pred_check
          %p440 = pneg %p241
        $region46: #{tpu_custom_call.1} parent=11 // pred_check_branch
          %442 = sbr.rel (%p440) target = $region48
        $region47: #{tpu_custom_call.1} parent=11 // pred_region
          _
        $region48: #{tpu_custom_call.1} parent=11 // pred_fallthru
          _
        // Predicated region
        $region49: #{tpu_custom_call.1} parent=11 // pred_check
          %p443 = pneg %p262
        $region50: #{tpu_custom_call.1} parent=11 // pred_check_branch
          %445 = sbr.rel (%p443) target = $region52
        $region51: #{tpu_custom_call.1} parent=11 // pred_region
          _
        $region52: #{tpu_custom_call.1} parent=11 // pred_fallthru
          _
        // Predicated region
        $region53: #{tpu_custom_call.1} parent=11 // pred_check
          %p446 = pneg %p283
        $region54: #{tpu_custom_call.1} parent=11 // pred_check_branch
          %448 = sbr.rel (%p446) target = $region56
        $region55: #{tpu_custom_call.1} parent=11 // pred_region
          _
        $region56: #{tpu_custom_call.1} parent=11 // pred_fallthru
          _
        // Predicated region
        $region57: #{tpu_custom_call.1} parent=11 // pred_check
          %p449 = pneg %p304
        $region58: #{tpu_custom_call.1} parent=11 // pred_check_branch
          %451 = sbr.rel (%p449) target = $region60
        $region59: #{tpu_custom_call.1} parent=11 // pred_region
          _
        $region60: #{tpu_custom_call.1} parent=11 // pred_fallthru
          _
        // Predicated region
        $region61: #{tpu_custom_call.1} parent=11 // pred_check
          %p452 = pneg %p325
        $region62: #{tpu_custom_call.1} parent=11 // pred_check_branch
          %454 = sbr.rel (%p452) target = $region64
        $region63: #{tpu_custom_call.1} parent=11 // pred_region
          _
        $region64: #{tpu_custom_call.1} parent=11 // pred_fallthru
          _
        // Predicated region
        $region65: #{tpu_custom_call.1} parent=11 // pred_check
          %p455 = pneg %p346
        $region66: #{tpu_custom_call.1} parent=11 // pred_check_branch
          %457 = sbr.rel (%p455) target = $region68
        $region67: #{tpu_custom_call.1} parent=11 // pred_region
          _
        $region68: #{tpu_custom_call.1} parent=11 // pred_fallthru
          _
        // Predicated region
        $region69: #{tpu_custom_call.1} parent=11 // pred_check
          %p458 = pneg %p367
        $region70: #{tpu_custom_call.1} parent=11 // pred_check_branch
          %460 = sbr.rel (%p458) target = $region72
        $region71: #{tpu_custom_call.1} parent=11 // pred_region
          _
        $region72: #{tpu_custom_call.1} parent=11 // pred_fallthru
          _
      $region12: #{tpu_custom_call.1} parent=5 // pred_fallthru
        _
      %p461 = scmp.lt.s32.totalorder %s26, 2
      // Predicated region
      $region73: #{tpu_custom_call.1} parent=5 // pred_check
        %p462 = pneg %p461
      $region74: #{tpu_custom_call.1} parent=5 // pred_check_branch
        %464 = sbr.rel (%p462) target = $region76
      $region75: #{tpu_custom_call.1} parent=5 // pred_region
        // Predicated region
        $region77: #{tpu_custom_call.1} parent=75 // pred_check
          %p465 = pneg %p46
        $region78: #{tpu_custom_call.1} parent=75 // pred_check_branch
          %467 = sbr.rel (%p465) target = $region80
        $region79: #{tpu_custom_call.1} parent=75 // pred_region
          %s468 = smul.u32 4, %s26
          %p469 = scmp.lt.s32.totalorder %s468, 7
          %s470 = scalar_select %p469, %s468, 7
          %s471 = smul.addr %s470, 4
          %s472 = scalar_lea.vmem %s0, %s471
          %s473 = smul.u32 4, %s26
        $region80: #{tpu_custom_call.1} parent=75 // pred_fallthru
          _
      $region76: #{tpu_custom_call.1} parent=5 // pred_fallthru
        _
      %p474 = scmp.le.s32.totalorder 1, %s26
      %p475 = scmp.lt.s32.totalorder %s26, 3
      %p476 = pnand %p474, %p475
      %p477 = pneg %p476
      // Predicated region
      $region81: #{tpu_custom_call.1} parent=5 // pred_check
        _
      $region82: #{tpu_custom_call.1} parent=5 // pred_check_branch
        %479 = sbr.rel (%p476) target = $region84
      $region83: #{tpu_custom_call.1} parent=5 // pred_region
        %s480 = ssub.s32 %s26, 1
        // Predicated region
        $region85: #{tpu_custom_call.1} parent=83 // pred_check
          %p481 = pneg %p94
        $region86: #{tpu_custom_call.1} parent=83 // pred_check_branch
          %483 = sbr.rel (%p481) target = $region88
        $region87: #{tpu_custom_call.1} parent=83 // pred_region
          %484 = dma.done [#allocation3], 128
        $region88: #{tpu_custom_call.1} parent=83 // pred_fallthru
          _
        %s485 = smul.u32 4, %s31
        %p486 = scmp.lt.s32.totalorder %s485, 7
        %s487 = scalar_select %p486, %s485, 7
        %s488 = smul.addr %s487, 4
        %s489 = scalar_lea.vmem %s0, %s488
        %p490 = pneg %p52
        %p491 = pneg %p49
        %p492 = pneg %p73
        %p493 = pneg %p70
        %p494 = pneg %p94
        %p495 = pneg %p91
        %p496 = pneg %p115
        %p497 = pneg %p112
        %p498 = pneg %p136
        %p499 = pneg %p133
        %p500 = pneg %p157
        %p501 = pneg %p154
        %p502 = pneg %p178
        %p503 = pneg %p175
        %p504 = pneg %p199
        %p505 = pneg %p196
        %p506 = pneg %p220
        %p507 = pneg %p217
        %p508 = pneg %p241
        %p509 = pneg %p238
        %p510 = pneg %p262
        %p511 = pneg %p259
        %p512 = pneg %p283
        %p513 = pneg %p280
        %p514 = pneg %p304
        %p515 = pneg %p301
        %p516 = pneg %p325
        %p517 = pneg %p322
        %p518 = pneg %p346
        %p519 = pneg %p343
        %p520 = pneg %p367
        %p521 = pneg %p364
        %p522 = pneg %p393
        %p523 = pneg %p390
        %s524 = sand.u32 %s380, 1
        %s525 = scalar_lea.sflag [#allocation4], %s524
        %s526 = sand.u32 %s380, 1
        %s527 = smul.addr %s526, 64
        %s528 = scalar_lea.vmem [#allocation5], %s527
        %s529 = smul.u32 4, %s31
        %p530 = scmp.lt.s32.totalorder %s529, 7
        %s531 = scalar_select %p530, %s529, 7
        %s532 = smul.addr %s531, 4
        %s533 = scalar_lea.vmem %s0, %s532
        %s534 = smul.u32 4, %s31
        %s535 = smul.u32 4, %s31
        %v537 = vld [vmem:[%s1] sm:$0xff]
        %v538 = vld [vmem:[%s1 + $0x8] sm:$0xff]
        %v539 = vld [vmem:[%s1 + $0x10] sm:$0xff]
        %v540 = vld [vmem:[%s1 + $0x18] sm:$0xff]
        %v541 = vld [vmem:[%s1 + $0x20] sm:$0xff]
        %v542 = vld [vmem:[%s1 + $0x28] sm:$0xff]
        %v543 = vld [vmem:[%s1 + $0x30] sm:$0xff]
        %v544 = vld [vmem:[%s1 + $0x38] sm:$0xff]
        %v545 = vld [vmem:[%s1 + $0x40] sm:$0x1]
        %v546 = vld [vmem:[%s1 + $0x48] sm:$0x1]
        %v547 = vld [vmem:[%s1 + $0x50] sm:$0x1]
        %v548 = vld [vmem:[%s1 + $0x58] sm:$0x1]
        %v549 = vld [vmem:[#allocation2] sm:$0xff]
        %v550 = vld [vmem:[%s533] sm:$0x77]
        %v551 = vld [vmem:[%s533 + $0x8] sm:$0x77]
        %v552 = vmul.f32 %v550, 0.25678906
        %v553 = vmul.f32 %v551, 0.25678906
        %v554 = vmul.f32 %v550, 0.50412893
        %v555 = vmul.f32 %v551, 0.50412893
        %v558 = vrot.slane %v554, 5
        %v559 = vrot.slane %v558, 4
        %v560 = vrot.slane %v555, 5
        %v561 = vrot.slane %v560, 4
        %v564 = vadd.f32 %v552, %v559
        %v565 = vadd.f32 %v553, %v561
        %v566 = vmul.f32 %v550, 0.09790625
        %v567 = vmul.f32 %v551, 0.09790625
        %v570 = vrot.slane %v566, 6
        %v571 = vrot.slane %v570, 4
        %v572 = vrot.slane %v567, 6
        %v573 = vrot.slane %v572, 4
        %v576 = vadd.f32 %v564, %v571
        %v577 = vadd.f32 %v565, %v573
        %v580 = vcombine.high %v550, %v550
        %v581 = vcombine.high %v551, %v551
        %v586 = vlaneseq
        %v587 = vshrl.u32 %v586, 7
        %v588 = vsub.s32 0, %v587
        %v589 = vrot.slane %v576, %v588
        %v590 = vlaneseq
        %v591 = vshrl.u32 %v590, 7
        %v592 = vsub.s32 4, %v591
        %v593 = vrot.slane %v576, %v592
        %v594 = vlaneseq
        %v595 = vshrl.u32 %v594, 7
        %v596 = vsub.s32 0, %v595
        %v597 = vrot.slane %v577, %v596
        %v598 = vlaneseq
        %v599 = vshrl.u32 %v598, 7
        %v600 = vsub.s32 4, %v599
        %v601 = vrot.slane %v577, %v600
        %vm606 = vcmask 1042432
        %v607 = vsel %vm606, %v550, %v589
        %v608 = vsel %vm606, %v580, %v593
        %v609 = vsel %vm606, %v551, %v597
        %v610 = vsel %vm606, %v581, %v601
        %611 = vrot.lane.b32.xlu0 %v607, 16
        %v612 = vpop.permute.xlu0 %611
        %613 = vrot.lane.b32.xlu0 %v608, 16
        %v614 = vpop.permute.xlu0 %613
        %615 = vrot.lane.b32.xlu0 %v609, 16
        %v616 = vpop.permute.xlu0 %615
        %617 = vrot.lane.b32.xlu0 %v610, 16
        %v618 = vpop.permute.xlu0 %617
        %v619 = vlaneseq
        %v620 = vand.u32 %v619, 127
        %vm621 = vcmp.lt.s32.totalorder %v620, 16
        %v622 = vsel %vm621, %v616, %v618
        %v623 = vsel %vm621, %v614, %v616
        %v624 = vsel %vm621, %v612, %v614
        %v625 = vsel %vm621, %v618, %v612
        %v626 = vlaneseq
        %v627 = vshrl.u32 %v626, 7
        %v628 = vsub.s32 1, %v627
        %v629 = vrot.slane %v537, %v628
        %v630 = vlaneseq
        %v631 = vshrl.u32 %v630, 7
        %v632 = vsub.s32 1, %v631
        %v633 = vrot.slane %v538, %v632
        %v634 = vlaneseq
        %v635 = vshrl.u32 %v634, 7
        %v636 = vsub.s32 1, %v635
        %v637 = vrot.slane %v539, %v636
        %v638 = vlaneseq
        %v639 = vshrl.u32 %v638, 7
        %v640 = vsub.s32 1, %v639
        %v641 = vrot.slane %v540, %v640
        %v642 = vmul.f32 %v625, %v629
        %v643 = vmul.f32 %v624, %v633
        %v644 = vmul.f32 %v623, %v637
        %v645 = vmul.f32 %v622, %v641
        %646 = vrot.lane.b32.xlu0 %v607, 112
        %v647 = vpop.permute.xlu0 %646
        %648 = vrot.lane.b32.xlu0 %v608, 112
        %v649 = vpop.permute.xlu0 %648
        %650 = vrot.lane.b32.xlu0 %v609, 112
        %v651 = vpop.permute.xlu0 %650
        %652 = vrot.lane.b32.xlu0 %v610, 112
        %v653 = vpop.permute.xlu0 %652
        %vm654 = vcmp.lt.s32.totalorder %v620, 112
        %v655 = vsel %vm654, %v651, %v653
        %v656 = vsel %vm654, %v649, %v651
        %v657 = vsel %vm654, %v647, %v649
        %v658 = vsel %vm654, %v653, %v647
        %v659 = vlaneseq
        %v660 = vshrl.u32 %v659, 7
        %v661 = vsub.s32 7, %v660
        %v662 = vrot.slane %v537, %v661
        %v663 = vlaneseq
        %v664 = vshrl.u32 %v663, 7
        %v665 = vsub.s32 7, %v664
        %v666 = vrot.slane %v538, %v665
        %v667 = vlaneseq
        %v668 = vshrl.u32 %v667, 7
        %v669 = vsub.s32 7, %v668
        %v670 = vrot.slane %v539, %v669
        %v671 = vlaneseq
        %v672 = vshrl.u32 %v671, 7
        %v673 = vsub.s32 7, %v672
        %v674 = vrot.slane %v540, %v673
        %v675 = vmul.f32 %v657, %v662
        %v676 = vmul.f32 %v656, %v666
        %v677 = vmul.f32 %v655, %v670
        %v678 = vmul.f32 %v658, %v674
        %679 = vrot.lane.b32.xlu0 %v607, 1
        %v680 = vpop.permute.xlu0 %679
        %681 = vrot.lane.b32.xlu0 %v608, 1
        %v682 = vpop.permute.xlu0 %681
        %683 = vrot.lane.b32.xlu0 %v609, 1
        %v684 = vpop.permute.xlu0 %683
        %685 = vrot.lane.b32.xlu0 %v610, 1
        %v686 = vpop.permute.xlu0 %685
        %vm687 = vcmp.lt.s32.totalorder %v620, 1
        %v688 = vsel %vm687, %v684, %v686
        %v689 = vsel %vm687, %v682, %v684
        %v690 = vsel %vm687, %v680, %v682
        %v691 = vsel %vm687, %v686, %v680
        %v692 = vlaneseq
        %v693 = vshrl.u32 %v692, 7
        %v694 = vsub.s32 3, %v693
        %v695 = vrot.slane %v537, %v694
        %v696 = vlaneseq
        %v697 = vshrl.u32 %v696, 7
        %v698 = vsub.s32 3, %v697
        %v699 = vrot.slane %v538, %v698
        %v700 = vlaneseq
        %v701 = vshrl.u32 %v700, 7
        %v702 = vsub.s32 3, %v701
        %v703 = vrot.slane %v539, %v702
        %v704 = vlaneseq
        %v705 = vshrl.u32 %v704, 7
        %v706 = vsub.s32 3, %v705
        %v707 = vrot.slane %v540, %v706
        %v708 = vmul.f32 %v691, %v695
        %v709 = vmul.f32 %v690, %v699
        %v710 = vmul.f32 %v689, %v703
        %v711 = vmul.f32 %v688, %v707
        %712 = vrot.lane.b32.xlu0 %v607, 127
        %v713 = vpop.permute.xlu0 %712
        %714 = vrot.lane.b32.xlu0 %v608, 127
        %v715 = vpop.permute.xlu0 %714
        %716 = vrot.lane.b32.xlu0 %v609, 127
        %v717 = vpop.permute.xlu0 %716
        %718 = vrot.lane.b32.xlu0 %v610, 127
        %v719 = vpop.permute.xlu0 %718
        %vm720 = vcmp.lt.s32.totalorder %v620, 127
        %v721 = vsel %vm720, %v717, %v719
        %v722 = vsel %vm720, %v715, %v717
        %v723 = vsel %vm720, %v713, %v715
        %v724 = vsel %vm720, %v719, %v713
        %v725 = vlaneseq
        %v726 = vshrl.u32 %v725, 7
        %v727 = vsub.s32 5, %v726
        %v728 = vrot.slane %v537, %v727
        %v729 = vlaneseq
        %v730 = vshrl.u32 %v729, 7
        %v731 = vsub.s32 5, %v730
        %v732 = vrot.slane %v538, %v731
        %v733 = vlaneseq
        %v734 = vshrl.u32 %v733, 7
        %v735 = vsub.s32 5, %v734
        %v736 = vrot.slane %v539, %v735
        %v737 = vlaneseq
        %v738 = vshrl.u32 %v737, 7
        %v739 = vsub.s32 5, %v738
        %v740 = vrot.slane %v540, %v739
        %v741 = vmul.f32 %v723, %v728
        %v742 = vmul.f32 %v722, %v732
        %v743 = vmul.f32 %v721, %v736
        %v744 = vmul.f32 %v724, %v740
        %v745 = vsub.f32 %v675, %v642
        %v746 = vsub.f32 %v676, %v643
        %v747 = vsub.f32 %v677, %v644
        %v748 = vsub.f32 %v678, %v645
        %v749 = vsub.f32 %v741, %v708
        %v750 = vsub.f32 %v742, %v709
        %v751 = vsub.f32 %v743, %v710
        %v752 = vsub.f32 %v744, %v711
        %v753 = vmul.f32 %v745, %v745
        %v754 = vmul.f32 %v746, %v746
        %v755 = vmul.f32 %v747, %v747
        %v756 = vmul.f32 %v748, %v748
        %v757 = vmul.f32 %v749, %v749
        %v758 = vmul.f32 %v750, %v750
        %v759 = vmul.f32 %v751, %v751
        %v760 = vmul.f32 %v752, %v752
        %v761 = vadd.f32 %v753, %v757
        %v762 = vadd.f32 %v754, %v758
        %v763 = vadd.f32 %v755, %v759
        %v764 = vadd.f32 %v756, %v760
        %v765 = vadd.f32 %v761, 1e-06
        %v766 = vadd.f32 %v762, 1e-06
        %v767 = vadd.f32 %v763, 1e-06
        %v768 = vadd.f32 %v764, 1e-06
        %v769 = vrsqrt.pop %v765
        %v770 = vmul.f32 %v765, %v769
        %vm771 = vcmp.eq.f32.partialorder %v765, inf
        %v772 = vsel %vm771, %v765, %v770
        %vm773 = vcmp.eq.f32.partialorder %v765, 0.0
        %v774 = vand.u32 %v765, 2147483648
        %v775 = vsel %vm773, %v774, %v772
        %v776 = vrsqrt.pop %v766
        %v777 = vmul.f32 %v766, %v776
        %vm778 = vcmp.eq.f32.partialorder %v766, inf
        %v779 = vsel %vm778, %v766, %v777
        %vm780 = vcmp.eq.f32.partialorder %v766, 0.0
        %v781 = vand.u32 %v766, 2147483648
        %v782 = vsel %vm780, %v781, %v779
        %v783 = vrsqrt.pop %v767
        %v784 = vmul.f32 %v767, %v783
        %vm785 = vcmp.eq.f32.partialorder %v767, inf
        %v786 = vsel %vm785, %v767, %v784
        %vm787 = vcmp.eq.f32.partialorder %v767, 0.0
        %v788 = vand.u32 %v767, 2147483648
        %v789 = vsel %vm787, %v788, %v786
        %v790 = vrsqrt.pop %v768
        %v791 = vmul.f32 %v768, %v790
        %vm792 = vcmp.eq.f32.partialorder %v768, inf
        %v793 = vsel %vm792, %v768, %v791
        %vm794 = vcmp.eq.f32.partialorder %v768, 0.0
        %v795 = vand.u32 %v768, 2147483648
        %v796 = vsel %vm794, %v795, %v793
        %v798 = vlaneseq
        %v799 = vshrl.u32 %v798, 7
        %v800 = vsub.s32 0, %v799
        %v801 = vrot.slane %v549, %v800
        %v802 = vlaneseq
        %v803 = vshrl.u32 %v802, 7
        %v804 = vsub.s32 2, %v803
        %v805 = vrot.slane %v549, %v804
        %v806 = vlaneseq
        %v807 = vshrl.u32 %v806, 7
        %v808 = vsub.s32 4, %v807
        %v809 = vrot.slane %v549, %v808
        %v810 = vlaneseq
        %v811 = vshrl.u32 %v810, 7
        %v812 = vsub.s32 6, %v811
        %v813 = vrot.slane %v549, %v812
        %v818 = vlaneseq
        %v819 = vshrl.u32 %v818, 7
        %v820 = vsub.s32 0, %v819
        %v821 = vrot.slane %v801, %v820
        %v822 = vlaneseq
        %v823 = vshrl.u32 %v822, 7
        %v824 = vsub.s32 0, %v823
        %v825 = vrot.slane %v805, %v824
        %v826 = vlaneseq
        %v827 = vshrl.u32 %v826, 7
        %v828 = vsub.s32 0, %v827
        %v829 = vrot.slane %v809, %v828
        %v830 = vlaneseq
        %v831 = vshrl.u32 %v830, 7
        %v832 = vsub.s32 0, %v831
        %v833 = vrot.slane %v813, %v832
        %v834 = vmul.f32 %v775, %v821
        %v835 = vmul.f32 %v782, %v825
        %v836 = vmul.f32 %v789, %v829
        %v837 = vmul.f32 %v796, %v833
        %v838 = vsel %vm606, %v834, 0.0
        %v839 = vsel %vm606, %v835, 0.0
        %v840 = vadd.f32 %v838, %v839
        %v841 = vsel %vm606, %v836, 0.0
        %v842 = vadd.f32 %v840, %v841
        %v843 = vsel %vm606, %v837, 0.0
        %v844 = vadd.f32 %v842, %v843
        %845 = vadd.xlane.f32.xlu0 %v844
        %v846 = vpop.xlane.xlu0 %845
        %v847 = vmul.f32 %v846, 0.00390625
        %v849 = vrot.slane %v847, 1
        %vm851 = vcmp.le.f32.partialorder %v847, %v849
        %v852 = vrot.slane %v847, 2
        %vm854 = vcmp.le.f32.partialorder %v847, %v852
        %vm855 = vmand %vm851, %vm854
        %vm856 = vmxor %vm855, 1
        %v857 = vsel %vm851, 1, 0
        %v858 = vrot.slane %v857, 1
        %vm859 = vcmp.ne.s32.totalorder %v858, 0
        %vm860 = vmand %vm856, %vm859
        %v861 = vsel %vm855, 1, 0
        %v862 = vcvt.s32.f32 %v861
        %v863 = vsel %vm860, 1, 0
        %v864 = vcvt.s32.f32 %v863
        %866 = vset.pattern.permute.xlu0 0
        %867 = vperm.xlu0 %866, %v862
        %v868 = vpop.permute.xlu0 %867
        %v870 = vmul.f32 %v868, %v801
        %v871 = vmul.f32 %v868, %v805
        %v872 = vmul.f32 %v868, %v809
        %v873 = vmul.f32 %v868, %v813
        %v874 = vadd.f32 %v870, 0.0
        %v875 = vadd.f32 %v871, 0.0
        %v876 = vadd.f32 %v872, 0.0
        %v877 = vadd.f32 %v873, 0.0
        %879 = vset.pattern.permute.xlu0 0
        %880 = vperm.xlu0 %879, %v864
        %v881 = vpop.permute.xlu0 %880
        %v883 = vmul.f32 %v881, %v801
        %v884 = vmul.f32 %v881, %v805
        %v885 = vmul.f32 %v881, %v809
        %v886 = vmul.f32 %v881, %v813
        %v887 = vadd.f32 %v883, 0.0
        %v888 = vadd.f32 %v884, 0.0
        %v889 = vadd.f32 %v885, 0.0
        %v890 = vadd.f32 %v886, 0.0
        %v891 = vlaneseq
        %v892 = vshrl.u32 %v891, 7
        %v893 = vsub.s32 1, %v892
        %v894 = vrot.slane %v549, %v893
        %v895 = vlaneseq
        %v896 = vshrl.u32 %v895, 7
        %v897 = vsub.s32 3, %v896
        %v898 = vrot.slane %v549, %v897
        %v899 = vlaneseq
        %v900 = vshrl.u32 %v899, 7
        %v901 = vsub.s32 5, %v900
        %v902 = vrot.slane %v549, %v901
        %v903 = vlaneseq
        %v904 = vshrl.u32 %v903, 7
        %v905 = vsub.s32 7, %v904
        %v906 = vrot.slane %v549, %v905
        %v911 = vlaneseq
        %v912 = vshrl.u32 %v911, 7
        %v913 = vsub.s32 1, %v912
        %v914 = vrot.slane %v894, %v913
        %v915 = vlaneseq
        %v916 = vshrl.u32 %v915, 7
        %v917 = vsub.s32 1, %v916
        %v918 = vrot.slane %v898, %v917
        %v919 = vlaneseq
        %v920 = vshrl.u32 %v919, 7
        %v921 = vsub.s32 1, %v920
        %v922 = vrot.slane %v902, %v921
        %v923 = vlaneseq
        %v924 = vshrl.u32 %v923, 7
        %v925 = vsub.s32 1, %v924
        %v926 = vrot.slane %v906, %v925
        %v927 = vmul.f32 %v775, %v914
        %v928 = vmul.f32 %v782, %v918
        %v929 = vmul.f32 %v789, %v922
        %v930 = vmul.f32 %v796, %v926
        %v931 = vsel %vm606, %v927, 0.0
        %v932 = vsel %vm606, %v928, 0.0
        %v933 = vadd.f32 %v931, %v932
        %v934 = vsel %vm606, %v929, 0.0
        %v935 = vadd.f32 %v933, %v934
        %v936 = vsel %vm606, %v930, 0.0
        %v937 = vadd.f32 %v935, %v936
        %938 = vadd.xlane.f32.xlu0 %v937
        %v939 = vpop.xlane.xlu0 %938
        %v940 = vmul.f32 %v939, 0.00390625
        %v942 = vrot.slane %v940, 1
        %vm944 = vcmp.le.f32.partialorder %v940, %v942
        %v945 = vrot.slane %v940, 2
        %vm947 = vcmp.le.f32.partialorder %v940, %v945
        %vm948 = vmand %vm944, %vm947
        %vm949 = vmxor %vm948, 1
        %v950 = vsel %vm944, 1, 0
        %v951 = vrot.slane %v950, 1
        %vm952 = vcmp.ne.s32.totalorder %v951, 0
        %vm953 = vmand %vm949, %vm952
        %v954 = vsel %vm948, 1, 0
        %v955 = vcvt.s32.f32 %v954
        %v956 = vsel %vm953, 1, 0
        %v957 = vcvt.s32.f32 %v956
        %959 = vset.pattern.permute.xlu0 0
        %960 = vperm.xlu0 %959, %v955
        %v961 = vpop.permute.xlu0 %960
        %v963 = vmul.f32 %v961, %v894
        %v964 = vmul.f32 %v961, %v898
        %v965 = vmul.f32 %v961, %v902
        %v966 = vmul.f32 %v961, %v906
        %v967 = vadd.f32 %v874, %v963
        %v968 = vadd.f32 %v875, %v964
        %v969 = vadd.f32 %v876, %v965
        %v970 = vadd.f32 %v877, %v966
        %972 = vset.pattern.permute.xlu0 0
        %973 = vperm.xlu0 %972, %v957
        %v974 = vpop.permute.xlu0 %973
        %v976 = vmul.f32 %v974, %v894
        %v977 = vmul.f32 %v974, %v898
        %v978 = vmul.f32 %v974, %v902
        %v979 = vmul.f32 %v974, %v906
        %v980 = vadd.f32 %v887, %v976
        %v981 = vadd.f32 %v888, %v977
        %v982 = vadd.f32 %v889, %v978
        %v983 = vadd.f32 %v890, %v979
        %v984 = vsub.f32 1.0, %v967
        %v985 = vsub.f32 1.0, %v968
        %v986 = vsub.f32 1.0, %v969
        %v987 = vsub.f32 1.0, %v970
        %v988 = vsub.f32 %v984, %v980
        %v989 = vsub.f32 %v985, %v981
        %v990 = vsub.f32 %v986, %v982
        %v991 = vsub.f32 %v987, %v983
        %v992 = vlaneseq
        %v993 = vshrl.u32 %v992, 7
        %v994 = vsub.s32 0, %v993
        %v995 = vrot.slane %v550, %v994
        %v996 = vlaneseq
        %v997 = vshrl.u32 %v996, 7
        %v998 = vsub.s32 4, %v997
        %v999 = vrot.slane %v550, %v998
        %v1000 = vlaneseq
        %v1001 = vshrl.u32 %v1000, 7
        %v1002 = vsub.s32 0, %v1001
        %v1003 = vrot.slane %v551, %v1002
        %v1004 = vlaneseq
        %v1005 = vshrl.u32 %v1004, 7
        %v1006 = vsub.s32 4, %v1005
        %v1007 = vrot.slane %v551, %v1006
        %v1012 = vmul.f32 %v967, %v995
        %v1013 = vmul.f32 %v968, %v999
        %v1014 = vmul.f32 %v969, %v1003
        %v1015 = vmul.f32 %v970, %v1007
        %v1016 = vlaneseq
        %v1017 = vshrl.u32 %v1016, 7
        %v1018 = vsub.s32 1, %v1017
        %v1019 = vrot.slane %v550, %v1018
        %v1020 = vlaneseq
        %v1021 = vshrl.u32 %v1020, 7
        %v1022 = vsub.s32 5, %v1021
        %v1023 = vrot.slane %v550, %v1022
        %v1024 = vlaneseq
        %v1025 = vshrl.u32 %v1024, 7
        %v1026 = vsub.s32 1, %v1025
        %v1027 = vrot.slane %v551, %v1026
        %v1028 = vlaneseq
        %v1029 = vshrl.u32 %v1028, 7
        %v1030 = vsub.s32 5, %v1029
        %v1031 = vrot.slane %v551, %v1030
        %v1036 = vmul.f32 %v980, %v1019
        %v1037 = vmul.f32 %v981, %v1023
        %v1038 = vmul.f32 %v982, %v1027
        %v1039 = vmul.f32 %v983, %v1031
        %v1040 = vadd.f32 %v1012, %v1036
        %v1041 = vadd.f32 %v1013, %v1037
        %v1042 = vadd.f32 %v1014, %v1038
        %v1043 = vadd.f32 %v1015, %v1039
        %v1044 = vlaneseq
        %v1045 = vshrl.u32 %v1044, 7
        %v1046 = vsub.s32 2, %v1045
        %v1047 = vrot.slane %v550, %v1046
        %v1048 = vlaneseq
        %v1049 = vshrl.u32 %v1048, 7
        %v1050 = vsub.s32 6, %v1049
        %v1051 = vrot.slane %v550, %v1050
        %v1052 = vlaneseq
        %v1053 = vshrl.u32 %v1052, 7
        %v1054 = vsub.s32 2, %v1053
        %v1055 = vrot.slane %v551, %v1054
        %v1056 = vlaneseq
        %v1057 = vshrl.u32 %v1056, 7
        %v1058 = vsub.s32 6, %v1057
        %v1059 = vrot.slane %v551, %v1058
        %v1064 = vmul.f32 %v988, %v1047
        %v1065 = vmul.f32 %v989, %v1051
        %v1066 = vmul.f32 %v990, %v1055
        %v1067 = vmul.f32 %v991, %v1059
        %v1068 = vadd.f32 %v1040, %v1064
        %v1069 = vadd.f32 %v1041, %v1065
        %v1070 = vadd.f32 %v1042, %v1066
        %v1071 = vadd.f32 %v1043, %v1067
        %v1072 = vmul.f32 %v967, %v1019
        %v1073 = vmul.f32 %v968, %v1023
        %v1074 = vmul.f32 %v969, %v1027
        %v1075 = vmul.f32 %v970, %v1031
        %v1076 = vmul.f32 %v984, %v995
        %v1077 = vmul.f32 %v985, %v999
        %v1078 = vmul.f32 %v986, %v1003
        %v1079 = vmul.f32 %v987, %v1007
        %v1080 = vadd.f32 %v1072, %v1076
        %v1081 = vadd.f32 %v1073, %v1077
        %v1082 = vadd.f32 %v1074, %v1078
        %v1083 = vadd.f32 %v1075, %v1079
        %v1084 = vmul.f32 %v988, %v1019
        %v1085 = vmul.f32 %v989, %v1023
        %v1086 = vmul.f32 %v990, %v1027
        %v1087 = vmul.f32 %v991, %v1031
        %v1088 = vsub.f32 1.0, %v988
        %v1089 = vsub.f32 1.0, %v989
        %v1090 = vsub.f32 1.0, %v990
        %v1091 = vsub.f32 1.0, %v991
        %v1092 = vmul.f32 %v1088, %v1047
        %v1093 = vmul.f32 %v1089, %v1051
        %v1094 = vmul.f32 %v1090, %v1055
        %v1095 = vmul.f32 %v1091, %v1059
        %v1096 = vadd.f32 %v1084, %v1092
        %v1097 = vadd.f32 %v1085, %v1093
        %v1098 = vadd.f32 %v1086, %v1094
        %v1099 = vadd.f32 %v1087, %v1095
        %v1100 = vld [vmem:[%s3] sm:$0xff]
        %v1101 = vld [vmem:[%s3 + $0x8] sm:$0xff]
        %v1102 = vld [vmem:[%s4] sm:$0xff]
        %v1103 = vld [vmem:[%s4 + $0x8] sm:$0xff]
        %1105 = vset.pattern.permute.xlu0 0
        %1106 = vperm.xlu0 %1105, %v1100
        %v1107 = vpop.permute.xlu0 %1106
        %1110 = vset.pattern.permute.xlu0 0
        %1111 = vperm.xlu0 %1110, %v1101
        %v1112 = vpop.permute.xlu0 %1111
        %v1114 = vlaneseq
        %v1115 = vshrl.u32 %v1114, 7
        %v1116 = vsub.s32 3, %v1115
        %v1117 = vrot.slane %v775, %v1116
        %v1118 = vlaneseq
        %v1119 = vshrl.u32 %v1118, 7
        %v1120 = vsub.s32 3, %v1119
        %v1121 = vrot.slane %v782, %v1120
        %v1122 = vlaneseq
        %v1123 = vshrl.u32 %v1122, 7
        %v1124 = vsub.s32 3, %v1123
        %v1125 = vrot.slane %v789, %v1124
        %v1126 = vlaneseq
        %v1127 = vshrl.u32 %v1126, 7
        %v1128 = vsub.s32 3, %v1127
        %v1129 = vrot.slane %v796, %v1128
        %v1130 = vmul.f32 %v1107, %v1117
        %v1131 = vmul.f32 %v1107, %v1121
        %v1132 = vmul.f32 %v1107, %v1125
        %v1133 = vmul.f32 %v1107, %v1129
        %v1134 = vmul.f32 %v1112, %v1117
        %v1135 = vmul.f32 %v1112, %v1121
        %v1136 = vmul.f32 %v1112, %v1125
        %v1137 = vmul.f32 %v1112, %v1129
        %1138 = vset.pattern.permute.xlu0 1
        %1139 = vperm.xlu0 %1138, %v1100
        %v1140 = vpop.permute.xlu0 %1139
        %1142 = vset.pattern.permute.xlu0 1
        %1143 = vperm.xlu0 %1142, %v1101
        %v1144 = vpop.permute.xlu0 %1143
        %v1146 = vlaneseq
        %v1147 = vshrl.u32 %v1146, 7
        %v1148 = vsub.s32 0, %v1147
        %v1149 = vrot.slane %v1068, %v1148
        %v1150 = vlaneseq
        %v1151 = vshrl.u32 %v1150, 7
        %v1152 = vsub.s32 0, %v1151
        %v1153 = vrot.slane %v1069, %v1152
        %v1154 = vlaneseq
        %v1155 = vshrl.u32 %v1154, 7
        %v1156 = vsub.s32 0, %v1155
        %v1157 = vrot.slane %v1070, %v1156
        %v1158 = vlaneseq
        %v1159 = vshrl.u32 %v1158, 7
        %v1160 = vsub.s32 0, %v1159
        %v1161 = vrot.slane %v1071, %v1160
        %v1162 = vmul.f32 %v1140, %v1149
        %v1163 = vmul.f32 %v1140, %v1153
        %v1164 = vmul.f32 %v1140, %v1157
        %v1165 = vmul.f32 %v1140, %v1161
        %v1166 = vmul.f32 %v1144, %v1149
        %v1167 = vmul.f32 %v1144, %v1153
        %v1168 = vmul.f32 %v1144, %v1157
        %v1169 = vmul.f32 %v1144, %v1161
        %v1170 = vadd.f32 %v1130, %v1162
        %v1171 = vadd.f32 %v1131, %v1163
        %v1172 = vadd.f32 %v1132, %v1164
        %v1173 = vadd.f32 %v1133, %v1165
        %v1174 = vadd.f32 %v1134, %v1166
        %v1175 = vadd.f32 %v1135, %v1167
        %v1176 = vadd.f32 %v1136, %v1168
        %v1177 = vadd.f32 %v1137, %v1169
        %1179 = vset.pattern.permute.xlu0 0
        %1180 = vperm.xlu0 %1179, %v1102
        %v1181 = vpop.permute.xlu0 %1180
        %1184 = vset.pattern.permute.xlu0 0
        %1185 = vperm.xlu0 %1184, %v1103
        %v1186 = vpop.permute.xlu0 %1185
        %v1188 = vlaneseq
        %v1189 = vshrl.u32 %v1188, 7
        %v1190 = vsub.s32 0, %v1189
        %v1191 = vrot.slane %v1080, %v1190
        %v1192 = vlaneseq
        %v1193 = vshrl.u32 %v1192, 7
        %v1194 = vsub.s32 0, %v1193
        %v1195 = vrot.slane %v1081, %v1194
        %v1196 = vlaneseq
        %v1197 = vshrl.u32 %v1196, 7
        %v1198 = vsub.s32 0, %v1197
        %v1199 = vrot.slane %v1082, %v1198
        %v1200 = vlaneseq
        %v1201 = vshrl.u32 %v1200, 7
        %v1202 = vsub.s32 0, %v1201
        %v1203 = vrot.slane %v1083, %v1202
        %v1204 = vmul.f32 %v1181, %v1191
        %v1205 = vmul.f32 %v1181, %v1195
        %v1206 = vmul.f32 %v1181, %v1199
        %v1207 = vmul.f32 %v1181, %v1203
        %v1208 = vmul.f32 %v1186, %v1191
        %v1209 = vmul.f32 %v1186, %v1195
        %v1210 = vmul.f32 %v1186, %v1199
        %v1211 = vmul.f32 %v1186, %v1203
        %1212 = vset.pattern.permute.xlu0 1
        %1213 = vperm.xlu0 %1212, %v1102
        %v1214 = vpop.permute.xlu0 %1213
        %1216 = vset.pattern.permute.xlu0 1
        %1217 = vperm.xlu0 %1216, %v1103
        %v1218 = vpop.permute.xlu0 %1217
        %v1220 = vlaneseq
        %v1221 = vshrl.u32 %v1220, 7
        %v1222 = vsub.s32 0, %v1221
        %v1223 = vrot.slane %v1096, %v1222
        %v1224 = vlaneseq
        %v1225 = vshrl.u32 %v1224, 7
        %v1226 = vsub.s32 0, %v1225
        %v1227 = vrot.slane %v1097, %v1226
        %v1228 = vlaneseq
        %v1229 = vshrl.u32 %v1228, 7
        %v1230 = vsub.s32 0, %v1229
        %v1231 = vrot.slane %v1098, %v1230
        %v1232 = vlaneseq
        %v1233 = vshrl.u32 %v1232, 7
        %v1234 = vsub.s32 0, %v1233
        %v1235 = vrot.slane %v1099, %v1234
        %v1236 = vmul.f32 %v1214, %v1223
        %v1237 = vmul.f32 %v1214, %v1227
        %v1238 = vmul.f32 %v1214, %v1231
        %v1239 = vmul.f32 %v1214, %v1235
        %v1240 = vmul.f32 %v1218, %v1223
        %v1241 = vmul.f32 %v1218, %v1227
        %v1242 = vmul.f32 %v1218, %v1231
        %v1243 = vmul.f32 %v1218, %v1235
        %v1244 = vadd.f32 %v1204, %v1236
        %v1245 = vadd.f32 %v1205, %v1237
        %v1246 = vadd.f32 %v1206, %v1238
        %v1247 = vadd.f32 %v1207, %v1239
        %v1248 = vadd.f32 %v1208, %v1240
        %v1249 = vadd.f32 %v1209, %v1241
        %v1250 = vadd.f32 %v1210, %v1242
        %v1251 = vadd.f32 %v1211, %v1243
        %1252 = vrot.lane.b32.xlu0 %v550, 17
        %v1253 = vpop.permute.xlu0 %1252
        %1254 = vrot.lane.b32.xlu0 %v580, 17
        %v1255 = vpop.permute.xlu0 %1254
        %1256 = vrot.lane.b32.xlu0 %v551, 17
        %v1257 = vpop.permute.xlu0 %1256
        %1258 = vrot.lane.b32.xlu0 %v581, 17
        %v1259 = vpop.permute.xlu0 %1258
        %vm1260 = vcmp.lt.s32.totalorder %v620, 17
        %v1261 = vsel %vm1260, %v1257, %v1259
        %v1262 = vsel %vm1260, %v1255, %v1257
        %v1263 = vsel %vm1260, %v1253, %v1255
        %v1264 = vsel %vm1260, %v1259, %v1253
        %v1265 = vlaneseq
        %v1266 = vshrl.u32 %v1265, 7
        %v1267 = vsub.s32 0, %v1266
        %v1268 = vrot.slane %v537, %v1267
        %v1269 = vlaneseq
        %v1270 = vshrl.u32 %v1269, 7
        %v1271 = vsub.s32 0, %v1270
        %v1272 = vrot.slane %v538, %v1271
        %v1273 = vlaneseq
        %v1274 = vshrl.u32 %v1273, 7
        %v1275 = vsub.s32 0, %v1274
        %v1276 = vrot.slane %v539, %v1275
        %v1277 = vlaneseq
        %v1278 = vshrl.u32 %v1277, 7
        %v1279 = vsub.s32 0, %v1278
        %v1280 = vrot.slane %v540, %v1279
        %v1281 = vmul.f32 %v1264, %v1268
        %v1282 = vmul.f32 %v1263, %v1272
        %v1283 = vmul.f32 %v1262, %v1276
        %v1284 = vmul.f32 %v1261, %v1280
        %v1285 = vpack.c.bf16 %v1281, %v1281
        %v1286 = vpack.c.bf16 %v1282, %v1282
        %v1287 = vpack.c.bf16 %v1283, %v1283
        %v1288 = vpack.c.bf16 %v1284, %v1284
        %v1289 = vpack.c.bf16 %v642, %v642
        %v1290 = vpack.c.bf16 %v643, %v643
        %v1291 = vpack.c.bf16 %v644, %v644
        %v1292 = vpack.c.bf16 %v645, %v645
        %1293 = vrot.lane.b32.xlu0 %v550, 15
        %v1294 = vpop.permute.xlu0 %1293
        %1295 = vrot.lane.b32.xlu0 %v580, 15
        %v1296 = vpop.permute.xlu0 %1295
        %1297 = vrot.lane.b32.xlu0 %v551, 15
        %v1298 = vpop.permute.xlu0 %1297
        %1299 = vrot.lane.b32.xlu0 %v581, 15
        %v1300 = vpop.permute.xlu0 %1299
        %vm1301 = vcmp.lt.s32.totalorder %v620, 15
        %v1302 = vsel %vm1301, %v1298, %v1300
        %v1303 = vsel %vm1301, %v1296, %v1298
        %v1304 = vsel %vm1301, %v1294, %v1296
        %v1305 = vsel %vm1301, %v1300, %v1294
        %v1306 = vlaneseq
        %v1307 = vshrl.u32 %v1306, 7
        %v1308 = vsub.s32 2, %v1307
        %v1309 = vrot.slane %v537, %v1308
        %v1310 = vlaneseq
        %v1311 = vshrl.u32 %v1310, 7
        %v1312 = vsub.s32 2, %v1311
        %v1313 = vrot.slane %v538, %v1312
        %v1314 = vlaneseq
        %v1315 = vshrl.u32 %v1314, 7
        %v1316 = vsub.s32 2, %v1315
        %v1317 = vrot.slane %v539, %v1316
        %v1318 = vlaneseq
        %v1319 = vshrl.u32 %v1318, 7
        %v1320 = vsub.s32 2, %v1319
        %v1321 = vrot.slane %v540, %v1320
        %v1322 = vmul.f32 %v1305, %v1309
        %v1323 = vmul.f32 %v1304, %v1313
        %v1324 = vmul.f32 %v1303, %v1317
        %v1325 = vmul.f32 %v1302, %v1321
        %v1326 = vpack.c.bf16 %v1322, %v1322
        %v1327 = vpack.c.bf16 %v1323, %v1323
        %v1328 = vpack.c.bf16 %v1324, %v1324
        %v1329 = vpack.c.bf16 %v1325, %v1325
        %v1330 = vpack.c.bf16 %v708, %v708
        %v1331 = vpack.c.bf16 %v709, %v709
        %v1332 = vpack.c.bf16 %v710, %v710
        %v1333 = vpack.c.bf16 %v711, %v711
        %v1334 = vpack.c.bf16 %v550, %v550
        %v1335 = vpack.c.bf16 %v580, %v580
        %v1336 = vpack.c.bf16 %v551, %v551
        %v1337 = vpack.c.bf16 %v581, %v581
        %v1338 = vpack.c.bf16 %v741, %v741
        %v1339 = vpack.c.bf16 %v742, %v742
        %v1340 = vpack.c.bf16 %v743, %v743
        %v1341 = vpack.c.bf16 %v744, %v744
        %1342 = vrot.lane.b32.xlu0 %v550, 113
        %v1343 = vpop.permute.xlu0 %1342
        %1344 = vrot.lane.b32.xlu0 %v580, 113
        %v1345 = vpop.permute.xlu0 %1344
        %1346 = vrot.lane.b32.xlu0 %v551, 113
        %v1347 = vpop.permute.xlu0 %1346
        %1348 = vrot.lane.b32.xlu0 %v581, 113
        %v1349 = vpop.permute.xlu0 %1348
        %vm1350 = vcmp.lt.s32.totalorder %v620, 113
        %v1351 = vsel %vm1350, %v1347, %v1349
        %v1352 = vsel %vm1350, %v1345, %v1347
        %v1353 = vsel %vm1350, %v1343, %v1345
        %v1354 = vsel %vm1350, %v1349, %v1343
        %v1355 = vlaneseq
        %v1356 = vshrl.u32 %v1355, 7
        %v1357 = vsub.s32 6, %v1356
        %v1358 = vrot.slane %v537, %v1357
        %v1359 = vlaneseq
        %v1360 = vshrl.u32 %v1359, 7
        %v1361 = vsub.s32 6, %v1360
        %v1362 = vrot.slane %v538, %v1361
        %v1363 = vlaneseq
        %v1364 = vshrl.u32 %v1363, 7
        %v1365 = vsub.s32 6, %v1364
        %v1366 = vrot.slane %v539, %v1365
        %v1367 = vlaneseq
        %v1368 = vshrl.u32 %v1367, 7
        %v1369 = vsub.s32 6, %v1368
        %v1370 = vrot.slane %v540, %v1369
        %v1371 = vmul.f32 %v1353, %v1358
        %v1372 = vmul.f32 %v1352, %v1362
        %v1373 = vmul.f32 %v1351, %v1366
        %v1374 = vmul.f32 %v1354, %v1370
        %v1375 = vpack.c.bf16 %v1371, %v1371
        %v1376 = vpack.c.bf16 %v1372, %v1372
        %v1377 = vpack.c.bf16 %v1373, %v1373
        %v1378 = vpack.c.bf16 %v1374, %v1374
        %v1379 = vpack.c.bf16 %v675, %v675
        %v1380 = vpack.c.bf16 %v676, %v676
        %v1381 = vpack.c.bf16 %v677, %v677
        %v1382 = vpack.c.bf16 %v678, %v678
        %1383 = vrot.lane.b32.xlu0 %v550, 111
        %v1384 = vpop.permute.xlu0 %1383
        %1385 = vrot.lane.b32.xlu0 %v580, 111
        %v1386 = vpop.permute.xlu0 %1385
        %1387 = vrot.lane.b32.xlu0 %v551, 111
        %v1388 = vpop.permute.xlu0 %1387
        %1389 = vrot.lane.b32.xlu0 %v581, 111
        %v1390 = vpop.permute.xlu0 %1389
        %vm1391 = vcmp.lt.s32.totalorder %v620, 111
        %v1392 = vsel %vm1391, %v1388, %v1390
        %v1393 = vsel %vm1391, %v1386, %v1388
        %v1394 = vsel %vm1391, %v1384, %v1386
        %v1395 = vsel %vm1391, %v1390, %v1384
        %v1396 = vlaneseq
        %v1397 = vshrl.u32 %v1396, 7
        %v1398 = vsub.s32 0, %v1397
        %v1399 = vrot.slane %v541, %v1398
        %v1400 = vlaneseq
        %v1401 = vshrl.u32 %v1400, 7
        %v1402 = vsub.s32 0, %v1401
        %v1403 = vrot.slane %v542, %v1402
        %v1404 = vlaneseq
        %v1405 = vshrl.u32 %v1404, 7
        %v1406 = vsub.s32 0, %v1405
        %v1407 = vrot.slane %v543, %v1406
        %v1408 = vlaneseq
        %v1409 = vshrl.u32 %v1408, 7
        %v1410 = vsub.s32 0, %v1409
        %v1411 = vrot.slane %v544, %v1410
        %v1412 = vmul.f32 %v1394, %v1399
        %v1413 = vmul.f32 %v1393, %v1403
        %v1414 = vmul.f32 %v1392, %v1407
        %v1415 = vmul.f32 %v1395, %v1411
        %v1416 = vpack.c.bf16 %v1412, %v1412
        %v1417 = vpack.c.bf16 %v1413, %v1413
        %v1418 = vpack.c.bf16 %v1414, %v1414
        %v1419 = vpack.c.bf16 %v1415, %v1415
        %v1420 = vld [vmem:[%s5] sm:$0xf]
        %v1421 = vld [vmem:[%s5 + $0x4] sm:$0xf]
        %v1423 = vshrl.u32 %v1289, 16
        %v1425 = vrot.slane %v1423, 6
        %v1426 = vshll.u32 %v1289, 16
        %v1428 = vrot.slane %v1426, 7
        %v1429 = vor.u32 %v1425, %v1428
        %v1431 = vshrl.u32 %v1290, 16
        %v1433 = vrot.slane %v1431, 6
        %v1434 = vshll.u32 %v1290, 16
        %v1436 = vrot.slane %v1434, 7
        %v1437 = vor.u32 %v1433, %v1436
        %v1439 = vshrl.u32 %v1291, 16
        %v1441 = vrot.slane %v1439, 6
        %v1442 = vshll.u32 %v1291, 16
        %v1444 = vrot.slane %v1442, 7
        %v1445 = vor.u32 %v1441, %v1444
        %v1447 = vshrl.u32 %v1292, 16
        %v1449 = vrot.slane %v1447, 6
        %v1450 = vshll.u32 %v1292, 16
        %v1452 = vrot.slane %v1450, 7
        %v1453 = vor.u32 %v1449, %v1452
        %v1462 = vrot.slane %v1326, 5
        %v1463 = vrot.slane %v1327, 5
        %v1464 = vrot.slane %v1328, 5
        %v1465 = vrot.slane %v1329, 5
        %v1467 = vshrl.u32 %v1330, 16
        %v1469 = vrot.slane %v1467, 3
        %v1470 = vshll.u32 %v1330, 16
        %v1472 = vrot.slane %v1470, 4
        %v1473 = vor.u32 %v1469, %v1472
        %v1475 = vshrl.u32 %v1331, 16
        %v1477 = vrot.slane %v1475, 3
        %v1478 = vshll.u32 %v1331, 16
        %v1480 = vrot.slane %v1478, 4
        %v1481 = vor.u32 %v1477, %v1480
        %v1483 = vshrl.u32 %v1332, 16
        %v1485 = vrot.slane %v1483, 3
        %v1486 = vshll.u32 %v1332, 16
        %v1488 = vrot.slane %v1486, 4
        %v1489 = vor.u32 %v1485, %v1488
        %v1491 = vshrl.u32 %v1333, 16
        %v1493 = vrot.slane %v1491, 3
        %v1494 = vshll.u32 %v1333, 16
        %v1496 = vrot.slane %v1494, 4
        %v1497 = vor.u32 %v1493, %v1496
        %v1506 = vrot.slane %v1334, 2
        %v1507 = vrot.slane %v1335, 2
        %v1508 = vrot.slane %v1336, 2
        %v1509 = vrot.slane %v1337, 2
        %v1511 = vshll.u32 %v1338, 16
        %v1513 = vrot.slane %v1511, 1
        %v1515 = vshll.u32 %v1339, 16
        %v1517 = vrot.slane %v1515, 1
        %v1519 = vshll.u32 %v1340, 16
        %v1521 = vrot.slane %v1519, 1
        %v1523 = vshll.u32 %v1341, 16
        %v1525 = vrot.slane %v1523, 1
        %v1526 = vshrl.u32 %v1338, 16
        %v1528 = vor.u32 %v1526, %v1513
        %v1529 = vshrl.u32 %v1339, 16
        %v1531 = vor.u32 %v1529, %v1517
        %v1532 = vshrl.u32 %v1340, 16
        %v1534 = vor.u32 %v1532, %v1521
        %v1535 = vshrl.u32 %v1341, 16
        %v1537 = vor.u32 %v1535, %v1525
        %v1546 = vrot.slane %v1375, 7
        %v1547 = vrot.slane %v1376, 7
        %v1548 = vrot.slane %v1377, 7
        %v1549 = vrot.slane %v1378, 7
        %v1551 = vshrl.u32 %v1379, 16
        %v1553 = vrot.slane %v1551, 5
        %v1554 = vshll.u32 %v1379, 16
        %v1556 = vrot.slane %v1554, 6
        %v1557 = vor.u32 %v1553, %v1556
        %v1559 = vshrl.u32 %v1380, 16
        %v1561 = vrot.slane %v1559, 5
        %v1562 = vshll.u32 %v1380, 16
        %v1564 = vrot.slane %v1562, 6
        %v1565 = vor.u32 %v1561, %v1564
        %v1567 = vshrl.u32 %v1381, 16
        %v1569 = vrot.slane %v1567, 5
        %v1570 = vshll.u32 %v1381, 16
        %v1572 = vrot.slane %v1570, 6
        %v1573 = vor.u32 %v1569, %v1572
        %v1575 = vshrl.u32 %v1382, 16
        %v1577 = vrot.slane %v1575, 5
        %v1578 = vshll.u32 %v1382, 16
        %v1580 = vrot.slane %v1578, 6
        %v1581 = vor.u32 %v1577, %v1580
        %v1590 = vrot.slane %v1416, 4
        %v1591 = vrot.slane %v1417, 4
        %v1592 = vrot.slane %v1418, 4
        %v1593 = vrot.slane %v1419, 4
        %vm1594 = vcmask 1041408
        %vm1595 = vsmask.f32 1280
        %vm1596 = vmand %vm1594, %vm1595
        %v1597 = vsel %vm1596, %v1285, %v1429
        %v1598 = vsel %vm1596, %v1286, %v1437
        %v1599 = vsel %vm1596, %v1287, %v1445
        %v1600 = vsel %vm1596, %v1288, %v1453
        %v1603 = vsel %vm606, %v1597, %v1462
        %v1607 = vsel %vm606, %v1598, %v1463
        %v1611 = vsel %vm606, %v1599, %v1464
        %v1615 = vsel %vm606, %v1600, %v1465
        %vm1617 = vcmask 1044480
        %vm1618 = vsmask.f32 4352
        %vm1619 = vmand %vm1617, %vm1618
        %v1620 = vsel %vm1619, %v1603, %v1473
        %v1621 = vsel %vm1619, %v1607, %v1481
        %v1622 = vsel %vm1619, %v1611, %v1489
        %v1623 = vsel %vm1619, %v1615, %v1497
        %vm1624 = vcmask 1045504
        %v1627 = vsel %vm1624, %v1620, %v1506
        %v1631 = vsel %vm1624, %v1621, %v1507
        %v1635 = vsel %vm1624, %v1622, %v1508
        %v1639 = vsel %vm1624, %v1623, %v1509
        %vm1641 = vcmask 1047552
        %vm1642 = vsmask.f32 7424
        %vm1643 = vmand %vm1641, %vm1642
        %v1644 = vsel %vm1643, %v1627, %v1513
        %v1645 = vsel %vm1643, %v1631, %v1517
        %v1646 = vsel %vm1643, %v1635, %v1521
        %v1647 = vsel %vm1643, %v1639, %v1525
        %vm1648 = vcmask 1040384
        %v1651 = vsel %vm1648, %v1528, %v1546
        %v1655 = vsel %vm1648, %v1531, %v1547
        %v1659 = vsel %vm1648, %v1534, %v1548
        %v1663 = vsel %vm1648, %v1537, %v1549
        %vm1665 = vcmask 1042432
        %vm1666 = vsmask.f32 2304
        %vm1667 = vmand %vm1665, %vm1666
        %v1668 = vsel %vm1667, %v1651, %v1557
        %v1669 = vsel %vm1667, %v1655, %v1565
        %v1670 = vsel %vm1667, %v1659, %v1573
        %v1671 = vsel %vm1667, %v1663, %v1581
        %vm1672 = vcmask 1043456
        %v1675 = vsel %vm1672, %v1668, %v1590
        %v1678 = vsel %vm1672, %v1669, %v1591
        %v1681 = vsel %vm1672, %v1670, %v1592
        %v1684 = vsel %vm1672, %v1671, %v1593
        %v1687 = vunpack.c.l.b16 %v1420
        %v1688 = vunpack.c.l.b16 %v1421
        %v1689 = vpack.c.b16 %v1688, %v1687
        %vm1690 = vcmask 220160
        %v1692 = vsel %vm1690, %v1689, 0
        %vm1694 = vcmask 1044480
        %v1695 = vsel %vm1694, 4294967295, 65535
        %v1696 = vsel %vm1624, %v1695, 0
        %v1697 = vand.u32 %v1675, %v1696
        %v1699 = vand.u32 %v1678, %v1696
        %v1701 = vand.u32 %v1681, %v1696
        %v1703 = vand.u32 %v1684, %v1696
        %1705 = vmatprep.subr.bf16.mxu0 %v1645
        %1706 = vmatpush1.bf16.msra.mxu0 %v1644
        %1707 = vmatprep.subr.bf16.mxu0 %v1699
        %1708 = vmatpush1.bf16.msra.mxu0 %v1697
        %1709 = vmatprep.subr.bf16.mxu0 0
        %1710 = vmatpush1.bf16.msra.mxu0 0
        %1711 = vmatprep.subr.bf16.mxu0 0
        %1712 = vmatpush1.bf16.msra.mxu0 0
        %1713 = vmatprep.subr.bf16.mxu0 0
        %1714 = vmatpush1.bf16.msra.mxu0 0
        %1715 = vmatprep.subr.bf16.mxu0 0
        %1716 = vmatpush1.bf16.msra.mxu0 0
        %1717 = vmatprep.subr.bf16.mxu0 0
        %1718 = vmatpush1.bf16.msra.mxu0 0
        %1719 = vmatprep.subr.bf16.mxu0 0
        %1720 = vmatpush1.bf16.msra.mxu0 0
        %1721 = vmatprep.subr.bf16.mxu0 0
        %1722 = vmatpush1.bf16.msra.mxu0 0
        %1723 = vmatprep.subr.bf16.mxu0 0
        %1724 = vmatpush1.bf16.msra.mxu0 0
        %1725 = vmatprep.subr.bf16.mxu0 0
        %1726 = vmatpush1.bf16.msra.mxu0 0
        %1727 = vmatprep.subr.bf16.mxu0 0
        %1728 = vmatpush1.bf16.msra.mxu0 0
        %1729 = vmatprep.subr.bf16.mxu0 0
        %1730 = vmatpush1.bf16.msra.mxu0 0
        %1731 = vmatprep.subr.bf16.mxu0 0
        %1732 = vmatpush1.bf16.msra.mxu0 0
        %1733 = vmatprep.subr.bf16.mxu0 0
        %1734 = vmatpush1.bf16.msra.mxu0 0
        %1735 = vmatprep.subr.bf16.mxu0 0
        %1736 = vmatpush1.bf16.msra.mxu0 0
        %1737 = vmatprep.mubr.bf16.mxu0 0
        %1738 = vmatmul.mubr.bf16.gmra.mrb[0].mxu0 %v1692
        %v1739 = vpop.f32.mrb[0].mxu0
        %v1740 = vadd.f32 0.0, %v1739
        %v1741 = vpop.f32.mrb[0].mxu0
        %v1742 = vadd.f32 0.0, %v1741
        %v1743 = vpop.f32.mrb[0].mxu0
        %v1744 = vadd.f32 0.0, %v1743
        %v1745 = vpop.f32.mrb[0].mxu0
        %v1746 = vadd.f32 0.0, %v1745
        %1747 = vdwg.mxu0
        %1748 = vmatprep.subr.bf16.mxu0 %v1647
        %1749 = vmatpush1.bf16.msra.mxu0 %v1646
        %1750 = vmatprep.subr.bf16.mxu0 %v1703
        %1751 = vmatpush1.bf16.msra.mxu0 %v1701
        %1752 = vmatprep.subr.bf16.mxu0 0
        %1753 = vmatpush1.bf16.msra.mxu0 0
        %1754 = vmatprep.subr.bf16.mxu0 0
        %1755 = vmatpush1.bf16.msra.mxu0 0
        %1756 = vmatprep.subr.bf16.mxu0 0
        %1757 = vmatpush1.bf16.msra.mxu0 0
        %1758 = vmatprep.subr.bf16.mxu0 0
        %1759 = vmatpush1.bf16.msra.mxu0 0
        %1760 = vmatprep.subr.bf16.mxu0 0
        %1761 = vmatpush1.bf16.msra.mxu0 0
        %1762 = vmatprep.subr.bf16.mxu0 0
        %1763 = vmatpush1.bf16.msra.mxu0 0
        %1764 = vmatprep.subr.bf16.mxu0 0
        %1765 = vmatpush1.bf16.msra.mxu0 0
        %1766 = vmatprep.subr.bf16.mxu0 0
        %1767 = vmatpush1.bf16.msra.mxu0 0
        %1768 = vmatprep.subr.bf16.mxu0 0
        %1769 = vmatpush1.bf16.msra.mxu0 0
        %1770 = vmatprep.subr.bf16.mxu0 0
        %1771 = vmatpush1.bf16.msra.mxu0 0
        %1772 = vmatprep.subr.bf16.mxu0 0
        %1773 = vmatpush1.bf16.msra.mxu0 0
        %1774 = vmatprep.subr.bf16.mxu0 0
        %1775 = vmatpush1.bf16.msra.mxu0 0
        %1776 = vmatprep.subr.bf16.mxu0 0
        %1777 = vmatpush1.bf16.msra.mxu0 0
        %1778 = vmatprep.subr.bf16.mxu0 0
        %1779 = vmatpush1.bf16.msra.mxu0 0
        %1780 = vmatprep.mubr.bf16.mxu0 0
        %1781 = vmatmul.mubr.bf16.gmra.mrb[0].mxu0 %v1692
        %v1782 = vpop.f32.mrb[0].mxu0
        %v1783 = vadd.f32 0.0, %v1782
        %v1784 = vpop.f32.mrb[0].mxu0
        %v1785 = vadd.f32 0.0, %v1784
        %v1786 = vpop.f32.mrb[0].mxu0
        %v1787 = vadd.f32 0.0, %v1786
        %v1788 = vpop.f32.mrb[0].mxu0
        %v1789 = vadd.f32 0.0, %v1788
        %1790 = vdwg.mxu0
        %v1791 = vld [vmem:[%s6] sm:$0xff]
        %v1792 = vld [vmem:[%s6 + $0x8] sm:$0xff]
        %v1793 = vld [vmem:[%s6 + $0x10] sm:$0xff]
        %v1794 = vld [vmem:[%s6 + $0x18] sm:$0xff]
        %v1795 = vld [vmem:[%s6 + $0x20] sm:$0xff]
        %v1796 = vld [vmem:[%s6 + $0x28] sm:$0xff]
        %v1797 = vld [vmem:[%s7] sm:$0xff]
        %v1798 = vld [vmem:[%s7 + $0x8] sm:$0xff]
        %v1799 = vld [vmem:[%s7 + $0x10] sm:$0xff]
        %v1800 = vld [vmem:[%s7 + $0x18] sm:$0xff]
        %v1801 = vld [vmem:[%s7 + $0x20] sm:$0xff]
        %v1802 = vld [vmem:[%s7 + $0x28] sm:$0xff]
        %v1803 = vmul.f32 %v1170, %v821
        %v1804 = vmul.f32 %v1171, %v825
        %v1805 = vmul.f32 %v1172, %v829
        %v1806 = vmul.f32 %v1173, %v833
        %v1807 = vmul.f32 %v1174, %v821
        %v1808 = vmul.f32 %v1175, %v825
        %v1809 = vmul.f32 %v1176, %v829
        %v1810 = vmul.f32 %v1177, %v833
        %v1811 = vmul.f32 %v1244, %v821
        %v1812 = vmul.f32 %v1245, %v825
        %v1813 = vmul.f32 %v1246, %v829
        %v1814 = vmul.f32 %v1247, %v833
        %v1815 = vmul.f32 %v1248, %v821
        %v1816 = vmul.f32 %v1249, %v825
        %v1817 = vmul.f32 %v1250, %v829
        %v1818 = vmul.f32 %v1251, %v833
        %v1819 = vmul.f32 %v1740, %v821
        %v1820 = vmul.f32 %v1742, %v825
        %v1821 = vmul.f32 %v1783, %v829
        %v1822 = vmul.f32 %v1785, %v833
        %v1823 = vmul.f32 %v1744, %v821
        %v1824 = vmul.f32 %v1746, %v825
        %v1825 = vmul.f32 %v1787, %v829
        %v1826 = vmul.f32 %v1789, %v833
        %v1827 = vadd.f32 %v1803, %v1804
        %v1828 = vadd.f32 %v1827, %v1805
        %v1829 = vadd.f32 %v1828, %v1806
        %1830 = vadd.xlane.f32.xlu0 %v1829
        %v1831 = vpop.xlane.xlu0 %1830
        %v1832 = vadd.f32 %v1807, %v1808
        %v1833 = vadd.f32 %v1832, %v1809
        %v1834 = vadd.f32 %v1833, %v1810
        %1835 = vadd.xlane.f32.xlu0 %v1834
        %v1836 = vpop.xlane.xlu0 %1835
        %v1837 = vadd.f32 %v1811, %v1812
        %v1838 = vadd.f32 %v1837, %v1813
        %v1839 = vadd.f32 %v1838, %v1814
        %1840 = vadd.xlane.f32.xlu0 %v1839
        %v1841 = vpop.xlane.xlu0 %1840
        %v1842 = vadd.f32 %v1815, %v1816
        %v1843 = vadd.f32 %v1842, %v1817
        %v1844 = vadd.f32 %v1843, %v1818
        %1845 = vadd.xlane.f32.xlu0 %v1844
        %v1846 = vpop.xlane.xlu0 %1845
        %v1847 = vadd.f32 %v1819, %v1820
        %v1848 = vadd.f32 %v1847, %v1821
        %v1849 = vadd.f32 %v1848, %v1822
        %1850 = vadd.xlane.f32.xlu0 %v1849
        %v1851 = vpop.xlane.xlu0 %1850
        %v1852 = vadd.f32 %v1823, %v1824
        %v1853 = vadd.f32 %v1852, %v1825
        %v1854 = vadd.f32 %v1853, %v1826
        %1855 = vadd.xlane.f32.xlu0 %v1854
        %v1856 = vpop.xlane.xlu0 %1855
        %v1857 = vmul.f32 %v1831, 0.00390625
        %v1858 = vmul.f32 %v1836, 0.00390625
        %v1859 = vmul.f32 %v1841, 0.00390625
        %v1860 = vmul.f32 %v1846, 0.00390625
        %v1861 = vmul.f32 %v1851, 0.00390625
        %v1862 = vmul.f32 %v1856, 0.00390625
        %v1863 = vmul.f32 %v1857, %v821
        %v1864 = vmul.f32 %v1857, %v825
        %v1865 = vmul.f32 %v1857, %v829
        %v1866 = vmul.f32 %v1857, %v833
        %v1867 = vmul.f32 %v1858, %v821
        %v1868 = vmul.f32 %v1858, %v825
        %v1869 = vmul.f32 %v1858, %v829
        %v1870 = vmul.f32 %v1858, %v833
        %v1871 = vmul.f32 %v1859, %v821
        %v1872 = vmul.f32 %v1859, %v825
        %v1873 = vmul.f32 %v1859, %v829
        %v1874 = vmul.f32 %v1859, %v833
        %v1875 = vmul.f32 %v1860, %v821
        %v1876 = vmul.f32 %v1860, %v825
        %v1877 = vmul.f32 %v1860, %v829
        %v1878 = vmul.f32 %v1860, %v833
        %v1879 = vmul.f32 %v1861, %v821
        %v1880 = vmul.f32 %v1861, %v825
        %v1881 = vmul.f32 %v1861, %v829
        %v1882 = vmul.f32 %v1861, %v833
        %v1883 = vmul.f32 %v1862, %v821
        %v1884 = vmul.f32 %v1862, %v825
        %v1885 = vmul.f32 %v1862, %v829
        %v1886 = vmul.f32 %v1862, %v833
        %v1887 = vadd.f32 %v1863, 0.0
        %v1888 = vadd.f32 %v1864, 0.0
        %v1889 = vadd.f32 %v1865, 0.0
        %v1890 = vadd.f32 %v1866, 0.0
        %v1891 = vadd.f32 %v1867, 0.0
        %v1892 = vadd.f32 %v1868, 0.0
        %v1893 = vadd.f32 %v1869, 0.0
        %v1894 = vadd.f32 %v1870, 0.0
        %v1895 = vadd.f32 %v1871, 0.0
        %v1896 = vadd.f32 %v1872, 0.0
        %v1897 = vadd.f32 %v1873, 0.0
        %v1898 = vadd.f32 %v1874, 0.0
        %v1899 = vadd.f32 %v1875, 0.0
        %v1900 = vadd.f32 %v1876, 0.0
        %v1901 = vadd.f32 %v1877, 0.0
        %v1902 = vadd.f32 %v1878, 0.0
        %v1903 = vadd.f32 %v1879, 0.0
        %v1904 = vadd.f32 %v1880, 0.0
        %v1905 = vadd.f32 %v1881, 0.0
        %v1906 = vadd.f32 %v1882, 0.0
        %v1907 = vadd.f32 %v1883, 0.0
        %v1908 = vadd.f32 %v1884, 0.0
        %v1909 = vadd.f32 %v1885, 0.0
        %v1910 = vadd.f32 %v1886, 0.0
        %v1911 = vmul.f32 %v1170, %v914
        %v1912 = vmul.f32 %v1171, %v918
        %v1913 = vmul.f32 %v1172, %v922
        %v1914 = vmul.f32 %v1173, %v926
        %v1915 = vmul.f32 %v1174, %v914
        %v1916 = vmul.f32 %v1175, %v918
        %v1917 = vmul.f32 %v1176, %v922
        %v1918 = vmul.f32 %v1177, %v926
        %v1919 = vmul.f32 %v1244, %v914
        %v1920 = vmul.f32 %v1245, %v918
        %v1921 = vmul.f32 %v1246, %v922
        %v1922 = vmul.f32 %v1247, %v926
        %v1923 = vmul.f32 %v1248, %v914
        %v1924 = vmul.f32 %v1249, %v918
        %v1925 = vmul.f32 %v1250, %v922
        %v1926 = vmul.f32 %v1251, %v926
        %v1927 = vmul.f32 %v1740, %v914
        %v1928 = vmul.f32 %v1742, %v918
        %v1929 = vmul.f32 %v1783, %v922
        %v1930 = vmul.f32 %v1785, %v926
        %v1931 = vmul.f32 %v1744, %v914
        %v1932 = vmul.f32 %v1746, %v918
        %v1933 = vmul.f32 %v1787, %v922
        %v1934 = vmul.f32 %v1789, %v926
        %v1935 = vadd.f32 %v1911, %v1912
        %v1936 = vadd.f32 %v1935, %v1913
        %v1937 = vadd.f32 %v1936, %v1914
        %1938 = vadd.xlane.f32.xlu0 %v1937
        %v1939 = vpop.xlane.xlu0 %1938
        %v1940 = vadd.f32 %v1915, %v1916
        %v1941 = vadd.f32 %v1940, %v1917
        %v1942 = vadd.f32 %v1941, %v1918
        %1943 = vadd.xlane.f32.xlu0 %v1942
        %v1944 = vpop.xlane.xlu0 %1943
        %v1945 = vadd.f32 %v1919, %v1920
        %v1946 = vadd.f32 %v1945, %v1921
        %v1947 = vadd.f32 %v1946, %v1922
        %1948 = vadd.xlane.f32.xlu0 %v1947
        %v1949 = vpop.xlane.xlu0 %1948
        %v1950 = vadd.f32 %v1923, %v1924
        %v1951 = vadd.f32 %v1950, %v1925
        %v1952 = vadd.f32 %v1951, %v1926
        %1953 = vadd.xlane.f32.xlu0 %v1952
        %v1954 = vpop.xlane.xlu0 %1953
        %v1955 = vadd.f32 %v1927, %v1928
        %v1956 = vadd.f32 %v1955, %v1929
        %v1957 = vadd.f32 %v1956, %v1930
        %1958 = vadd.xlane.f32.xlu0 %v1957
        %v1959 = vpop.xlane.xlu0 %1958
        %v1960 = vadd.f32 %v1931, %v1932
        %v1961 = vadd.f32 %v1960, %v1933
        %v1962 = vadd.f32 %v1961, %v1934
        %1963 = vadd.xlane.f32.xlu0 %v1962
        %v1964 = vpop.xlane.xlu0 %1963
        %v1965 = vmul.f32 %v1939, 0.00390625
        %v1966 = vmul.f32 %v1944, 0.00390625
        %v1967 = vmul.f32 %v1949, 0.00390625
        %v1968 = vmul.f32 %v1954, 0.00390625
        %v1969 = vmul.f32 %v1959, 0.00390625
        %v1970 = vmul.f32 %v1964, 0.00390625
        %v1971 = vmul.f32 %v1965, %v914
        %v1972 = vmul.f32 %v1965, %v918
        %v1973 = vmul.f32 %v1965, %v922
        %v1974 = vmul.f32 %v1965, %v926
        %v1975 = vmul.f32 %v1966, %v914
        %v1976 = vmul.f32 %v1966, %v918
        %v1977 = vmul.f32 %v1966, %v922
        %v1978 = vmul.f32 %v1966, %v926
        %v1979 = vmul.f32 %v1967, %v914
        %v1980 = vmul.f32 %v1967, %v918
        %v1981 = vmul.f32 %v1967, %v922
        %v1982 = vmul.f32 %v1967, %v926
        %v1983 = vmul.f32 %v1968, %v914
        %v1984 = vmul.f32 %v1968, %v918
        %v1985 = vmul.f32 %v1968, %v922
        %v1986 = vmul.f32 %v1968, %v926
        %v1987 = vmul.f32 %v1969, %v914
        %v1988 = vmul.f32 %v1969, %v918
        %v1989 = vmul.f32 %v1969, %v922
        %v1990 = vmul.f32 %v1969, %v926
        %v1991 = vmul.f32 %v1970, %v914
        %v1992 = vmul.f32 %v1970, %v918
        %v1993 = vmul.f32 %v1970, %v922
        %v1994 = vmul.f32 %v1970, %v926
        %v1995 = vadd.f32 %v1887, %v1971
        %v1996 = vadd.f32 %v1888, %v1972
        %v1997 = vadd.f32 %v1889, %v1973
        %v1998 = vadd.f32 %v1890, %v1974
        %v1999 = vadd.f32 %v1891, %v1975
        %v2000 = vadd.f32 %v1892, %v1976
        %v2001 = vadd.f32 %v1893, %v1977
        %v2002 = vadd.f32 %v1894, %v1978
        %v2003 = vadd.f32 %v1895, %v1979
        %v2004 = vadd.f32 %v1896, %v1980
        %v2005 = vadd.f32 %v1897, %v1981
        %v2006 = vadd.f32 %v1898, %v1982
        %v2007 = vadd.f32 %v1899, %v1983
        %v2008 = vadd.f32 %v1900, %v1984
        %v2009 = vadd.f32 %v1901, %v1985
        %v2010 = vadd.f32 %v1902, %v1986
        %v2011 = vadd.f32 %v1903, %v1987
        %v2012 = vadd.f32 %v1904, %v1988
        %v2013 = vadd.f32 %v1905, %v1989
        %v2014 = vadd.f32 %v1906, %v1990
        %v2015 = vadd.f32 %v1907, %v1991
        %v2016 = vadd.f32 %v1908, %v1992
        %v2017 = vadd.f32 %v1909, %v1993
        %v2018 = vadd.f32 %v1910, %v1994
        %v2019 = vsub.f32 %v1170, %v1995
        %v2020 = vsub.f32 %v1171, %v1996
        %v2021 = vsub.f32 %v1172, %v1997
        %v2022 = vsub.f32 %v1173, %v1998
        %v2023 = vsub.f32 %v1174, %v1999
        %v2024 = vsub.f32 %v1175, %v2000
        %v2025 = vsub.f32 %v1176, %v2001
        %v2026 = vsub.f32 %v1177, %v2002
        %v2027 = vsub.f32 %v1244, %v2003
        %v2028 = vsub.f32 %v1245, %v2004
        %v2029 = vsub.f32 %v1246, %v2005
        %v2030 = vsub.f32 %v1247, %v2006
        %v2031 = vsub.f32 %v1248, %v2007
        %v2032 = vsub.f32 %v1249, %v2008
        %v2033 = vsub.f32 %v1250, %v2009
        %v2034 = vsub.f32 %v1251, %v2010
        %v2035 = vsub.f32 %v1740, %v2011
        %v2036 = vsub.f32 %v1742, %v2012
        %v2037 = vsub.f32 %v1783, %v2013
        %v2038 = vsub.f32 %v1785, %v2014
        %v2039 = vsub.f32 %v1744, %v2015
        %v2040 = vsub.f32 %v1746, %v2016
        %v2041 = vsub.f32 %v1787, %v2017
        %v2042 = vsub.f32 %v1789, %v2018
        %v2043 = vmul.f32 %v2019, %v2019
        %v2044 = vmul.f32 %v2020, %v2020
        %v2045 = vmul.f32 %v2021, %v2021
        %v2046 = vmul.f32 %v2022, %v2022
        %v2047 = vmul.f32 %v2023, %v2023
        %v2048 = vmul.f32 %v2024, %v2024
        %v2049 = vmul.f32 %v2025, %v2025
        %v2050 = vmul.f32 %v2026, %v2026
        %v2051 = vmul.f32 %v2027, %v2027
        %v2052 = vmul.f32 %v2028, %v2028
        %v2053 = vmul.f32 %v2029, %v2029
        %v2054 = vmul.f32 %v2030, %v2030
        %v2055 = vmul.f32 %v2031, %v2031
        %v2056 = vmul.f32 %v2032, %v2032
        %v2057 = vmul.f32 %v2033, %v2033
        %v2058 = vmul.f32 %v2034, %v2034
        %v2059 = vmul.f32 %v2035, %v2035
        %v2060 = vmul.f32 %v2036, %v2036
        %v2061 = vmul.f32 %v2037, %v2037
        %v2062 = vmul.f32 %v2038, %v2038
        %v2063 = vmul.f32 %v2039, %v2039
        %v2064 = vmul.f32 %v2040, %v2040
        %v2065 = vmul.f32 %v2041, %v2041
        %v2066 = vmul.f32 %v2042, %v2042
        %v2067 = vmul.f32 %v2043, %v821
        %v2068 = vmul.f32 %v2044, %v825
        %v2069 = vmul.f32 %v2045, %v829
        %v2070 = vmul.f32 %v2046, %v833
        %v2071 = vmul.f32 %v2047, %v821
        %v2072 = vmul.f32 %v2048, %v825
        %v2073 = vmul.f32 %v2049, %v829
        %v2074 = vmul.f32 %v2050, %v833
        %v2075 = vmul.f32 %v2051, %v821
        %v2076 = vmul.f32 %v2052, %v825
        %v2077 = vmul.f32 %v2053, %v829
        %v2078 = vmul.f32 %v2054, %v833
        %v2079 = vmul.f32 %v2055, %v821
        %v2080 = vmul.f32 %v2056, %v825
        %v2081 = vmul.f32 %v2057, %v829
        %v2082 = vmul.f32 %v2058, %v833
        %v2083 = vmul.f32 %v2059, %v821
        %v2084 = vmul.f32 %v2060, %v825
        %v2085 = vmul.f32 %v2061, %v829
        %v2086 = vmul.f32 %v2062, %v833
        %v2087 = vmul.f32 %v2063, %v821
        %v2088 = vmul.f32 %v2064, %v825
        %v2089 = vmul.f32 %v2065, %v829
        %v2090 = vmul.f32 %v2066, %v833
        %v2091 = vadd.f32 %v2067, %v2068
        %v2092 = vadd.f32 %v2091, %v2069
        %v2093 = vadd.f32 %v2092, %v2070
        %2094 = vadd.xlane.f32.xlu0 %v2093
        %v2095 = vpop.xlane.xlu0 %2094
        %v2096 = vadd.f32 %v2071, %v2072
        %v2097 = vadd.f32 %v2096, %v2073
        %v2098 = vadd.f32 %v2097, %v2074
        %2099 = vadd.xlane.f32.xlu0 %v2098
        %v2100 = vpop.xlane.xlu0 %2099
        %v2101 = vadd.f32 %v2075, %v2076
        %v2102 = vadd.f32 %v2101, %v2077
        %v2103 = vadd.f32 %v2102, %v2078
        %2104 = vadd.xlane.f32.xlu0 %v2103
        %v2105 = vpop.xlane.xlu0 %2104
        %v2106 = vadd.f32 %v2079, %v2080
        %v2107 = vadd.f32 %v2106, %v2081
        %v2108 = vadd.f32 %v2107, %v2082
        %2109 = vadd.xlane.f32.xlu0 %v2108
        %v2110 = vpop.xlane.xlu0 %2109
        %v2111 = vadd.f32 %v2083, %v2084
        %v2112 = vadd.f32 %v2111, %v2085
        %v2113 = vadd.f32 %v2112, %v2086
        %2114 = vadd.xlane.f32.xlu0 %v2113
        %v2115 = vpop.xlane.xlu0 %2114
        %v2116 = vadd.f32 %v2087, %v2088
        %v2117 = vadd.f32 %v2116, %v2089
        %v2118 = vadd.f32 %v2117, %v2090
        %2119 = vadd.xlane.f32.xlu0 %v2118
        %v2120 = vpop.xlane.xlu0 %2119
        %v2121 = vmul.f32 %v2095, 0.00390625
        %v2122 = vmul.f32 %v2100, 0.00390625
        %v2123 = vmul.f32 %v2105, 0.00390625
        %v2124 = vmul.f32 %v2110, 0.00390625
        %v2125 = vmul.f32 %v2115, 0.00390625
        %v2126 = vmul.f32 %v2120, 0.00390625
        %v2127 = vadd.f32 %v2121, 1e-05
        %v2128 = vadd.f32 %v2122, 1e-05
        %v2129 = vadd.f32 %v2123, 1e-05
        %v2130 = vadd.f32 %v2124, 1e-05
        %v2131 = vadd.f32 %v2125, 1e-05
        %v2132 = vadd.f32 %v2126, 1e-05
        %v2133 = vrsqrt.pop %v2127
        %v2134 = vrsqrt.pop %v2128
        %v2135 = vrsqrt.pop %v2129
        %v2136 = vrsqrt.pop %v2130
        %v2137 = vrsqrt.pop %v2131
        %v2138 = vrsqrt.pop %v2132
        %v2139 = vmul.f32 %v2133, %v821
        %v2140 = vmul.f32 %v2133, %v825
        %v2141 = vmul.f32 %v2133, %v829
        %v2142 = vmul.f32 %v2133, %v833
        %v2143 = vmul.f32 %v2134, %v821
        %v2144 = vmul.f32 %v2134, %v825
        %v2145 = vmul.f32 %v2134, %v829
        %v2146 = vmul.f32 %v2134, %v833
        %v2147 = vmul.f32 %v2135, %v821
        %v2148 = vmul.f32 %v2135, %v825
        %v2149 = vmul.f32 %v2135, %v829
        %v2150 = vmul.f32 %v2135, %v833
        %v2151 = vmul.f32 %v2136, %v821
        %v2152 = vmul.f32 %v2136, %v825
        %v2153 = vmul.f32 %v2136, %v829
        %v2154 = vmul.f32 %v2136, %v833
        %v2155 = vmul.f32 %v2137, %v821
        %v2156 = vmul.f32 %v2137, %v825
        %v2157 = vmul.f32 %v2137, %v829
        %v2158 = vmul.f32 %v2137, %v833
        %v2159 = vmul.f32 %v2138, %v821
        %v2160 = vmul.f32 %v2138, %v825
        %v2161 = vmul.f32 %v2138, %v829
        %v2162 = vmul.f32 %v2138, %v833
        %v2163 = vadd.f32 %v2139, 0.0
        %v2164 = vadd.f32 %v2140, 0.0
        %v2165 = vadd.f32 %v2141, 0.0
        %v2166 = vadd.f32 %v2142, 0.0
        %v2167 = vadd.f32 %v2143, 0.0
        %v2168 = vadd.f32 %v2144, 0.0
        %v2169 = vadd.f32 %v2145, 0.0
        %v2170 = vadd.f32 %v2146, 0.0
        %v2171 = vadd.f32 %v2147, 0.0
        %v2172 = vadd.f32 %v2148, 0.0
        %v2173 = vadd.f32 %v2149, 0.0
        %v2174 = vadd.f32 %v2150, 0.0
        %v2175 = vadd.f32 %v2151, 0.0
        %v2176 = vadd.f32 %v2152, 0.0
        %v2177 = vadd.f32 %v2153, 0.0
        %v2178 = vadd.f32 %v2154, 0.0
        %v2179 = vadd.f32 %v2155, 0.0
        %v2180 = vadd.f32 %v2156, 0.0
        %v2181 = vadd.f32 %v2157, 0.0
        %v2182 = vadd.f32 %v2158, 0.0
        %v2183 = vadd.f32 %v2159, 0.0
        %v2184 = vadd.f32 %v2160, 0.0
        %v2185 = vadd.f32 %v2161, 0.0
        %v2186 = vadd.f32 %v2162, 0.0
        %v2187 = vmul.f32 %v2043, %v914
        %v2188 = vmul.f32 %v2044, %v918
        %v2189 = vmul.f32 %v2045, %v922
        %v2190 = vmul.f32 %v2046, %v926
        %v2191 = vmul.f32 %v2047, %v914
        %v2192 = vmul.f32 %v2048, %v918
        %v2193 = vmul.f32 %v2049, %v922
        %v2194 = vmul.f32 %v2050, %v926
        %v2195 = vmul.f32 %v2051, %v914
        %v2196 = vmul.f32 %v2052, %v918
        %v2197 = vmul.f32 %v2053, %v922
        %v2198 = vmul.f32 %v2054, %v926
        %v2199 = vmul.f32 %v2055, %v914
        %v2200 = vmul.f32 %v2056, %v918
        %v2201 = vmul.f32 %v2057, %v922
        %v2202 = vmul.f32 %v2058, %v926
        %v2203 = vmul.f32 %v2059, %v914
        %v2204 = vmul.f32 %v2060, %v918
        %v2205 = vmul.f32 %v2061, %v922
        %v2206 = vmul.f32 %v2062, %v926
        %v2207 = vmul.f32 %v2063, %v914
        %v2208 = vmul.f32 %v2064, %v918
        %v2209 = vmul.f32 %v2065, %v922
        %v2210 = vmul.f32 %v2066, %v926
        %v2211 = vadd.f32 %v2187, %v2188
        %v2212 = vadd.f32 %v2211, %v2189
        %v2213 = vadd.f32 %v2212, %v2190
        %2214 = vadd.xlane.f32.xlu0 %v2213
        %v2215 = vpop.xlane.xlu0 %2214
        %v2216 = vadd.f32 %v2191, %v2192
        %v2217 = vadd.f32 %v2216, %v2193
        %v2218 = vadd.f32 %v2217, %v2194
        %2219 = vadd.xlane.f32.xlu0 %v2218
        %v2220 = vpop.xlane.xlu0 %2219
        %v2221 = vadd.f32 %v2195, %v2196
        %v2222 = vadd.f32 %v2221, %v2197
        %v2223 = vadd.f32 %v2222, %v2198
        %2224 = vadd.xlane.f32.xlu0 %v2223
        %v2225 = vpop.xlane.xlu0 %2224
        %v2226 = vadd.f32 %v2199, %v2200
        %v2227 = vadd.f32 %v2226, %v2201
        %v2228 = vadd.f32 %v2227, %v2202
        %2229 = vadd.xlane.f32.xlu0 %v2228
        %v2230 = vpop.xlane.xlu0 %2229
        %v2231 = vadd.f32 %v2203, %v2204
        %v2232 = vadd.f32 %v2231, %v2205
        %v2233 = vadd.f32 %v2232, %v2206
        %2234 = vadd.xlane.f32.xlu0 %v2233
        %v2235 = vpop.xlane.xlu0 %2234
        %v2236 = vadd.f32 %v2207, %v2208
        %v2237 = vadd.f32 %v2236, %v2209
        %v2238 = vadd.f32 %v2237, %v2210
        %2239 = vadd.xlane.f32.xlu0 %v2238
        %v2240 = vpop.xlane.xlu0 %2239
        %v2241 = vmul.f32 %v2215, 0.00390625
        %v2242 = vmul.f32 %v2220, 0.00390625
        %v2243 = vmul.f32 %v2225, 0.00390625
        %v2244 = vmul.f32 %v2230, 0.00390625
        %v2245 = vmul.f32 %v2235, 0.00390625
        %v2246 = vmul.f32 %v2240, 0.00390625
        %v2247 = vadd.f32 %v2241, 1e-05
        %v2248 = vadd.f32 %v2242, 1e-05
        %v2249 = vadd.f32 %v2243, 1e-05
        %v2250 = vadd.f32 %v2244, 1e-05
        %v2251 = vadd.f32 %v2245, 1e-05
        %v2252 = vadd.f32 %v2246, 1e-05
        %v2253 = vrsqrt.pop %v2247
        %v2254 = vrsqrt.pop %v2248
        %v2255 = vrsqrt.pop %v2249
        %v2256 = vrsqrt.pop %v2250
        %v2257 = vrsqrt.pop %v2251
        %v2258 = vrsqrt.pop %v2252
        %v2259 = vmul.f32 %v2253, %v914
        %v2260 = vmul.f32 %v2253, %v918
        %v2261 = vmul.f32 %v2253, %v922
        %v2262 = vmul.f32 %v2253, %v926
        %v2263 = vmul.f32 %v2254, %v914
        %v2264 = vmul.f32 %v2254, %v918
        %v2265 = vmul.f32 %v2254, %v922
        %v2266 = vmul.f32 %v2254, %v926
        %v2267 = vmul.f32 %v2255, %v914
        %v2268 = vmul.f32 %v2255, %v918
        %v2269 = vmul.f32 %v2255, %v922
        %v2270 = vmul.f32 %v2255, %v926
        %v2271 = vmul.f32 %v2256, %v914
        %v2272 = vmul.f32 %v2256, %v918
        %v2273 = vmul.f32 %v2256, %v922
        %v2274 = vmul.f32 %v2256, %v926
        %v2275 = vmul.f32 %v2257, %v914
        %v2276 = vmul.f32 %v2257, %v918
        %v2277 = vmul.f32 %v2257, %v922
        %v2278 = vmul.f32 %v2257, %v926
        %v2279 = vmul.f32 %v2258, %v914
        %v2280 = vmul.f32 %v2258, %v918
        %v2281 = vmul.f32 %v2258, %v922
        %v2282 = vmul.f32 %v2258, %v926
        %v2283 = vadd.f32 %v2163, %v2259
        %v2284 = vadd.f32 %v2164, %v2260
        %v2285 = vadd.f32 %v2165, %v2261
        %v2286 = vadd.f32 %v2166, %v2262
        %v2287 = vadd.f32 %v2167, %v2263
        %v2288 = vadd.f32 %v2168, %v2264
        %v2289 = vadd.f32 %v2169, %v2265
        %v2290 = vadd.f32 %v2170, %v2266
        %v2291 = vadd.f32 %v2171, %v2267
        %v2292 = vadd.f32 %v2172, %v2268
        %v2293 = vadd.f32 %v2173, %v2269
        %v2294 = vadd.f32 %v2174, %v2270
        %v2295 = vadd.f32 %v2175, %v2271
        %v2296 = vadd.f32 %v2176, %v2272
        %v2297 = vadd.f32 %v2177, %v2273
        %v2298 = vadd.f32 %v2178, %v2274
        %v2299 = vadd.f32 %v2179, %v2275
        %v2300 = vadd.f32 %v2180, %v2276
        %v2301 = vadd.f32 %v2181, %v2277
        %v2302 = vadd.f32 %v2182, %v2278
        %v2303 = vadd.f32 %v2183, %v2279
        %v2304 = vadd.f32 %v2184, %v2280
        %v2305 = vadd.f32 %v2185, %v2281
        %v2306 = vadd.f32 %v2186, %v2282
        %v2307 = vmul.f32 %v2019, %v2283
        %v2308 = vmul.f32 %v2020, %v2284
        %v2309 = vmul.f32 %v2021, %v2285
        %v2310 = vmul.f32 %v2022, %v2286
        %v2311 = vmul.f32 %v2023, %v2287
        %v2312 = vmul.f32 %v2024, %v2288
        %v2313 = vmul.f32 %v2025, %v2289
        %v2314 = vmul.f32 %v2026, %v2290
        %v2315 = vmul.f32 %v2027, %v2291
        %v2316 = vmul.f32 %v2028, %v2292
        %v2317 = vmul.f32 %v2029, %v2293
        %v2318 = vmul.f32 %v2030, %v2294
        %v2319 = vmul.f32 %v2031, %v2295
        %v2320 = vmul.f32 %v2032, %v2296
        %v2321 = vmul.f32 %v2033, %v2297
        %v2322 = vmul.f32 %v2034, %v2298
        %v2323 = vmul.f32 %v2035, %v2299
        %v2324 = vmul.f32 %v2036, %v2300
        %v2325 = vmul.f32 %v2037, %v2301
        %v2326 = vmul.f32 %v2038, %v2302
        %v2327 = vmul.f32 %v2039, %v2303
        %v2328 = vmul.f32 %v2040, %v2304
        %v2329 = vmul.f32 %v2041, %v2305
        %v2330 = vmul.f32 %v2042, %v2306
        %2332 = vset.pattern.permute.xlu0 0
        %2333 = vperm.xlu0 %2332, %v1791
        %v2334 = vpop.permute.xlu0 %2333
        %2337 = vset.pattern.permute.xlu0 0
        %2338 = vperm.xlu0 %2337, %v1792
        %v2339 = vpop.permute.xlu0 %2338
        %2342 = vset.pattern.permute.xlu0 0
        %2343 = vperm.xlu0 %2342, %v1793
        %v2344 = vpop.permute.xlu0 %2343
        %2347 = vset.pattern.permute.xlu0 0
        %2348 = vperm.xlu0 %2347, %v1794
        %v2349 = vpop.permute.xlu0 %2348
        %2352 = vset.pattern.permute.xlu0 0
        %2353 = vperm.xlu0 %2352, %v1795
        %v2354 = vpop.permute.xlu0 %2353
        %2357 = vset.pattern.permute.xlu0 0
        %2358 = vperm.xlu0 %2357, %v1796
        %v2359 = vpop.permute.xlu0 %2358
        %v2361 = vmul.f32 %v2307, %v2334
        %v2362 = vmul.f32 %v2308, %v2334
        %v2363 = vmul.f32 %v2309, %v2334
        %v2364 = vmul.f32 %v2310, %v2334
        %v2365 = vmul.f32 %v2311, %v2339
        %v2366 = vmul.f32 %v2312, %v2339
        %v2367 = vmul.f32 %v2313, %v2339
        %v2368 = vmul.f32 %v2314, %v2339
        %v2369 = vmul.f32 %v2315, %v2344
        %v2370 = vmul.f32 %v2316, %v2344
        %v2371 = vmul.f32 %v2317, %v2344
        %v2372 = vmul.f32 %v2318, %v2344
        %v2373 = vmul.f32 %v2319, %v2349
        %v2374 = vmul.f32 %v2320, %v2349
        %v2375 = vmul.f32 %v2321, %v2349
        %v2376 = vmul.f32 %v2322, %v2349
        %v2377 = vmul.f32 %v2323, %v2354
        %v2378 = vmul.f32 %v2324, %v2354
        %v2379 = vmul.f32 %v2325, %v2354
        %v2380 = vmul.f32 %v2326, %v2354
        %v2381 = vmul.f32 %v2327, %v2359
        %v2382 = vmul.f32 %v2328, %v2359
        %v2383 = vmul.f32 %v2329, %v2359
        %v2384 = vmul.f32 %v2330, %v2359
        %2386 = vset.pattern.permute.xlu0 0
        %2387 = vperm.xlu0 %2386, %v1797
        %v2388 = vpop.permute.xlu0 %2387
        %2391 = vset.pattern.permute.xlu0 0
        %2392 = vperm.xlu0 %2391, %v1798
        %v2393 = vpop.permute.xlu0 %2392
        %2396 = vset.pattern.permute.xlu0 0
        %2397 = vperm.xlu0 %2396, %v1799
        %v2398 = vpop.permute.xlu0 %2397
        %2401 = vset.pattern.permute.xlu0 0
        %2402 = vperm.xlu0 %2401, %v1800
        %v2403 = vpop.permute.xlu0 %2402
        %2406 = vset.pattern.permute.xlu0 0
        %2407 = vperm.xlu0 %2406, %v1801
        %v2408 = vpop.permute.xlu0 %2407
        %2411 = vset.pattern.permute.xlu0 0
        %2412 = vperm.xlu0 %2411, %v1802
        %v2413 = vpop.permute.xlu0 %2412
        %v2415 = vadd.f32 %v2361, %v2388
        %v2416 = vadd.f32 %v2362, %v2388
        %v2417 = vadd.f32 %v2363, %v2388
        %v2418 = vadd.f32 %v2364, %v2388
        %v2419 = vadd.f32 %v2365, %v2393
        %v2420 = vadd.f32 %v2366, %v2393
        %v2421 = vadd.f32 %v2367, %v2393
        %v2422 = vadd.f32 %v2368, %v2393
        %v2423 = vadd.f32 %v2369, %v2398
        %v2424 = vadd.f32 %v2370, %v2398
        %v2425 = vadd.f32 %v2371, %v2398
        %v2426 = vadd.f32 %v2372, %v2398
        %v2427 = vadd.f32 %v2373, %v2403
        %v2428 = vadd.f32 %v2374, %v2403
        %v2429 = vadd.f32 %v2375, %v2403
        %v2430 = vadd.f32 %v2376, %v2403
        %v2431 = vadd.f32 %v2377, %v2408
        %v2432 = vadd.f32 %v2378, %v2408
        %v2433 = vadd.f32 %v2379, %v2408
        %v2434 = vadd.f32 %v2380, %v2408
        %v2435 = vadd.f32 %v2381, %v2413
        %v2436 = vadd.f32 %v2382, %v2413
        %v2437 = vadd.f32 %v2383, %v2413
        %v2438 = vadd.f32 %v2384, %v2413
        %v2439 = vpack.c.bf16 %v2419, %v2415
        %v2440 = vpack.c.bf16 %v2420, %v2416
        %v2441 = vpack.c.bf16 %v2421, %v2417
        %v2442 = vpack.c.bf16 %v2422, %v2418
        %v2443 = vpack.c.bf16 %v2427, %v2423
        %v2444 = vpack.c.bf16 %v2428, %v2424
        %v2445 = vpack.c.bf16 %v2429, %v2425
        %v2446 = vpack.c.bf16 %v2430, %v2426
        %2447 = vrot.lane.b32.xlu0 %v2431, 17
        %v2448 = vpop.permute.xlu0 %2447
        %2449 = vrot.lane.b32.xlu0 %v2435, 17
        %v2450 = vpop.permute.xlu0 %2449
        %2451 = vrot.lane.b32.xlu0 %v2432, 17
        %v2452 = vpop.permute.xlu0 %2451
        %2453 = vrot.lane.b32.xlu0 %v2436, 17
        %v2454 = vpop.permute.xlu0 %2453
        %2455 = vrot.lane.b32.xlu0 %v2433, 17
        %v2456 = vpop.permute.xlu0 %2455
        %2457 = vrot.lane.b32.xlu0 %v2437, 17
        %v2458 = vpop.permute.xlu0 %2457
        %2459 = vrot.lane.b32.xlu0 %v2434, 17
        %v2460 = vpop.permute.xlu0 %2459
        %2461 = vrot.lane.b32.xlu0 %v2438, 17
        %v2462 = vpop.permute.xlu0 %2461
        %v2463 = vsel %vm1260, %v2456, %v2460
        %v2464 = vsel %vm1260, %v2458, %v2462
        %v2465 = vsel %vm1260, %v2452, %v2456
        %v2466 = vsel %vm1260, %v2454, %v2458
        %v2467 = vsel %vm1260, %v2448, %v2452
        %v2468 = vsel %vm1260, %v2450, %v2454
        %v2469 = vsel %vm1260, %v2460, %v2448
        %v2470 = vsel %vm1260, %v2462, %v2450
        %v2471 = vmul.f32 %v2469, %v1268
        %v2472 = vmul.f32 %v2467, %v1272
        %v2473 = vmul.f32 %v2465, %v1276
        %v2474 = vmul.f32 %v2463, %v1280
        %v2475 = vmul.f32 %v2470, %v1268
        %v2476 = vmul.f32 %v2468, %v1272
        %v2477 = vmul.f32 %v2466, %v1276
        %v2478 = vmul.f32 %v2464, %v1280
        %v2479 = vpack.c.bf16 %v2475, %v2471
        %v2480 = vpack.c.bf16 %v2476, %v2472
        %v2481 = vpack.c.bf16 %v2477, %v2473
        %v2482 = vpack.c.bf16 %v2478, %v2474
        %2483 = vrot.lane.b32.xlu0 %v2431, 16
        %v2484 = vpop.permute.xlu0 %2483
        %2485 = vrot.lane.b32.xlu0 %v2435, 16
        %v2486 = vpop.permute.xlu0 %2485
        %2487 = vrot.lane.b32.xlu0 %v2432, 16
        %v2488 = vpop.permute.xlu0 %2487
        %2489 = vrot.lane.b32.xlu0 %v2436, 16
        %v2490 = vpop.permute.xlu0 %2489
        %2491 = vrot.lane.b32.xlu0 %v2433, 16
        %v2492 = vpop.permute.xlu0 %2491
        %2493 = vrot.lane.b32.xlu0 %v2437, 16
        %v2494 = vpop.permute.xlu0 %2493
        %2495 = vrot.lane.b32.xlu0 %v2434, 16
        %v2496 = vpop.permute.xlu0 %2495
        %2497 = vrot.lane.b32.xlu0 %v2438, 16
        %v2498 = vpop.permute.xlu0 %2497
        %v2499 = vsel %vm621, %v2492, %v2496
        %v2500 = vsel %vm621, %v2494, %v2498
        %v2501 = vsel %vm621, %v2488, %v2492
        %v2502 = vsel %vm621, %v2490, %v2494
        %v2503 = vsel %vm621, %v2484, %v2488
        %v2504 = vsel %vm621, %v2486, %v2490
        %v2505 = vsel %vm621, %v2496, %v2484
        %v2506 = vsel %vm621, %v2498, %v2486
        %v2507 = vmul.f32 %v2505, %v629
        %v2508 = vmul.f32 %v2503, %v633
        %v2509 = vmul.f32 %v2501, %v637
        %v2510 = vmul.f32 %v2499, %v641
        %v2511 = vmul.f32 %v2506, %v629
        %v2512 = vmul.f32 %v2504, %v633
        %v2513 = vmul.f32 %v2502, %v637
        %v2514 = vmul.f32 %v2500, %v641
        %v2515 = vpack.c.bf16 %v2511, %v2507
        %v2516 = vpack.c.bf16 %v2512, %v2508
        %v2517 = vpack.c.bf16 %v2513, %v2509
        %v2518 = vpack.c.bf16 %v2514, %v2510
        %2519 = vrot.lane.b32.xlu0 %v2431, 15
        %v2520 = vpop.permute.xlu0 %2519
        %2521 = vrot.lane.b32.xlu0 %v2435, 15
        %v2522 = vpop.permute.xlu0 %2521
        %2523 = vrot.lane.b32.xlu0 %v2432, 15
        %v2524 = vpop.permute.xlu0 %2523
        %2525 = vrot.lane.b32.xlu0 %v2436, 15
        %v2526 = vpop.permute.xlu0 %2525
        %2527 = vrot.lane.b32.xlu0 %v2433, 15
        %v2528 = vpop.permute.xlu0 %2527
        %2529 = vrot.lane.b32.xlu0 %v2437, 15
        %v2530 = vpop.permute.xlu0 %2529
        %2531 = vrot.lane.b32.xlu0 %v2434, 15
        %v2532 = vpop.permute.xlu0 %2531
        %2533 = vrot.lane.b32.xlu0 %v2438, 15
        %v2534 = vpop.permute.xlu0 %2533
        %v2535 = vsel %vm1301, %v2528, %v2532
        %v2536 = vsel %vm1301, %v2530, %v2534
        %v2537 = vsel %vm1301, %v2524, %v2528
        %v2538 = vsel %vm1301, %v2526, %v2530
        %v2539 = vsel %vm1301, %v2520, %v2524
        %v2540 = vsel %vm1301, %v2522, %v2526
        %v2541 = vsel %vm1301, %v2532, %v2520
        %v2542 = vsel %vm1301, %v2534, %v2522
        %v2543 = vmul.f32 %v2541, %v1309
        %v2544 = vmul.f32 %v2539, %v1313
        %v2545 = vmul.f32 %v2537, %v1317
        %v2546 = vmul.f32 %v2535, %v1321
        %v2547 = vmul.f32 %v2542, %v1309
        %v2548 = vmul.f32 %v2540, %v1313
        %v2549 = vmul.f32 %v2538, %v1317
        %v2550 = vmul.f32 %v2536, %v1321
        %v2551 = vpack.c.bf16 %v2547, %v2543
        %v2552 = vpack.c.bf16 %v2548, %v2544
        %v2553 = vpack.c.bf16 %v2549, %v2545
        %v2554 = vpack.c.bf16 %v2550, %v2546
        %2555 = vrot.lane.b32.xlu0 %v2431, 1
        %v2556 = vpop.permute.xlu0 %2555
        %2557 = vrot.lane.b32.xlu0 %v2435, 1
        %v2558 = vpop.permute.xlu0 %2557
        %2559 = vrot.lane.b32.xlu0 %v2432, 1
        %v2560 = vpop.permute.xlu0 %2559
        %2561 = vrot.lane.b32.xlu0 %v2436, 1
        %v2562 = vpop.permute.xlu0 %2561
        %2563 = vrot.lane.b32.xlu0 %v2433, 1
        %v2564 = vpop.permute.xlu0 %2563
        %2565 = vrot.lane.b32.xlu0 %v2437, 1
        %v2566 = vpop.permute.xlu0 %2565
        %2567 = vrot.lane.b32.xlu0 %v2434, 1
        %v2568 = vpop.permute.xlu0 %2567
        %2569 = vrot.lane.b32.xlu0 %v2438, 1
        %v2570 = vpop.permute.xlu0 %2569
        %v2571 = vsel %vm687, %v2564, %v2568
        %v2572 = vsel %vm687, %v2566, %v2570
        %v2573 = vsel %vm687, %v2560, %v2564
        %v2574 = vsel %vm687, %v2562, %v2566
        %v2575 = vsel %vm687, %v2556, %v2560
        %v2576 = vsel %vm687, %v2558, %v2562
        %v2577 = vsel %vm687, %v2568, %v2556
        %v2578 = vsel %vm687, %v2570, %v2558
        %v2579 = vmul.f32 %v2577, %v695
        %v2580 = vmul.f32 %v2575, %v699
        %v2581 = vmul.f32 %v2573, %v703
        %v2582 = vmul.f32 %v2571, %v707
        %v2583 = vmul.f32 %v2578, %v695
        %v2584 = vmul.f32 %v2576, %v699
        %v2585 = vmul.f32 %v2574, %v703
        %v2586 = vmul.f32 %v2572, %v707
        %v2587 = vpack.c.bf16 %v2583, %v2579
        %v2588 = vpack.c.bf16 %v2584, %v2580
        %v2589 = vpack.c.bf16 %v2585, %v2581
        %v2590 = vpack.c.bf16 %v2586, %v2582
        %v2591 = vpack.c.bf16 %v2435, %v2431
        %v2592 = vpack.c.bf16 %v2436, %v2432
        %v2593 = vpack.c.bf16 %v2437, %v2433
        %v2594 = vpack.c.bf16 %v2438, %v2434
        %2595 = vrot.lane.b32.xlu0 %v2431, 127
        %v2596 = vpop.permute.xlu0 %2595
        %2597 = vrot.lane.b32.xlu0 %v2435, 127
        %v2598 = vpop.permute.xlu0 %2597
        %2599 = vrot.lane.b32.xlu0 %v2432, 127
        %v2600 = vpop.permute.xlu0 %2599
        %2601 = vrot.lane.b32.xlu0 %v2436, 127
        %v2602 = vpop.permute.xlu0 %2601
        %2603 = vrot.lane.b32.xlu0 %v2433, 127
        %v2604 = vpop.permute.xlu0 %2603
        %2605 = vrot.lane.b32.xlu0 %v2437, 127
        %v2606 = vpop.permute.xlu0 %2605
        %2607 = vrot.lane.b32.xlu0 %v2434, 127
        %v2608 = vpop.permute.xlu0 %2607
        %2609 = vrot.lane.b32.xlu0 %v2438, 127
        %v2610 = vpop.permute.xlu0 %2609
        %v2611 = vsel %vm720, %v2604, %v2608
        %v2612 = vsel %vm720, %v2606, %v2610
        %v2613 = vsel %vm720, %v2600, %v2604
        %v2614 = vsel %vm720, %v2602, %v2606
        %v2615 = vsel %vm720, %v2596, %v2600
        %v2616 = vsel %vm720, %v2598, %v2602
        %v2617 = vsel %vm720, %v2608, %v2596
        %v2618 = vsel %vm720, %v2610, %v2598
        %v2619 = vmul.f32 %v2615, %v728
        %v2620 = vmul.f32 %v2613, %v732
        %v2621 = vmul.f32 %v2611, %v736
        %v2622 = vmul.f32 %v2617, %v740
        %v2623 = vmul.f32 %v2616, %v728
        %v2624 = vmul.f32 %v2614, %v732
        %v2625 = vmul.f32 %v2612, %v736
        %v2626 = vmul.f32 %v2618, %v740
        %v2627 = vpack.c.bf16 %v2623, %v2619
        %v2628 = vpack.c.bf16 %v2624, %v2620
        %v2629 = vpack.c.bf16 %v2625, %v2621
        %v2630 = vpack.c.bf16 %v2626, %v2622
        %2631 = vrot.lane.b32.xlu0 %v2431, 113
        %v2632 = vpop.permute.xlu0 %2631
        %2633 = vrot.lane.b32.xlu0 %v2435, 113
        %v2634 = vpop.permute.xlu0 %2633
        %2635 = vrot.lane.b32.xlu0 %v2432, 113
        %v2636 = vpop.permute.xlu0 %2635
        %2637 = vrot.lane.b32.xlu0 %v2436, 113
        %v2638 = vpop.permute.xlu0 %2637
        %2639 = vrot.lane.b32.xlu0 %v2433, 113
        %v2640 = vpop.permute.xlu0 %2639
        %2641 = vrot.lane.b32.xlu0 %v2437, 113
        %v2642 = vpop.permute.xlu0 %2641
        %2643 = vrot.lane.b32.xlu0 %v2434, 113
        %v2644 = vpop.permute.xlu0 %2643
        %2645 = vrot.lane.b32.xlu0 %v2438, 113
        %v2646 = vpop.permute.xlu0 %2645
        %v2647 = vsel %vm1350, %v2640, %v2644
        %v2648 = vsel %vm1350, %v2642, %v2646
        %v2649 = vsel %vm1350, %v2636, %v2640
        %v2650 = vsel %vm1350, %v2638, %v2642
        %v2651 = vsel %vm1350, %v2632, %v2636
        %v2652 = vsel %vm1350, %v2634, %v2638
        %v2653 = vsel %vm1350, %v2644, %v2632
        %v2654 = vsel %vm1350, %v2646, %v2634
        %v2655 = vmul.f32 %v2651, %v1358
        %v2656 = vmul.f32 %v2649, %v1362
        %v2657 = vmul.f32 %v2647, %v1366
        %v2658 = vmul.f32 %v2653, %v1370
        %v2659 = vmul.f32 %v2652, %v1358
        %v2660 = vmul.f32 %v2650, %v1362
        %v2661 = vmul.f32 %v2648, %v1366
        %v2662 = vmul.f32 %v2654, %v1370
        %v2663 = vpack.c.bf16 %v2659, %v2655
        %v2664 = vpack.c.bf16 %v2660, %v2656
        %v2665 = vpack.c.bf16 %v2661, %v2657
        %v2666 = vpack.c.bf16 %v2662, %v2658
        %2667 = vrot.lane.b32.xlu0 %v2431, 112
        %v2668 = vpop.permute.xlu0 %2667
        %2669 = vrot.lane.b32.xlu0 %v2435, 112
        %v2670 = vpop.permute.xlu0 %2669
        %2671 = vrot.lane.b32.xlu0 %v2432, 112
        %v2672 = vpop.permute.xlu0 %2671
        %2673 = vrot.lane.b32.xlu0 %v2436, 112
        %v2674 = vpop.permute.xlu0 %2673
        %2675 = vrot.lane.b32.xlu0 %v2433, 112
        %v2676 = vpop.permute.xlu0 %2675
        %2677 = vrot.lane.b32.xlu0 %v2437, 112
        %v2678 = vpop.permute.xlu0 %2677
        %2679 = vrot.lane.b32.xlu0 %v2434, 112
        %v2680 = vpop.permute.xlu0 %2679
        %2681 = vrot.lane.b32.xlu0 %v2438, 112
        %v2682 = vpop.permute.xlu0 %2681
        %v2683 = vsel %vm654, %v2676, %v2680
        %v2684 = vsel %vm654, %v2678, %v2682
        %v2685 = vsel %vm654, %v2672, %v2676
        %v2686 = vsel %vm654, %v2674, %v2678
        %v2687 = vsel %vm654, %v2668, %v2672
        %v2688 = vsel %vm654, %v2670, %v2674
        %v2689 = vsel %vm654, %v2680, %v2668
        %v2690 = vsel %vm654, %v2682, %v2670
        %v2691 = vmul.f32 %v2687, %v662
        %v2692 = vmul.f32 %v2685, %v666
        %v2693 = vmul.f32 %v2683, %v670
        %v2694 = vmul.f32 %v2689, %v674
        %v2695 = vmul.f32 %v2688, %v662
        %v2696 = vmul.f32 %v2686, %v666
        %v2697 = vmul.f32 %v2684, %v670
        %v2698 = vmul.f32 %v2690, %v674
        %v2699 = vpack.c.bf16 %v2695, %v2691
        %v2700 = vpack.c.bf16 %v2696, %v2692
        %v2701 = vpack.c.bf16 %v2697, %v2693
        %v2702 = vpack.c.bf16 %v2698, %v2694
        %2703 = vrot.lane.b32.xlu0 %v2431, 111
        %v2704 = vpop.permute.xlu0 %2703
        %2705 = vrot.lane.b32.xlu0 %v2435, 111
        %v2706 = vpop.permute.xlu0 %2705
        %2707 = vrot.lane.b32.xlu0 %v2432, 111
        %v2708 = vpop.permute.xlu0 %2707
        %2709 = vrot.lane.b32.xlu0 %v2436, 111
        %v2710 = vpop.permute.xlu0 %2709
        %2711 = vrot.lane.b32.xlu0 %v2433, 111
        %v2712 = vpop.permute.xlu0 %2711
        %2713 = vrot.lane.b32.xlu0 %v2437, 111
        %v2714 = vpop.permute.xlu0 %2713
        %2715 = vrot.lane.b32.xlu0 %v2434, 111
        %v2716 = vpop.permute.xlu0 %2715
        %2717 = vrot.lane.b32.xlu0 %v2438, 111
        %v2718 = vpop.permute.xlu0 %2717
        %v2719 = vsel %vm1391, %v2712, %v2716
        %v2720 = vsel %vm1391, %v2714, %v2718
        %v2721 = vsel %vm1391, %v2708, %v2712
        %v2722 = vsel %vm1391, %v2710, %v2714
        %v2723 = vsel %vm1391, %v2704, %v2708
        %v2724 = vsel %vm1391, %v2706, %v2710
        %v2725 = vsel %vm1391, %v2716, %v2704
        %v2726 = vsel %vm1391, %v2718, %v2706
        %v2727 = vmul.f32 %v2723, %v1399
        %v2728 = vmul.f32 %v2721, %v1403
        %v2729 = vmul.f32 %v2719, %v1407
        %v2730 = vmul.f32 %v2725, %v1411
        %v2731 = vmul.f32 %v2724, %v1399
        %v2732 = vmul.f32 %v2722, %v1403
        %v2733 = vmul.f32 %v2720, %v1407
        %v2734 = vmul.f32 %v2726, %v1411
        %v2735 = vpack.c.bf16 %v2731, %v2727
        %v2736 = vpack.c.bf16 %v2732, %v2728
        %v2737 = vpack.c.bf16 %v2733, %v2729
        %v2738 = vpack.c.bf16 %v2734, %v2730
        %v2739 = vld [vmem:[%s8] sm:$0xff]
        %v2740 = vld [vmem:[%s8 + $0x8] sm:$0x33]
        %v2743 = vunpack.c.l.b16 %v2739
        %v2744 = vunpack.c.h.b16 %v2739
        %v2745 = vunpack.c.l.b16 %v2740
        %v2746 = vunpack.c.h.b16 %v2740
        %v2747 = vpack.c.b16 %v2745, %v2743
        %v2748 = vpack.c.b16 %v2746, %v2744
        %vm2750 = vcmask 392192
        %v2752 = vsel %vm2750, %v2748, 0
        %2754 = vmatprep.subr.bf16.mxu0 %v2440
        %2755 = vmatpush1.bf16.msra.mxu0 %v2439
        %2756 = vmatprep.subr.bf16.mxu0 %v2444
        %2757 = vmatpush1.bf16.msra.mxu0 %v2443
        %2758 = vmatprep.subr.bf16.mxu0 %v2480
        %2759 = vmatpush1.bf16.msra.mxu0 %v2479
        %2760 = vmatprep.subr.bf16.mxu0 %v2516
        %2761 = vmatpush1.bf16.msra.mxu0 %v2515
        %2762 = vmatprep.subr.bf16.mxu0 %v2552
        %2763 = vmatpush1.bf16.msra.mxu0 %v2551
        %2764 = vmatprep.subr.bf16.mxu0 %v2588
        %2765 = vmatpush1.bf16.msra.mxu0 %v2587
        %2766 = vmatprep.subr.bf16.mxu0 %v2592
        %2767 = vmatpush1.bf16.msra.mxu0 %v2591
        %2768 = vmatprep.subr.bf16.mxu0 %v2628
        %2769 = vmatpush1.bf16.msra.mxu0 %v2627
        %2770 = vmatprep.subr.bf16.mxu0 %v2664
        %2771 = vmatpush1.bf16.msra.mxu0 %v2663
        %2772 = vmatprep.subr.bf16.mxu0 %v2700
        %2773 = vmatpush1.bf16.msra.mxu0 %v2699
        %2774 = vmatprep.subr.bf16.mxu0 %v2736
        %2775 = vmatpush1.bf16.msra.mxu0 %v2735
        %2776 = vmatprep.subr.bf16.mxu0 0
        %2777 = vmatpush1.bf16.msra.mxu0 0
        %2778 = vmatprep.subr.bf16.mxu0 0
        %2779 = vmatpush1.bf16.msra.mxu0 0
        %2780 = vmatprep.subr.bf16.mxu0 0
        %2781 = vmatpush1.bf16.msra.mxu0 0
        %2782 = vmatprep.subr.bf16.mxu0 0
        %2783 = vmatpush1.bf16.msra.mxu0 0
        %2784 = vmatprep.subr.bf16.mxu0 0
        %2785 = vmatpush1.bf16.msra.mxu0 0
        %2786 = vmatprep.mubr.bf16.mxu0 %v2752
        %2787 = vmatmul.mubr.bf16.gmra.mrb[0].mxu0 %v2747
        %v2788 = vpop.f32.mrb[0].mxu0
        %v2789 = vadd.f32 0.0, %v2788
        %v2790 = vpop.f32.mrb[0].mxu0
        %v2791 = vadd.f32 0.0, %v2790
        %v2792 = vpop.f32.mrb[0].mxu0
        %v2793 = vadd.f32 0.0, %v2792
        %v2794 = vpop.f32.mrb[0].mxu0
        %v2795 = vadd.f32 0.0, %v2794
        %2796 = vdwg.mxu0
        %2797 = vmatprep.subr.bf16.mxu0 %v2442
        %2798 = vmatpush1.bf16.msra.mxu0 %v2441
        %2799 = vmatprep.subr.bf16.mxu0 %v2446
        %2800 = vmatpush1.bf16.msra.mxu0 %v2445
        %2801 = vmatprep.subr.bf16.mxu0 %v2482
        %2802 = vmatpush1.bf16.msra.mxu0 %v2481
        %2803 = vmatprep.subr.bf16.mxu0 %v2518
        %2804 = vmatpush1.bf16.msra.mxu0 %v2517
        %2805 = vmatprep.subr.bf16.mxu0 %v2554
        %2806 = vmatpush1.bf16.msra.mxu0 %v2553
        %2807 = vmatprep.subr.bf16.mxu0 %v2590
        %2808 = vmatpush1.bf16.msra.mxu0 %v2589
        %2809 = vmatprep.subr.bf16.mxu0 %v2594
        %2810 = vmatpush1.bf16.msra.mxu0 %v2593
        %2811 = vmatprep.subr.bf16.mxu0 %v2630
        %2812 = vmatpush1.bf16.msra.mxu0 %v2629
        %2813 = vmatprep.subr.bf16.mxu0 %v2666
        %2814 = vmatpush1.bf16.msra.mxu0 %v2665
        %2815 = vmatprep.subr.bf16.mxu0 %v2702
        %2816 = vmatpush1.bf16.msra.mxu0 %v2701
        %2817 = vmatprep.subr.bf16.mxu0 %v2738
        %2818 = vmatpush1.bf16.msra.mxu0 %v2737
        %2819 = vmatprep.subr.bf16.mxu0 0
        %2820 = vmatpush1.bf16.msra.mxu0 0
        %2821 = vmatprep.subr.bf16.mxu0 0
        %2822 = vmatpush1.bf16.msra.mxu0 0
        %2823 = vmatprep.subr.bf16.mxu0 0
        %2824 = vmatpush1.bf16.msra.mxu0 0
        %2825 = vmatprep.subr.bf16.mxu0 0
        %2826 = vmatpush1.bf16.msra.mxu0 0
        %2827 = vmatprep.subr.bf16.mxu0 0
        %2828 = vmatpush1.bf16.msra.mxu0 0
        %2829 = vmatprep.mubr.bf16.mxu0 %v2752
        %2830 = vmatmul.mubr.bf16.gmra.mrb[0].mxu0 %v2747
        %v2831 = vpop.f32.mrb[0].mxu0
        %v2832 = vadd.f32 0.0, %v2831
        %v2833 = vpop.f32.mrb[0].mxu0
        %v2834 = vadd.f32 0.0, %v2833
        %v2835 = vpop.f32.mrb[0].mxu0
        %v2836 = vadd.f32 0.0, %v2835
        %v2837 = vpop.f32.mrb[0].mxu0
        %v2838 = vadd.f32 0.0, %v2837
        %2839 = vdwg.mxu0
        %v2844 = vrot.slane %v2789, 4
        %v2845 = vrot.slane %v2791, 4
        %v2846 = vrot.slane %v2832, 4
        %v2847 = vrot.slane %v2834, 4
        %v2852 = vadd.f32 %v2789, %v2844
        %v2853 = vadd.f32 %v2791, %v2845
        %v2854 = vadd.f32 %v2832, %v2846
        %v2855 = vadd.f32 %v2834, %v2847
        %v2856 = vadd.f32 %v2852, %v2793
        %v2857 = vadd.f32 %v2853, %v2795
        %v2858 = vadd.f32 %v2854, %v2836
        %v2859 = vadd.f32 %v2855, %v2838
        %v2860 = vtanh.pop %v2856
        %v2861 = vtanh.pop %v2857
        %v2862 = vtanh.pop %v2858
        %v2863 = vtanh.pop %v2859
        %v2868 = vrot.slane %v2860, 4
        %v2869 = vrot.slane %v2861, 4
        %v2870 = vrot.slane %v2862, 4
        %v2871 = vrot.slane %v2863, 4
        %v2876 = vsel %vm1672, %v2793, %v2868
        %v2877 = vsel %vm1672, %v2795, %v2869
        %v2878 = vsel %vm1672, %v2836, %v2870
        %v2879 = vsel %vm1672, %v2838, %v2871
        %2880 = vrot.lane.b32.xlu0 %v2789, 17
        %v2881 = vpop.permute.xlu0 %2880
        %2882 = vrot.lane.b32.xlu0 %v2876, 17
        %v2883 = vpop.permute.xlu0 %2882
        %2884 = vrot.lane.b32.xlu0 %v2791, 17
        %v2885 = vpop.permute.xlu0 %2884
        %2886 = vrot.lane.b32.xlu0 %v2877, 17
        %v2887 = vpop.permute.xlu0 %2886
        %2888 = vrot.lane.b32.xlu0 %v2832, 17
        %v2889 = vpop.permute.xlu0 %2888
        %2890 = vrot.lane.b32.xlu0 %v2878, 17
        %v2891 = vpop.permute.xlu0 %2890
        %2892 = vrot.lane.b32.xlu0 %v2834, 17
        %v2893 = vpop.permute.xlu0 %2892
        %2894 = vrot.lane.b32.xlu0 %v2879, 17
        %v2895 = vpop.permute.xlu0 %2894
        %v2896 = vsel %vm1260, %v2889, %v2893
        %v2897 = vsel %vm1260, %v2891, %v2895
        %v2898 = vsel %vm1260, %v2885, %v2889
        %v2899 = vsel %vm1260, %v2887, %v2891
        %v2900 = vsel %vm1260, %v2881, %v2885
        %v2901 = vsel %vm1260, %v2883, %v2887
        %v2902 = vsel %vm1260, %v2893, %v2881
        %v2903 = vsel %vm1260, %v2895, %v2883
        %v2904 = vmul.f32 %v2902, %v1268
        %v2905 = vmul.f32 %v2900, %v1272
        %v2906 = vmul.f32 %v2898, %v1276
        %v2907 = vmul.f32 %v2896, %v1280
        %v2908 = vmul.f32 %v2903, %v1268
        %v2909 = vmul.f32 %v2901, %v1272
        %v2910 = vmul.f32 %v2899, %v1276
        %v2911 = vmul.f32 %v2897, %v1280
        %v2912 = vpack.c.bf16 %v2908, %v2904
        %v2913 = vpack.c.bf16 %v2909, %v2905
        %v2914 = vpack.c.bf16 %v2910, %v2906
        %v2915 = vpack.c.bf16 %v2911, %v2907
        %2916 = vrot.lane.b32.xlu0 %v2789, 16
        %v2917 = vpop.permute.xlu0 %2916
        %2918 = vrot.lane.b32.xlu0 %v2876, 16
        %v2919 = vpop.permute.xlu0 %2918
        %2920 = vrot.lane.b32.xlu0 %v2791, 16
        %v2921 = vpop.permute.xlu0 %2920
        %2922 = vrot.lane.b32.xlu0 %v2877, 16
        %v2923 = vpop.permute.xlu0 %2922
        %2924 = vrot.lane.b32.xlu0 %v2832, 16
        %v2925 = vpop.permute.xlu0 %2924
        %2926 = vrot.lane.b32.xlu0 %v2878, 16
        %v2927 = vpop.permute.xlu0 %2926
        %2928 = vrot.lane.b32.xlu0 %v2834, 16
        %v2929 = vpop.permute.xlu0 %2928
        %2930 = vrot.lane.b32.xlu0 %v2879, 16
        %v2931 = vpop.permute.xlu0 %2930
        %v2932 = vsel %vm621, %v2925, %v2929
        %v2933 = vsel %vm621, %v2927, %v2931
        %v2934 = vsel %vm621, %v2921, %v2925
        %v2935 = vsel %vm621, %v2923, %v2927
        %v2936 = vsel %vm621, %v2917, %v2921
        %v2937 = vsel %vm621, %v2919, %v2923
        %v2938 = vsel %vm621, %v2929, %v2917
        %v2939 = vsel %vm621, %v2931, %v2919
        %v2940 = vmul.f32 %v2938, %v629
        %v2941 = vmul.f32 %v2936, %v633
        %v2942 = vmul.f32 %v2934, %v637
        %v2943 = vmul.f32 %v2932, %v641
        %v2944 = vmul.f32 %v2939, %v629
        %v2945 = vmul.f32 %v2937, %v633
        %v2946 = vmul.f32 %v2935, %v637
        %v2947 = vmul.f32 %v2933, %v641
        %v2948 = vpack.c.bf16 %v2944, %v2940
        %v2949 = vpack.c.bf16 %v2945, %v2941
        %v2950 = vpack.c.bf16 %v2946, %v2942
        %v2951 = vpack.c.bf16 %v2947, %v2943
        %2952 = vrot.lane.b32.xlu0 %v2789, 15
        %v2953 = vpop.permute.xlu0 %2952
        %2954 = vrot.lane.b32.xlu0 %v2876, 15
        %v2955 = vpop.permute.xlu0 %2954
        %2956 = vrot.lane.b32.xlu0 %v2791, 15
        %v2957 = vpop.permute.xlu0 %2956
        %2958 = vrot.lane.b32.xlu0 %v2877, 15
        %v2959 = vpop.permute.xlu0 %2958
        %2960 = vrot.lane.b32.xlu0 %v2832, 15
        %v2961 = vpop.permute.xlu0 %2960
        %2962 = vrot.lane.b32.xlu0 %v2878, 15
        %v2963 = vpop.permute.xlu0 %2962
        %2964 = vrot.lane.b32.xlu0 %v2834, 15
        %v2965 = vpop.permute.xlu0 %2964
        %2966 = vrot.lane.b32.xlu0 %v2879, 15
        %v2967 = vpop.permute.xlu0 %2966
        %v2968 = vsel %vm1301, %v2961, %v2965
        %v2969 = vsel %vm1301, %v2963, %v2967
        %v2970 = vsel %vm1301, %v2957, %v2961
        %v2971 = vsel %vm1301, %v2959, %v2963
        %v2972 = vsel %vm1301, %v2953, %v2957
        %v2973 = vsel %vm1301, %v2955, %v2959
        %v2974 = vsel %vm1301, %v2965, %v2953
        %v2975 = vsel %vm1301, %v2967, %v2955
        %v2976 = vmul.f32 %v2974, %v1309
        %v2977 = vmul.f32 %v2972, %v1313
        %v2978 = vmul.f32 %v2970, %v1317
        %v2979 = vmul.f32 %v2968, %v1321
        %v2980 = vmul.f32 %v2975, %v1309
        %v2981 = vmul.f32 %v2973, %v1313
        %v2982 = vmul.f32 %v2971, %v1317
        %v2983 = vmul.f32 %v2969, %v1321
        %v2984 = vpack.c.bf16 %v2980, %v2976
        %v2985 = vpack.c.bf16 %v2981, %v2977
        %v2986 = vpack.c.bf16 %v2982, %v2978
        %v2987 = vpack.c.bf16 %v2983, %v2979
        %2988 = vrot.lane.b32.xlu0 %v2789, 1
        %v2989 = vpop.permute.xlu0 %2988
        %2990 = vrot.lane.b32.xlu0 %v2876, 1
        %v2991 = vpop.permute.xlu0 %2990
        %2992 = vrot.lane.b32.xlu0 %v2791, 1
        %v2993 = vpop.permute.xlu0 %2992
        %2994 = vrot.lane.b32.xlu0 %v2877, 1
        %v2995 = vpop.permute.xlu0 %2994
        %2996 = vrot.lane.b32.xlu0 %v2832, 1
        %v2997 = vpop.permute.xlu0 %2996
        %2998 = vrot.lane.b32.xlu0 %v2878, 1
        %v2999 = vpop.permute.xlu0 %2998
        %3000 = vrot.lane.b32.xlu0 %v2834, 1
        %v3001 = vpop.permute.xlu0 %3000
        %3002 = vrot.lane.b32.xlu0 %v2879, 1
        %v3003 = vpop.permute.xlu0 %3002
        %v3004 = vsel %vm687, %v2997, %v3001
        %v3005 = vsel %vm687, %v2999, %v3003
        %v3006 = vsel %vm687, %v2993, %v2997
        %v3007 = vsel %vm687, %v2995, %v2999
        %v3008 = vsel %vm687, %v2989, %v2993
        %v3009 = vsel %vm687, %v2991, %v2995
        %v3010 = vsel %vm687, %v3001, %v2989
        %v3011 = vsel %vm687, %v3003, %v2991
        %v3012 = vmul.f32 %v3010, %v695
        %v3013 = vmul.f32 %v3008, %v699
        %v3014 = vmul.f32 %v3006, %v703
        %v3015 = vmul.f32 %v3004, %v707
        %v3016 = vmul.f32 %v3011, %v695
        %v3017 = vmul.f32 %v3009, %v699
        %v3018 = vmul.f32 %v3007, %v703
        %v3019 = vmul.f32 %v3005, %v707
        %v3020 = vpack.c.bf16 %v3016, %v3012
        %v3021 = vpack.c.bf16 %v3017, %v3013
        %v3022 = vpack.c.bf16 %v3018, %v3014
        %v3023 = vpack.c.bf16 %v3019, %v3015
        %v3024 = vpack.c.bf16 %v2876, %v2789
        %v3025 = vpack.c.bf16 %v2877, %v2791
        %v3026 = vpack.c.bf16 %v2878, %v2832
        %v3027 = vpack.c.bf16 %v2879, %v2834
        %3028 = vrot.lane.b32.xlu0 %v2789, 127
        %v3029 = vpop.permute.xlu0 %3028
        %3030 = vrot.lane.b32.xlu0 %v2876, 127
        %v3031 = vpop.permute.xlu0 %3030
        %3032 = vrot.lane.b32.xlu0 %v2791, 127
        %v3033 = vpop.permute.xlu0 %3032
        %3034 = vrot.lane.b32.xlu0 %v2877, 127
        %v3035 = vpop.permute.xlu0 %3034
        %3036 = vrot.lane.b32.xlu0 %v2832, 127
        %v3037 = vpop.permute.xlu0 %3036
        %3038 = vrot.lane.b32.xlu0 %v2878, 127
        %v3039 = vpop.permute.xlu0 %3038
        %3040 = vrot.lane.b32.xlu0 %v2834, 127
        %v3041 = vpop.permute.xlu0 %3040
        %3042 = vrot.lane.b32.xlu0 %v2879, 127
        %v3043 = vpop.permute.xlu0 %3042
        %v3044 = vsel %vm720, %v3037, %v3041
        %v3045 = vsel %vm720, %v3039, %v3043
        %v3046 = vsel %vm720, %v3033, %v3037
        %v3047 = vsel %vm720, %v3035, %v3039
        %v3048 = vsel %vm720, %v3029, %v3033
        %v3049 = vsel %vm720, %v3031, %v3035
        %v3050 = vsel %vm720, %v3041, %v3029
        %v3051 = vsel %vm720, %v3043, %v3031
        %v3052 = vmul.f32 %v3048, %v728
        %v3053 = vmul.f32 %v3046, %v732
        %v3054 = vmul.f32 %v3044, %v736
        %v3055 = vmul.f32 %v3050, %v740
        %v3056 = vmul.f32 %v3049, %v728
        %v3057 = vmul.f32 %v3047, %v732
        %v3058 = vmul.f32 %v3045, %v736
        %v3059 = vmul.f32 %v3051, %v740
        %v3060 = vpack.c.bf16 %v3056, %v3052
        %v3061 = vpack.c.bf16 %v3057, %v3053
        %v3062 = vpack.c.bf16 %v3058, %v3054
        %v3063 = vpack.c.bf16 %v3059, %v3055
        %3064 = vrot.lane.b32.xlu0 %v2789, 113
        %v3065 = vpop.permute.xlu0 %3064
        %3066 = vrot.lane.b32.xlu0 %v2876, 113
        %v3067 = vpop.permute.xlu0 %3066
        %3068 = vrot.lane.b32.xlu0 %v2791, 113
        %v3069 = vpop.permute.xlu0 %3068
        %3070 = vrot.lane.b32.xlu0 %v2877, 113
        %v3071 = vpop.permute.xlu0 %3070
        %3072 = vrot.lane.b32.xlu0 %v2832, 113
        %v3073 = vpop.permute.xlu0 %3072
        %3074 = vrot.lane.b32.xlu0 %v2878, 113
        %v3075 = vpop.permute.xlu0 %3074
        %3076 = vrot.lane.b32.xlu0 %v2834, 113
        %v3077 = vpop.permute.xlu0 %3076
        %3078 = vrot.lane.b32.xlu0 %v2879, 113
        %v3079 = vpop.permute.xlu0 %3078
        %v3080 = vsel %vm1350, %v3073, %v3077
        %v3081 = vsel %vm1350, %v3075, %v3079
        %v3082 = vsel %vm1350, %v3069, %v3073
        %v3083 = vsel %vm1350, %v3071, %v3075
        %v3084 = vsel %vm1350, %v3065, %v3069
        %v3085 = vsel %vm1350, %v3067, %v3071
        %v3086 = vsel %vm1350, %v3077, %v3065
        %v3087 = vsel %vm1350, %v3079, %v3067
        %v3088 = vmul.f32 %v3084, %v1358
        %v3089 = vmul.f32 %v3082, %v1362
        %v3090 = vmul.f32 %v3080, %v1366
        %v3091 = vmul.f32 %v3086, %v1370
        %v3092 = vmul.f32 %v3085, %v1358
        %v3093 = vmul.f32 %v3083, %v1362
        %v3094 = vmul.f32 %v3081, %v1366
        %v3095 = vmul.f32 %v3087, %v1370
        %v3096 = vpack.c.bf16 %v3092, %v3088
        %v3097 = vpack.c.bf16 %v3093, %v3089
        %v3098 = vpack.c.bf16 %v3094, %v3090
        %v3099 = vpack.c.bf16 %v3095, %v3091
        %3100 = vrot.lane.b32.xlu0 %v2789, 112
        %v3101 = vpop.permute.xlu0 %3100
        %3102 = vrot.lane.b32.xlu0 %v2876, 112
        %v3103 = vpop.permute.xlu0 %3102
        %3104 = vrot.lane.b32.xlu0 %v2791, 112
        %v3105 = vpop.permute.xlu0 %3104
        %3106 = vrot.lane.b32.xlu0 %v2877, 112
        %v3107 = vpop.permute.xlu0 %3106
        %3108 = vrot.lane.b32.xlu0 %v2832, 112
        %v3109 = vpop.permute.xlu0 %3108
        %3110 = vrot.lane.b32.xlu0 %v2878, 112
        %v3111 = vpop.permute.xlu0 %3110
        %3112 = vrot.lane.b32.xlu0 %v2834, 112
        %v3113 = vpop.permute.xlu0 %3112
        %3114 = vrot.lane.b32.xlu0 %v2879, 112
        %v3115 = vpop.permute.xlu0 %3114
        %v3116 = vsel %vm654, %v3109, %v3113
        %v3117 = vsel %vm654, %v3111, %v3115
        %v3118 = vsel %vm654, %v3105, %v3109
        %v3119 = vsel %vm654, %v3107, %v3111
        %v3120 = vsel %vm654, %v3101, %v3105
        %v3121 = vsel %vm654, %v3103, %v3107
        %v3122 = vsel %vm654, %v3113, %v3101
        %v3123 = vsel %vm654, %v3115, %v3103
        %v3124 = vmul.f32 %v3120, %v662
        %v3125 = vmul.f32 %v3118, %v666
        %v3126 = vmul.f32 %v3116, %v670
        %v3127 = vmul.f32 %v3122, %v674
        %v3128 = vmul.f32 %v3121, %v662
        %v3129 = vmul.f32 %v3119, %v666
        %v3130 = vmul.f32 %v3117, %v670
        %v3131 = vmul.f32 %v3123, %v674
        %v3132 = vpack.c.bf16 %v3128, %v3124
        %v3133 = vpack.c.bf16 %v3129, %v3125
        %v3134 = vpack.c.bf16 %v3130, %v3126
        %v3135 = vpack.c.bf16 %v3131, %v3127
        %3136 = vrot.lane.b32.xlu0 %v2789, 111
        %v3137 = vpop.permute.xlu0 %3136
        %3138 = vrot.lane.b32.xlu0 %v2876, 111
        %v3139 = vpop.permute.xlu0 %3138
        %3140 = vrot.lane.b32.xlu0 %v2791, 111
        %v3141 = vpop.permute.xlu0 %3140
        %3142 = vrot.lane.b32.xlu0 %v2877, 111
        %v3143 = vpop.permute.xlu0 %3142
        %3144 = vrot.lane.b32.xlu0 %v2832, 111
        %v3145 = vpop.permute.xlu0 %3144
        %3146 = vrot.lane.b32.xlu0 %v2878, 111
        %v3147 = vpop.permute.xlu0 %3146
        %3148 = vrot.lane.b32.xlu0 %v2834, 111
        %v3149 = vpop.permute.xlu0 %3148
        %3150 = vrot.lane.b32.xlu0 %v2879, 111
        %v3151 = vpop.permute.xlu0 %3150
        %v3152 = vsel %vm1391, %v3145, %v3149
        %v3153 = vsel %vm1391, %v3147, %v3151
        %v3154 = vsel %vm1391, %v3141, %v3145
        %v3155 = vsel %vm1391, %v3143, %v3147
        %v3156 = vsel %vm1391, %v3137, %v3141
        %v3157 = vsel %vm1391, %v3139, %v3143
        %v3158 = vsel %vm1391, %v3149, %v3137
        %v3159 = vsel %vm1391, %v3151, %v3139
        %v3160 = vmul.f32 %v3156, %v1399
        %v3161 = vmul.f32 %v3154, %v1403
        %v3162 = vmul.f32 %v3152, %v1407
        %v3163 = vmul.f32 %v3158, %v1411
        %v3164 = vmul.f32 %v3157, %v1399
        %v3165 = vmul.f32 %v3155, %v1403
        %v3166 = vmul.f32 %v3153, %v1407
        %v3167 = vmul.f32 %v3159, %v1411
        %v3168 = vpack.c.bf16 %v3164, %v3160
        %v3169 = vpack.c.bf16 %v3165, %v3161
        %v3170 = vpack.c.bf16 %v3166, %v3162
        %v3171 = vpack.c.bf16 %v3167, %v3163
        %v3172 = vld [vmem:[%s9] sm:$0xff]
        %v3173 = vld [vmem:[%s9 + $0x8] sm:$0xff]
        %v3176 = vunpack.c.l.b16 %v3172
        %v3177 = vunpack.c.h.b16 %v3172
        %v3178 = vunpack.c.l.b16 %v3173
        %v3179 = vunpack.c.h.b16 %v3173
        %v3180 = vpack.c.b16 %v3178, %v3176
        %v3181 = vpack.c.b16 %v3179, %v3177
        %vm3183 = vcmask 130048
        %v3185 = vsel %vm3183, %v3181, 0
        %3187 = vmatprep.subr.bf16.mxu0 %v2913
        %3188 = vmatpush1.bf16.msra.mxu0 %v2912
        %3189 = vmatprep.subr.bf16.mxu0 %v2949
        %3190 = vmatpush1.bf16.msra.mxu0 %v2948
        %3191 = vmatprep.subr.bf16.mxu0 %v2985
        %3192 = vmatpush1.bf16.msra.mxu0 %v2984
        %3193 = vmatprep.subr.bf16.mxu0 %v3021
        %3194 = vmatpush1.bf16.msra.mxu0 %v3020
        %3195 = vmatprep.subr.bf16.mxu0 %v3025
        %3196 = vmatpush1.bf16.msra.mxu0 %v3024
        %3197 = vmatprep.subr.bf16.mxu0 %v3061
        %3198 = vmatpush1.bf16.msra.mxu0 %v3060
        %3199 = vmatprep.subr.bf16.mxu0 %v3097
        %3200 = vmatpush1.bf16.msra.mxu0 %v3096
        %3201 = vmatprep.subr.bf16.mxu0 %v3133
        %3202 = vmatpush1.bf16.msra.mxu0 %v3132
        %3203 = vmatprep.subr.bf16.mxu0 %v3169
        %3204 = vmatpush1.bf16.msra.mxu0 %v3168
        %3205 = vmatprep.subr.bf16.mxu0 0
        %3206 = vmatpush1.bf16.msra.mxu0 0
        %3207 = vmatprep.subr.bf16.mxu0 0
        %3208 = vmatpush1.bf16.msra.mxu0 0
        %3209 = vmatprep.subr.bf16.mxu0 0
        %3210 = vmatpush1.bf16.msra.mxu0 0
        %3211 = vmatprep.subr.bf16.mxu0 0
        %3212 = vmatpush1.bf16.msra.mxu0 0
        %3213 = vmatprep.subr.bf16.mxu0 0
        %3214 = vmatpush1.bf16.msra.mxu0 0
        %3215 = vmatprep.subr.bf16.mxu0 0
        %3216 = vmatpush1.bf16.msra.mxu0 0
        %3217 = vmatprep.subr.bf16.mxu0 0
        %3218 = vmatpush1.bf16.msra.mxu0 0
        %3219 = vmatprep.mubr.bf16.mxu0 %v3185
        %3220 = vmatmul.mubr.bf16.gmra.mrb[0].mxu0 %v3180
        %v3221 = vpop.f32.mrb[0].mxu0
        %v3222 = vadd.f32 0.0, %v3221
        %v3223 = vpop.f32.mrb[0].mxu0
        %v3224 = vadd.f32 0.0, %v3223
        %v3225 = vpop.f32.mrb[0].mxu0
        %v3226 = vadd.f32 0.0, %v3225
        %v3227 = vpop.f32.mrb[0].mxu0
        %v3228 = vadd.f32 0.0, %v3227
        %3229 = vdwg.mxu0
        %3230 = vmatprep.subr.bf16.mxu0 %v2915
        %3231 = vmatpush1.bf16.msra.mxu0 %v2914
        %3232 = vmatprep.subr.bf16.mxu0 %v2951
        %3233 = vmatpush1.bf16.msra.mxu0 %v2950
        %3234 = vmatprep.subr.bf16.mxu0 %v2987
        %3235 = vmatpush1.bf16.msra.mxu0 %v2986
        %3236 = vmatprep.subr.bf16.mxu0 %v3023
        %3237 = vmatpush1.bf16.msra.mxu0 %v3022
        %3238 = vmatprep.subr.bf16.mxu0 %v3027
        %3239 = vmatpush1.bf16.msra.mxu0 %v3026
        %3240 = vmatprep.subr.bf16.mxu0 %v3063
        %3241 = vmatpush1.bf16.msra.mxu0 %v3062
        %3242 = vmatprep.subr.bf16.mxu0 %v3099
        %3243 = vmatpush1.bf16.msra.mxu0 %v3098
        %3244 = vmatprep.subr.bf16.mxu0 %v3135
        %3245 = vmatpush1.bf16.msra.mxu0 %v3134
        %3246 = vmatprep.subr.bf16.mxu0 %v3171
        %3247 = vmatpush1.bf16.msra.mxu0 %v3170
        %3248 = vmatprep.subr.bf16.mxu0 0
        %3249 = vmatpush1.bf16.msra.mxu0 0
        %3250 = vmatprep.subr.bf16.mxu0 0
        %3251 = vmatpush1.bf16.msra.mxu0 0
        %3252 = vmatprep.subr.bf16.mxu0 0
        %3253 = vmatpush1.bf16.msra.mxu0 0
        %3254 = vmatprep.subr.bf16.mxu0 0
        %3255 = vmatpush1.bf16.msra.mxu0 0
        %3256 = vmatprep.subr.bf16.mxu0 0
        %3257 = vmatpush1.bf16.msra.mxu0 0
        %3258 = vmatprep.subr.bf16.mxu0 0
        %3259 = vmatpush1.bf16.msra.mxu0 0
        %3260 = vmatprep.subr.bf16.mxu0 0
        %3261 = vmatpush1.bf16.msra.mxu0 0
        %3262 = vmatprep.mubr.bf16.mxu0 %v3185
        %3263 = vmatmul.mubr.bf16.gmra.mrb[0].mxu0 %v3180
        %v3264 = vpop.f32.mrb[0].mxu0
        %v3265 = vadd.f32 0.0, %v3264
        %v3266 = vpop.f32.mrb[0].mxu0
        %v3267 = vadd.f32 0.0, %v3266
        %v3268 = vpop.f32.mrb[0].mxu0
        %v3269 = vadd.f32 0.0, %v3268
        %v3270 = vpop.f32.mrb[0].mxu0
        %v3271 = vadd.f32 0.0, %v3270
        %3272 = vdwg.mxu0
        %3273 = vst [vmem:[%s528] sm:$0xff] %v3222
        %3274 = vst [vmem:[%s528 + $0x8] sm:$0xff] %v3224
        %3275 = vst [vmem:[%s528 + $0x10] sm:$0xff] %v3265
        %3276 = vst [vmem:[%s528 + $0x18] sm:$0xff] %v3267
        %3277 = vst [vmem:[%s528 + $0x20] sm:$0x3] %v3226
        %3278 = vst [vmem:[%s528 + $0x28] sm:$0x3] %v3228
        %3279 = vst [vmem:[%s528 + $0x30] sm:$0x3] %v3269
        %3280 = vst [vmem:[%s528 + $0x38] sm:$0x3] %v3271
        %v3281 = vld [vmem:[%s10] sm:$0x3]
        %3283 = vset.pattern.permute.xlu0 0
        %3284 = vperm.xlu0 %3283, %v3281
        %v3285 = vpop.permute.xlu0 %3284
        %v3291 = vrot.slane %v3226, 2
        %v3292 = vrot.slane %v3228, 2
        %v3293 = vrot.slane %v3269, 2
        %v3294 = vrot.slane %v3271, 2
        %v3299 = vmul.f32 %v3285, %v3291
        %v3300 = vmul.f32 %v3285, %v3292
        %v3301 = vmul.f32 %v3285, %v3293
        %v3302 = vmul.f32 %v3285, %v3294
        %v3303 = vld [vmem:[%s11] sm:$0x3]
        %3305 = vset.pattern.permute.xlu0 0
        %3306 = vperm.xlu0 %3305, %v3303
        %v3307 = vpop.permute.xlu0 %3306
        %v3309 = vadd.f32 %v3299, %v3307
        %v3310 = vadd.f32 %v3300, %v3307
        %v3311 = vadd.f32 %v3301, %v3307
        %v3312 = vadd.f32 %v3302, %v3307
        %v3317 = vrot.slane %v3309, 6
        %v3318 = vrot.slane %v3310, 6
        %v3319 = vrot.slane %v3311, 6
        %v3320 = vrot.slane %v3312, 6
        %3325 = vst [vmem:[%s528 + $0x20] sm:$0xc] %v3317
        %3326 = vst [vmem:[%s528 + $0x28] sm:$0xc] %v3318
        %3327 = vst [vmem:[%s528 + $0x30] sm:$0xc] %v3319
        %3328 = vst [vmem:[%s528 + $0x38] sm:$0xc] %v3320
        %v3329 = vld [vmem:[%s12] sm:$0x3]
        %v3330 = vld [vmem:[%s14] sm:$0x3]
        %v3331 = vrot.slane %v3226, 4
        %v3332 = vrot.slane %v3228, 4
        %v3333 = vrot.slane %v3269, 4
        %v3334 = vrot.slane %v3271, 4
        %3339 = vrot.lane.b32.xlu0 %v3331, 3
        %v3340 = vpop.permute.xlu0 %3339
        %3341 = vrot.lane.b32.xlu0 %v3332, 3
        %v3342 = vpop.permute.xlu0 %3341
        %3343 = vrot.lane.b32.xlu0 %v3333, 3
        %v3344 = vpop.permute.xlu0 %3343
        %3345 = vrot.lane.b32.xlu0 %v3334, 3
        %v3346 = vpop.permute.xlu0 %3345
        %vm3347 = vcmp.lt.s32.totalorder %v620, 3
        %v3348 = vsel %vm3347, %v3344, %v3346
        %v3349 = vsel %vm3347, %v3342, %v3344
        %v3350 = vsel %vm3347, %v3340, %v3342
        %v3351 = vsel %vm3347, %v3346, %v3340
        %v3352 = vlaneseq
        %v3353 = vshrl.u32 %v3352, 7
        %v3354 = vsub.s32 1, %v3353
        %v3355 = vrot.slane %v541, %v3354
        %v3356 = vlaneseq
        %v3357 = vshrl.u32 %v3356, 7
        %v3358 = vsub.s32 1, %v3357
        %v3359 = vrot.slane %v542, %v3358
        %v3360 = vlaneseq
        %v3361 = vshrl.u32 %v3360, 7
        %v3362 = vsub.s32 1, %v3361
        %v3363 = vrot.slane %v543, %v3362
        %v3364 = vlaneseq
        %v3365 = vshrl.u32 %v3364, 7
        %v3366 = vsub.s32 1, %v3365
        %v3367 = vrot.slane %v544, %v3366
        %v3368 = vmul.f32 %v3351, %v3355
        %v3369 = vmul.f32 %v3350, %v3359
        %v3370 = vmul.f32 %v3349, %v3363
        %v3371 = vmul.f32 %v3348, %v3367
        %3373 = vset.pattern.permute.xlu0 0
        %3374 = vperm.xlu0 %3373, %v3329
        %v3375 = vpop.permute.xlu0 %3374
        %v3377 = vmul.f32 %v3375, %v3368
        %v3378 = vmul.f32 %v3375, %v3369
        %v3379 = vmul.f32 %v3375, %v3370
        %v3380 = vmul.f32 %v3375, %v3371
        %v3381 = vadd.f32 %v3377, 0.0
        %v3382 = vadd.f32 %v3378, 0.0
        %v3383 = vadd.f32 %v3379, 0.0
        %v3384 = vadd.f32 %v3380, 0.0
        %v3385 = vrot.slane %v3226, 6
        %v3386 = vrot.slane %v3228, 6
        %v3387 = vrot.slane %v3269, 6
        %v3388 = vrot.slane %v3271, 6
        %3393 = vrot.lane.b32.xlu0 %v3385, 48
        %v3394 = vpop.permute.xlu0 %3393
        %3395 = vrot.lane.b32.xlu0 %v3386, 48
        %v3396 = vpop.permute.xlu0 %3395
        %3397 = vrot.lane.b32.xlu0 %v3387, 48
        %v3398 = vpop.permute.xlu0 %3397
        %3399 = vrot.lane.b32.xlu0 %v3388, 48
        %v3400 = vpop.permute.xlu0 %3399
        %vm3401 = vcmp.lt.s32.totalorder %v620, 48
        %v3402 = vsel %vm3401, %v3398, %v3400
        %v3403 = vsel %vm3401, %v3396, %v3398
        %v3404 = vsel %vm3401, %v3394, %v3396
        %v3405 = vsel %vm3401, %v3400, %v3394
        %v3406 = vlaneseq
        %v3407 = vshrl.u32 %v3406, 7
        %v3408 = vsub.s32 5, %v3407
        %v3409 = vrot.slane %v541, %v3408
        %v3410 = vlaneseq
        %v3411 = vshrl.u32 %v3410, 7
        %v3412 = vsub.s32 5, %v3411
        %v3413 = vrot.slane %v542, %v3412
        %v3414 = vlaneseq
        %v3415 = vshrl.u32 %v3414, 7
        %v3416 = vsub.s32 5, %v3415
        %v3417 = vrot.slane %v543, %v3416
        %v3418 = vlaneseq
        %v3419 = vshrl.u32 %v3418, 7
        %v3420 = vsub.s32 5, %v3419
        %v3421 = vrot.slane %v544, %v3420
        %v3422 = vmul.f32 %v3405, %v3409
        %v3423 = vmul.f32 %v3404, %v3413
        %v3424 = vmul.f32 %v3403, %v3417
        %v3425 = vmul.f32 %v3402, %v3421
        %3427 = vset.pattern.permute.xlu0 0
        %3428 = vperm.xlu0 %3427, %v3330
        %v3429 = vpop.permute.xlu0 %3428
        %v3431 = vmul.f32 %v3429, %v3422
        %v3432 = vmul.f32 %v3429, %v3423
        %v3433 = vmul.f32 %v3429, %v3424
        %v3434 = vmul.f32 %v3429, %v3425
        %v3435 = vadd.f32 %v3431, 0.0
        %v3436 = vadd.f32 %v3432, 0.0
        %v3437 = vadd.f32 %v3433, 0.0
        %v3438 = vadd.f32 %v3434, 0.0
        %3439 = vrot.lane.b32.xlu0 %v3331, 2
        %v3440 = vpop.permute.xlu0 %3439
        %3441 = vrot.lane.b32.xlu0 %v3332, 2
        %v3442 = vpop.permute.xlu0 %3441
        %3443 = vrot.lane.b32.xlu0 %v3333, 2
        %v3444 = vpop.permute.xlu0 %3443
        %3445 = vrot.lane.b32.xlu0 %v3334, 2
        %v3446 = vpop.permute.xlu0 %3445
        %vm3447 = vcmp.lt.s32.totalorder %v620, 2
        %v3448 = vsel %vm3447, %v3444, %v3446
        %v3449 = vsel %vm3447, %v3442, %v3444
        %v3450 = vsel %vm3447, %v3440, %v3442
        %v3451 = vsel %vm3447, %v3446, %v3440
        %v3452 = vlaneseq
        %v3453 = vshrl.u32 %v3452, 7
        %v3454 = vsub.s32 2, %v3453
        %v3455 = vrot.slane %v541, %v3454
        %v3456 = vlaneseq
        %v3457 = vshrl.u32 %v3456, 7
        %v3458 = vsub.s32 2, %v3457
        %v3459 = vrot.slane %v542, %v3458
        %v3460 = vlaneseq
        %v3461 = vshrl.u32 %v3460, 7
        %v3462 = vsub.s32 2, %v3461
        %v3463 = vrot.slane %v543, %v3462
        %v3464 = vlaneseq
        %v3465 = vshrl.u32 %v3464, 7
        %v3466 = vsub.s32 2, %v3465
        %v3467 = vrot.slane %v544, %v3466
        %v3468 = vmul.f32 %v3451, %v3455
        %v3469 = vmul.f32 %v3450, %v3459
        %v3470 = vmul.f32 %v3449, %v3463
        %v3471 = vmul.f32 %v3448, %v3467
        %3472 = vset.pattern.permute.xlu0 1
        %3473 = vperm.xlu0 %3472, %v3329
        %v3474 = vpop.permute.xlu0 %3473
        %v3476 = vmul.f32 %v3474, %v3468
        %v3477 = vmul.f32 %v3474, %v3469
        %v3478 = vmul.f32 %v3474, %v3470
        %v3479 = vmul.f32 %v3474, %v3471
        %v3480 = vadd.f32 %v3381, %v3476
        %v3481 = vadd.f32 %v3382, %v3477
        %v3482 = vadd.f32 %v3383, %v3478
        %v3483 = vadd.f32 %v3384, %v3479
        %3484 = vrot.lane.b32.xlu0 %v3385, 32
        %v3485 = vpop.permute.xlu0 %3484
        %3486 = vrot.lane.b32.xlu0 %v3386, 32
        %v3487 = vpop.permute.xlu0 %3486
        %3488 = vrot.lane.b32.xlu0 %v3387, 32
        %v3489 = vpop.permute.xlu0 %3488
        %3490 = vrot.lane.b32.xlu0 %v3388, 32
        %v3491 = vpop.permute.xlu0 %3490
        %vm3492 = vcmp.lt.s32.totalorder %v620, 32
        %v3493 = vsel %vm3492, %v3489, %v3491
        %v3494 = vsel %vm3492, %v3487, %v3489
        %v3495 = vsel %vm3492, %v3485, %v3487
        %v3496 = vsel %vm3492, %v3491, %v3485
        %v3497 = vlaneseq
        %v3498 = vshrl.u32 %v3497, 7
        %v3499 = vsub.s32 6, %v3498
        %v3500 = vrot.slane %v541, %v3499
        %v3501 = vlaneseq
        %v3502 = vshrl.u32 %v3501, 7
        %v3503 = vsub.s32 6, %v3502
        %v3504 = vrot.slane %v542, %v3503
        %v3505 = vlaneseq
        %v3506 = vshrl.u32 %v3505, 7
        %v3507 = vsub.s32 6, %v3506
        %v3508 = vrot.slane %v543, %v3507
        %v3509 = vlaneseq
        %v3510 = vshrl.u32 %v3509, 7
        %v3511 = vsub.s32 6, %v3510
        %v3512 = vrot.slane %v544, %v3511
        %v3513 = vmul.f32 %v3496, %v3500
        %v3514 = vmul.f32 %v3495, %v3504
        %v3515 = vmul.f32 %v3494, %v3508
        %v3516 = vmul.f32 %v3493, %v3512
        %3517 = vset.pattern.permute.xlu0 1
        %3518 = vperm.xlu0 %3517, %v3330
        %v3519 = vpop.permute.xlu0 %3518
        %v3521 = vmul.f32 %v3519, %v3513
        %v3522 = vmul.f32 %v3519, %v3514
        %v3523 = vmul.f32 %v3519, %v3515
        %v3524 = vmul.f32 %v3519, %v3516
        %v3525 = vadd.f32 %v3435, %v3521
        %v3526 = vadd.f32 %v3436, %v3522
        %v3527 = vadd.f32 %v3437, %v3523
        %v3528 = vadd.f32 %v3438, %v3524
        %3529 = vrot.lane.b32.xlu0 %v3331, 1
        %v3530 = vpop.permute.xlu0 %3529
        %3531 = vrot.lane.b32.xlu0 %v3332, 1
        %v3532 = vpop.permute.xlu0 %3531
        %3533 = vrot.lane.b32.xlu0 %v3333, 1
        %v3534 = vpop.permute.xlu0 %3533
        %3535 = vrot.lane.b32.xlu0 %v3334, 1
        %v3536 = vpop.permute.xlu0 %3535
        %v3537 = vsel %vm687, %v3534, %v3536
        %v3538 = vsel %vm687, %v3532, %v3534
        %v3539 = vsel %vm687, %v3530, %v3532
        %v3540 = vsel %vm687, %v3536, %v3530
        %v3541 = vmul.f32 %v3540, %v695
        %v3542 = vmul.f32 %v3539, %v699
        %v3543 = vmul.f32 %v3538, %v703
        %v3544 = vmul.f32 %v3537, %v707
        %3545 = vset.pattern.permute.xlu0 2
        %3546 = vperm.xlu0 %3545, %v3329
        %v3547 = vpop.permute.xlu0 %3546
        %v3549 = vmul.f32 %v3547, %v3541
        %v3550 = vmul.f32 %v3547, %v3542
        %v3551 = vmul.f32 %v3547, %v3543
        %v3552 = vmul.f32 %v3547, %v3544
        %v3553 = vadd.f32 %v3480, %v3549
        %v3554 = vadd.f32 %v3481, %v3550
        %v3555 = vadd.f32 %v3482, %v3551
        %v3556 = vadd.f32 %v3483, %v3552
        %3557 = vrot.lane.b32.xlu0 %v3385, 16
        %v3558 = vpop.permute.xlu0 %3557
        %3559 = vrot.lane.b32.xlu0 %v3386, 16
        %v3560 = vpop.permute.xlu0 %3559
        %3561 = vrot.lane.b32.xlu0 %v3387, 16
        %v3562 = vpop.permute.xlu0 %3561
        %3563 = vrot.lane.b32.xlu0 %v3388, 16
        %v3564 = vpop.permute.xlu0 %3563
        %v3565 = vsel %vm621, %v3562, %v3564
        %v3566 = vsel %vm621, %v3560, %v3562
        %v3567 = vsel %vm621, %v3558, %v3560
        %v3568 = vsel %vm621, %v3564, %v3558
        %v3569 = vmul.f32 %v3568, %v629
        %v3570 = vmul.f32 %v3567, %v633
        %v3571 = vmul.f32 %v3566, %v637
        %v3572 = vmul.f32 %v3565, %v641
        %3573 = vset.pattern.permute.xlu0 2
        %3574 = vperm.xlu0 %3573, %v3330
        %v3575 = vpop.permute.xlu0 %3574
        %v3577 = vmul.f32 %v3575, %v3569
        %v3578 = vmul.f32 %v3575, %v3570
        %v3579 = vmul.f32 %v3575, %v3571
        %v3580 = vmul.f32 %v3575, %v3572
        %v3581 = vadd.f32 %v3525, %v3577
        %v3582 = vadd.f32 %v3526, %v3578
        %v3583 = vadd.f32 %v3527, %v3579
        %v3584 = vadd.f32 %v3528, %v3580
        %3585 = vset.pattern.permute.xlu0 3
        %3586 = vperm.xlu0 %3585, %v3329
        %v3587 = vpop.permute.xlu0 %3586
        %v3589 = vmul.f32 %v3587, %v3331
        %v3590 = vmul.f32 %v3587, %v3332
        %v3591 = vmul.f32 %v3587, %v3333
        %v3592 = vmul.f32 %v3587, %v3334
        %v3593 = vadd.f32 %v3553, %v3589
        %v3594 = vadd.f32 %v3554, %v3590
        %v3595 = vadd.f32 %v3555, %v3591
        %v3596 = vadd.f32 %v3556, %v3592
        %3597 = vset.pattern.permute.xlu0 3
        %3598 = vperm.xlu0 %3597, %v3330
        %v3599 = vpop.permute.xlu0 %3598
        %v3601 = vmul.f32 %v3599, %v3385
        %v3602 = vmul.f32 %v3599, %v3386
        %v3603 = vmul.f32 %v3599, %v3387
        %v3604 = vmul.f32 %v3599, %v3388
        %v3605 = vadd.f32 %v3581, %v3601
        %v3606 = vadd.f32 %v3582, %v3602
        %v3607 = vadd.f32 %v3583, %v3603
        %v3608 = vadd.f32 %v3584, %v3604
        %3609 = vrot.lane.b32.xlu0 %v3331, 127
        %v3610 = vpop.permute.xlu0 %3609
        %3611 = vrot.lane.b32.xlu0 %v3332, 127
        %v3612 = vpop.permute.xlu0 %3611
        %3613 = vrot.lane.b32.xlu0 %v3333, 127
        %v3614 = vpop.permute.xlu0 %3613
        %3615 = vrot.lane.b32.xlu0 %v3334, 127
        %v3616 = vpop.permute.xlu0 %3615
        %v3617 = vsel %vm720, %v3614, %v3616
        %v3618 = vsel %vm720, %v3612, %v3614
        %v3619 = vsel %vm720, %v3610, %v3612
        %v3620 = vsel %vm720, %v3616, %v3610
        %v3621 = vmul.f32 %v3619, %v728
        %v3622 = vmul.f32 %v3618, %v732
        %v3623 = vmul.f32 %v3617, %v736
        %v3624 = vmul.f32 %v3620, %v740
        %3625 = vset.pattern.permute.xlu0 4
        %3626 = vperm.xlu0 %3625, %v3329
        %v3627 = vpop.permute.xlu0 %3626
        %v3629 = vmul.f32 %v3627, %v3621
        %v3630 = vmul.f32 %v3627, %v3622
        %v3631 = vmul.f32 %v3627, %v3623
        %v3632 = vmul.f32 %v3627, %v3624
        %v3633 = vadd.f32 %v3593, %v3629
        %v3634 = vadd.f32 %v3594, %v3630
        %v3635 = vadd.f32 %v3595, %v3631
        %v3636 = vadd.f32 %v3596, %v3632
        %3637 = vrot.lane.b32.xlu0 %v3385, 112
        %v3638 = vpop.permute.xlu0 %3637
        %3639 = vrot.lane.b32.xlu0 %v3386, 112
        %v3640 = vpop.permute.xlu0 %3639
        %3641 = vrot.lane.b32.xlu0 %v3387, 112
        %v3642 = vpop.permute.xlu0 %3641
        %3643 = vrot.lane.b32.xlu0 %v3388, 112
        %v3644 = vpop.permute.xlu0 %3643
        %v3645 = vsel %vm654, %v3642, %v3644
        %v3646 = vsel %vm654, %v3640, %v3642
        %v3647 = vsel %vm654, %v3638, %v3640
        %v3648 = vsel %vm654, %v3644, %v3638
        %v3649 = vmul.f32 %v3647, %v662
        %v3650 = vmul.f32 %v3646, %v666
        %v3651 = vmul.f32 %v3645, %v670
        %v3652 = vmul.f32 %v3648, %v674
        %3653 = vset.pattern.permute.xlu0 4
        %3654 = vperm.xlu0 %3653, %v3330
        %v3655 = vpop.permute.xlu0 %3654
        %v3657 = vmul.f32 %v3655, %v3649
        %v3658 = vmul.f32 %v3655, %v3650
        %v3659 = vmul.f32 %v3655, %v3651
        %v3660 = vmul.f32 %v3655, %v3652
        %v3661 = vadd.f32 %v3605, %v3657
        %v3662 = vadd.f32 %v3606, %v3658
        %v3663 = vadd.f32 %v3607, %v3659
        %v3664 = vadd.f32 %v3608, %v3660
        %3665 = vrot.lane.b32.xlu0 %v3331, 126
        %v3666 = vpop.permute.xlu0 %3665
        %3667 = vrot.lane.b32.xlu0 %v3332, 126
        %v3668 = vpop.permute.xlu0 %3667
        %3669 = vrot.lane.b32.xlu0 %v3333, 126
        %v3670 = vpop.permute.xlu0 %3669
        %3671 = vrot.lane.b32.xlu0 %v3334, 126
        %v3672 = vpop.permute.xlu0 %3671
        %vm3673 = vcmp.lt.s32.totalorder %v620, 126
        %v3674 = vsel %vm3673, %v3670, %v3672
        %v3675 = vsel %vm3673, %v3668, %v3670
        %v3676 = vsel %vm3673, %v3666, %v3668
        %v3677 = vsel %vm3673, %v3672, %v3666
        %v3678 = vlaneseq
        %v3679 = vshrl.u32 %v3678, 7
        %v3680 = vsub.s32 3, %v3679
        %v3681 = vrot.slane %v541, %v3680
        %v3682 = vlaneseq
        %v3683 = vshrl.u32 %v3682, 7
        %v3684 = vsub.s32 3, %v3683
        %v3685 = vrot.slane %v542, %v3684
        %v3686 = vlaneseq
        %v3687 = vshrl.u32 %v3686, 7
        %v3688 = vsub.s32 3, %v3687
        %v3689 = vrot.slane %v543, %v3688
        %v3690 = vlaneseq
        %v3691 = vshrl.u32 %v3690, 7
        %v3692 = vsub.s32 3, %v3691
        %v3693 = vrot.slane %v544, %v3692
        %v3694 = vmul.f32 %v3676, %v3681
        %v3695 = vmul.f32 %v3675, %v3685
        %v3696 = vmul.f32 %v3674, %v3689
        %v3697 = vmul.f32 %v3677, %v3693
        %3698 = vset.pattern.permute.xlu0 5
        %3699 = vperm.xlu0 %3698, %v3329
        %v3700 = vpop.permute.xlu0 %3699
        %v3702 = vmul.f32 %v3700, %v3694
        %v3703 = vmul.f32 %v3700, %v3695
        %v3704 = vmul.f32 %v3700, %v3696
        %v3705 = vmul.f32 %v3700, %v3697
        %v3706 = vadd.f32 %v3633, %v3702
        %v3707 = vadd.f32 %v3634, %v3703
        %v3708 = vadd.f32 %v3635, %v3704
        %v3709 = vadd.f32 %v3636, %v3705
        %3710 = vrot.lane.b32.xlu0 %v3385, 96
        %v3711 = vpop.permute.xlu0 %3710
        %3712 = vrot.lane.b32.xlu0 %v3386, 96
        %v3713 = vpop.permute.xlu0 %3712
        %3714 = vrot.lane.b32.xlu0 %v3387, 96
        %v3715 = vpop.permute.xlu0 %3714
        %3716 = vrot.lane.b32.xlu0 %v3388, 96
        %v3717 = vpop.permute.xlu0 %3716
        %vm3718 = vcmp.lt.s32.totalorder %v620, 96
        %v3719 = vsel %vm3718, %v3715, %v3717
        %v3720 = vsel %vm3718, %v3713, %v3715
        %v3721 = vsel %vm3718, %v3711, %v3713
        %v3722 = vsel %vm3718, %v3717, %v3711
        %v3723 = vlaneseq
        %v3724 = vshrl.u32 %v3723, 7
        %v3725 = vsub.s32 7, %v3724
        %v3726 = vrot.slane %v541, %v3725
        %v3727 = vlaneseq
        %v3728 = vshrl.u32 %v3727, 7
        %v3729 = vsub.s32 7, %v3728
        %v3730 = vrot.slane %v542, %v3729
        %v3731 = vlaneseq
        %v3732 = vshrl.u32 %v3731, 7
        %v3733 = vsub.s32 7, %v3732
        %v3734 = vrot.slane %v543, %v3733
        %v3735 = vlaneseq
        %v3736 = vshrl.u32 %v3735, 7
        %v3737 = vsub.s32 7, %v3736
        %v3738 = vrot.slane %v544, %v3737
        %v3739 = vmul.f32 %v3721, %v3726
        %v3740 = vmul.f32 %v3720, %v3730
        %v3741 = vmul.f32 %v3719, %v3734
        %v3742 = vmul.f32 %v3722, %v3738
        %3743 = vset.pattern.permute.xlu0 5
        %3744 = vperm.xlu0 %3743, %v3330
        %v3745 = vpop.permute.xlu0 %3744
        %v3747 = vmul.f32 %v3745, %v3739
        %v3748 = vmul.f32 %v3745, %v3740
        %v3749 = vmul.f32 %v3745, %v3741
        %v3750 = vmul.f32 %v3745, %v3742
        %v3751 = vadd.f32 %v3661, %v3747
        %v3752 = vadd.f32 %v3662, %v3748
        %v3753 = vadd.f32 %v3663, %v3749
        %v3754 = vadd.f32 %v3664, %v3750
        %3755 = vrot.lane.b32.xlu0 %v3331, 125
        %v3756 = vpop.permute.xlu0 %3755
        %3757 = vrot.lane.b32.xlu0 %v3332, 125
        %v3758 = vpop.permute.xlu0 %3757
        %3759 = vrot.lane.b32.xlu0 %v3333, 125
        %v3760 = vpop.permute.xlu0 %3759
        %3761 = vrot.lane.b32.xlu0 %v3334, 125
        %v3762 = vpop.permute.xlu0 %3761
        %vm3763 = vcmp.lt.s32.totalorder %v620, 125
        %v3764 = vsel %vm3763, %v3760, %v3762
        %v3765 = vsel %vm3763, %v3758, %v3760
        %v3766 = vsel %vm3763, %v3756, %v3758
        %v3767 = vsel %vm3763, %v3762, %v3756
        %v3768 = vlaneseq
        %v3769 = vshrl.u32 %v3768, 7
        %v3770 = vsub.s32 4, %v3769
        %v3771 = vrot.slane %v541, %v3770
        %v3772 = vlaneseq
        %v3773 = vshrl.u32 %v3772, 7
        %v3774 = vsub.s32 4, %v3773
        %v3775 = vrot.slane %v542, %v3774
        %v3776 = vlaneseq
        %v3777 = vshrl.u32 %v3776, 7
        %v3778 = vsub.s32 4, %v3777
        %v3779 = vrot.slane %v543, %v3778
        %v3780 = vlaneseq
        %v3781 = vshrl.u32 %v3780, 7
        %v3782 = vsub.s32 4, %v3781
        %v3783 = vrot.slane %v544, %v3782
        %v3784 = vmul.f32 %v3766, %v3771
        %v3785 = vmul.f32 %v3765, %v3775
        %v3786 = vmul.f32 %v3764, %v3779
        %v3787 = vmul.f32 %v3767, %v3783
        %3788 = vset.pattern.permute.xlu0 6
        %3789 = vperm.xlu0 %3788, %v3329
        %v3790 = vpop.permute.xlu0 %3789
        %v3792 = vmul.f32 %v3790, %v3784
        %v3793 = vmul.f32 %v3790, %v3785
        %v3794 = vmul.f32 %v3790, %v3786
        %v3795 = vmul.f32 %v3790, %v3787
        %v3796 = vadd.f32 %v3706, %v3792
        %v3797 = vadd.f32 %v3707, %v3793
        %v3798 = vadd.f32 %v3708, %v3794
        %v3799 = vadd.f32 %v3709, %v3795
        %3800 = vrot.lane.b32.xlu0 %v3385, 80
        %v3801 = vpop.permute.xlu0 %3800
        %3802 = vrot.lane.b32.xlu0 %v3386, 80
        %v3803 = vpop.permute.xlu0 %3802
        %3804 = vrot.lane.b32.xlu0 %v3387, 80
        %v3805 = vpop.permute.xlu0 %3804
        %3806 = vrot.lane.b32.xlu0 %v3388, 80
        %v3807 = vpop.permute.xlu0 %3806
        %vm3808 = vcmp.lt.s32.totalorder %v620, 80
        %v3809 = vsel %vm3808, %v3805, %v3807
        %v3810 = vsel %vm3808, %v3803, %v3805
        %v3811 = vsel %vm3808, %v3801, %v3803
        %v3812 = vsel %vm3808, %v3807, %v3801
        %v3813 = vlaneseq
        %v3814 = vshrl.u32 %v3813, 7
        %v3815 = vsub.s32 0, %v3814
        %v3816 = vrot.slane %v545, %v3815
        %v3817 = vlaneseq
        %v3818 = vshrl.u32 %v3817, 7
        %v3819 = vsub.s32 0, %v3818
        %v3820 = vrot.slane %v546, %v3819
        %v3821 = vlaneseq
        %v3822 = vshrl.u32 %v3821, 7
        %v3823 = vsub.s32 0, %v3822
        %v3824 = vrot.slane %v547, %v3823
        %v3825 = vlaneseq
        %v3826 = vshrl.u32 %v3825, 7
        %v3827 = vsub.s32 0, %v3826
        %v3828 = vrot.slane %v548, %v3827
        %v3829 = vmul.f32 %v3811, %v3816
        %v3830 = vmul.f32 %v3810, %v3820
        %v3831 = vmul.f32 %v3809, %v3824
        %v3832 = vmul.f32 %v3812, %v3828
        %3833 = vset.pattern.permute.xlu0 6
        %3834 = vperm.xlu0 %3833, %v3330
        %v3835 = vpop.permute.xlu0 %3834
        %v3837 = vmul.f32 %v3835, %v3829
        %v3838 = vmul.f32 %v3835, %v3830
        %v3839 = vmul.f32 %v3835, %v3831
        %v3840 = vmul.f32 %v3835, %v3832
        %v3841 = vadd.f32 %v3751, %v3837
        %v3842 = vadd.f32 %v3752, %v3838
        %v3843 = vadd.f32 %v3753, %v3839
        %v3844 = vadd.f32 %v3754, %v3840
        %v3845 = vld [vmem:[%s13] sm:$0x3]
        %3847 = vset.pattern.permute.xlu0 0
        %3848 = vperm.xlu0 %3847, %v3845
        %v3849 = vpop.permute.xlu0 %3848
        %v3851 = vadd.f32 %v3796, %v3849
        %v3852 = vadd.f32 %v3797, %v3849
        %v3853 = vadd.f32 %v3798, %v3849
        %v3854 = vadd.f32 %v3799, %v3849
        %v3859 = vrot.slane %v3851, 4
        %v3860 = vrot.slane %v3852, 4
        %v3861 = vrot.slane %v3853, 4
        %v3862 = vrot.slane %v3854, 4
        %3867 = vst [vmem:[%s528 + $0x20] sm:$0x30] %v3859
        %3868 = vst [vmem:[%s528 + $0x28] sm:$0x30] %v3860
        %3869 = vst [vmem:[%s528 + $0x30] sm:$0x30] %v3861
        %3870 = vst [vmem:[%s528 + $0x38] sm:$0x30] %v3862
        %v3871 = vld [vmem:[%s15] sm:$0x3]
        %3873 = vset.pattern.permute.xlu0 0
        %3874 = vperm.xlu0 %3873, %v3871
        %v3875 = vpop.permute.xlu0 %3874
        %v3877 = vadd.f32 %v3841, %v3875
        %v3878 = vadd.f32 %v3842, %v3875
        %v3879 = vadd.f32 %v3843, %v3875
        %v3880 = vadd.f32 %v3844, %v3875
        %v3885 = vrot.slane %v3877, 2
        %v3886 = vrot.slane %v3878, 2
        %v3887 = vrot.slane %v3879, 2
        %v3888 = vrot.slane %v3880, 2
        %3893 = vst [vmem:[%s528 + $0x20] sm:$0xc0] %v3885
        %3894 = vst [vmem:[%s528 + $0x28] sm:$0xc0] %v3886
        %3895 = vst [vmem:[%s528 + $0x30] sm:$0xc0] %v3887
        %3896 = vst [vmem:[%s528 + $0x38] sm:$0xc0] %v3888
        %s3897 = sand.u32 %s380, 1
        %s3898 = scalar_lea.sflag [#allocation4], %s3897
        %s3899 = sand.u32 %s380, 1
        %s3900 = smul.addr %s3899, 64
        %s3901 = scalar_lea.vmem [#allocation5], %s3900
        // Predicated region
        $region89: #{tpu_custom_call.1} parent=83 // pred_check
          %p3902 = pneg %p390
        $region90: #{tpu_custom_call.1} parent=83 // pred_check_branch
          %3904 = sbr.rel (%p3902) target = $region92
        $region91: #{tpu_custom_call.1} parent=83 // pred_region
          %s3905 = smul.u32 4, %s31
          %s3907 = ssub.s32 1024, 1024
          %3908 = vsyncadd %s3898, %s3907
          %s3909 = smul.addr %s3905, 128
          %s3910 = scalar_lea.hbm %s16, %s3909
          %s3911 = sshll.u32 %s3901, 4
          %s3912 = int_to_ptr.vmem [resolvable:$true] %s3911
          %3917 = dma.vmem_to_hbm [thread:$0]  %s3912, 1024, %s3910, %s3898, 512, 1024, 32
        $region92: #{tpu_custom_call.1} parent=83 // pred_fallthru
          _
      $region84: #{tpu_custom_call.1} parent=5 // pred_fallthru
        _
      %p3918 = scmp.le.s32.totalorder 2, %s26
      // Predicated region
      $region93: #{tpu_custom_call.1} parent=5 // pred_check
        %p3919 = pneg %p3918
      $region94: #{tpu_custom_call.1} parent=5 // pred_check_branch
        %3921 = sbr.rel (%p3919) target = $region96
      $region95: #{tpu_custom_call.1} parent=5 // pred_region
        %s3922 = ssub.s32 %s26, 2
        // Predicated region
        $region97: #{tpu_custom_call.1} parent=95 // pred_check
          %p3923 = pneg %p396
        $region98: #{tpu_custom_call.1} parent=95 // pred_check_branch
          %3925 = sbr.rel (%p3923) target = $region100
        $region99: #{tpu_custom_call.1} parent=95 // pred_region
          %s3926 = sand.u32 %s381, 1
          %s3927 = scalar_lea.sflag [#allocation4], %s3926
          %s3928 = sand.u32 %s381, 1
          %s3929 = smul.addr %s3928, 64
          %s3930 = scalar_lea.vmem [#allocation5], %s3929
          %3931 = dma.done %s3927, 1024
        $region100: #{tpu_custom_call.1} parent=95 // pred_fallthru
          _
      $region96: #{tpu_custom_call.1} parent=5 // pred_fallthru
        _
    $region6: #{tpu_custom_call.1} parent=1 // loop_footer
      %s30 = sadd.s32 1, %s26
    $region7: #{tpu_custom_call.1} parent=1 // loop_footer_branch
      %25 = sbr.rel target = $region3
    $region8: #{tpu_custom_call.1} parent=1 // loop_exit
      _
    %3932 = vsyncpa [#allocation3], 1
    %s3933 = scalar_lea.sflag [#allocation3], 1
    %3934 = vsyncpa %s3933, 1
    %3935 = vsyncpa [#allocation4], 1
    %s3936 = scalar_lea.sflag [#allocation4], 1
    %3937 = vsyncpa %s3936, 1

</llo_original>
